<compile_context>
chip_gen: v6e
topology: v6e:2x2x1
jax: 0.10.0
libtpu: 0.0.40
codegen_flags: <defaults>
</compile_context>

<pallas_src>
import functools

import jax
import jax.numpy as jnp
from jax.experimental import pallas as pl
from jax.experimental.pallas import tpu as pltpu


# ----------------------------------------------------------------------------
# small helpers
# ----------------------------------------------------------------------------
def _make_divisible(v, divisor, min_value=None):
    if min_value is None:
        min_value = divisor
    new_v = max(min_value, int(v + divisor / 2) // divisor * divisor)
    if new_v < 0.9 * v:
        new_v += divisor
    return new_v


def _round_up(x, m):
    return ((x + m - 1) // m) * m


def _apply_act(y, act):
    if act == "relu":
        return jnp.maximum(y, 0.0)
    if act == "relu6":
        return jnp.clip(y, 0.0, 6.0)
    return y


def _cparams(n_grid_dims):
    return pltpu.CompilerParams(
        dimension_semantics=("parallel",) * n_grid_dims,
        vmem_limit_bytes=32 * 1024 * 1024,
    )


class KeyGen:
    def __init__(self, key):
        self.key = key

    def __call__(self):
        self.key, sub = jax.random.split(self.key)
        return sub


# ----------------------------------------------------------------------------
# Pallas kernels
# ----------------------------------------------------------------------------
def _mm_affine_act_kernel(x_ref, w_ref, s_ref, b_ref, o_ref, *, act):
    xv = x_ref[...].astype(jnp.bfloat16)
    wv = w_ref[...].astype(jnp.bfloat16)
    acc = jnp.dot(xv, wv, preferred_element_type=jnp.float32)   # MXU, bf16 in / f32 acc
    y = acc * s_ref[...] + b_ref[...]                            # affine + act in f32
    o_ref[...] = _apply_act(y, act).astype(o_ref.dtype)


def _mm_affine_act_res_kernel(x_ref, w_ref, s_ref, b_ref, r_ref, o_ref, *, act):
    # same as above, plus a fused residual add (x + conv(x)) -- saves one full
    # elementwise pass over the activation in HBM.
    xv = x_ref[...].astype(jnp.bfloat16)
    wv = w_ref[...].astype(jnp.bfloat16)
    acc = jnp.dot(xv, wv, preferred_element_type=jnp.float32)
    y = acc * s_ref[...] + b_ref[...]
    y = _apply_act(y, act) + r_ref[...].astype(jnp.float32)
    o_ref[...] = y.astype(o_ref.dtype)


def matmul_affine_act(x, w, scale, bias, act="none",
                      out_dtype=jnp.bfloat16, pad_n=False, residual=None):
    """(M,K)@(K,N) * scale(1,N) + bias(1,N), optional activation / residual.

    `pad_n=True` pads the output lane dim to a multiple of 128 (lane-dense
    stores) and slices afterwards -- used for the narrow classifier head.
    `residual` (M,N) is added to the result inside the kernel.
    """
    M, K = x.shape
    N = w.shape[1]
    w = w.astype(jnp.bfloat16)

    Np = _round_up(N, 128) if pad_n else N
    if Np != N:
        w = jnp.pad(w, ((0, 0), (0, Np - N)))
        scale = jnp.pad(scale, ((0, 0), (0, Np - N)))
        bias = jnp.pad(bias, ((0, 0), (0, Np - N)))
        if residual is not None:
            residual = jnp.pad(residual, ((0, 0), (0, Np - N)))

    Mp = _round_up(M, 16)
    if Mp <= 512:
        tm = Mp
    else:
        tm = 512
        Mp = _round_up(M, tm)
    if Mp != M:
        x = jnp.pad(x, ((0, Mp - M), (0, 0)))
        if residual is not None:
            residual = jnp.pad(residual, ((0, Mp - M), (0, 0)))

    if Np >= 256 and Np % 256 == 0:
        tn = 256
    elif Np % 128 == 0:
        tn = 128
    else:
        tn = Np

    in_specs = [
        pl.BlockSpec((tm, K), lambda i, j: (i, 0)),
        pl.BlockSpec((K, tn), lambda i, j: (0, j)),
        pl.BlockSpec((1, tn), lambda i, j: (0, j)),
        pl.BlockSpec((1, tn), lambda i, j: (0, j)),
    ]
    args = [x, w, scale, bias]
    if residual is None:
        kernel = functools.partial(_mm_affine_act_kernel, act=act)
    else:
        kernel = functools.partial(_mm_affine_act_res_kernel, act=act)
        in_specs.append(pl.BlockSpec((tm, tn), lambda i, j: (i, j)))
        args.append(residual)

    out = pl.pallas_call(
        kernel,
        out_shape=jax.ShapeDtypeStruct((Mp, Np), out_dtype),
        grid=(Mp // tm, Np // tn),
        in_specs=in_specs,
        out_specs=pl.BlockSpec((tm, tn), lambda i, j: (i, j)),
        compiler_params=_cparams(2),
    )(*args)
    if Mp != M or Np != N:
        out = out[:M, :N]
    return out


def _dw3x3_s1_kernel(x_ref, w_ref, s_ref, b_ref, o_ref, *, act, H, W):
    x = x_ref[0].astype(jnp.float32)          # (H+2, W+2, C)
    w = w_ref[...]                            # (3, 3, C)
    C = x.shape[-1]
    acc = jnp.zeros((H, W, C), jnp.float32)
    for dy in range(3):
        for dx in range(3):
            acc = acc + x[dy:dy + H, dx:dx + W, :] * w[dy, dx, :]
    y = acc * s_ref[0] + b_ref[0]
    o_ref[0] = _apply_act(y, act).astype(o_ref.dtype)


def _dw3x3_s2_kernel(p00_ref, p01_ref, p10_ref, p11_ref, w_ref, s_ref, b_ref,
                     o_ref, *, act, Ho, Wo):
    # Stride-2 depthwise conv computed directly: only Ho x Wo outputs, using
    # four phase-subsampled views of the padded input (unit-stride slices only).
    ph = ((p00_ref[0], p01_ref[0]),
          (p10_ref[0], p11_ref[0]))           # each (Ho+1, Wo+1, C)
    w = w_ref[...]                            # (3, 3, C)
    C = w.shape[-1]
    acc = jnp.zeros((Ho, Wo, C), jnp.float32)
    for dy in range(3):
        for dx in range(3):
            src = ph[dy % 2][dx % 2]
            oy, ox = dy // 2, dx // 2
            acc = acc + src[oy:oy + Ho, ox:ox + Wo, :].astype(jnp.float32) * w[dy, dx, :]
    y = acc * s_ref[0] + b_ref[0]
    o_ref[0] = _apply_act(y, act).astype(o_ref.dtype)


def dwconv3x3_affine_act(x, w, scale, bias, act="relu", stride=1):
    """Depthwise 3x3 conv (pad=1) + per-channel affine + activation."""
    B, H, W, C = x.shape
    # TODO(synk): tile the grid over H rows (halo-aware) for large feature maps;
    #             whole-image blocks are fine at these sizes.
    # TODO(synk): the wrapper-side jnp.pad halo could be replaced by in-kernel
    #             masking / pltpu.roll to avoid the extra activation copy.
    if stride == 1:
        xp = jnp.pad(x, ((0, 0), (1, 1), (1, 1), (0, 0)))
        return pl.pallas_call(
            functools.partial(_dw3x3_s1_kernel, act=act, H=H, W=W),
            out_shape=jax.ShapeDtypeStruct((B, H, W, C), jnp.bfloat16),
            grid=(B,),
            in_specs=[
                pl.BlockSpec((1, H + 2, W + 2, C), lambda b: (b, 0, 0, 0)),
                pl.BlockSpec((3, 3, C), lambda b: (0, 0, 0)),
                pl.BlockSpec((1, C), lambda b: (0, 0)),
                pl.BlockSpec((1, C), lambda b: (0, 0)),
            ],
            out_specs=pl.BlockSpec((1, H, W, C), lambda b: (b, 0, 0, 0)),
            compiler_params=_cparams(1),
        )(xp, w, scale, bias)

    # stride == 2
    if (H % 2) or (W % 2):  # fallback (not hit in this config)
        out = dwconv3x3_affine_act(x, w, scale, bias, act=act, stride=1)
        return out[:, ::2, ::2, :]

    Ho, Wo = H // 2, W // 2
    xp = jnp.pad(x, ((0, 0), (1, 1), (1, 1), (0, 0)))
    phases = [xp[:, r::2, c::2, :] for r in range(2) for c in range(2)]
    ph_spec = pl.BlockSpec((1, Ho + 1, Wo + 1, C), lambda b: (b, 0, 0, 0))
    return pl.pallas_call(
        functools.partial(_dw3x3_s2_kernel, act=act, Ho=Ho, Wo=Wo),
        out_shape=jax.ShapeDtypeStruct((B, Ho, Wo, C), jnp.bfloat16),
        grid=(B,),
        in_specs=[ph_spec, ph_spec, ph_spec, ph_spec,
                  pl.BlockSpec((3, 3, C), lambda b: (0, 0, 0)),
                  pl.BlockSpec((1, C), lambda b: (0, 0)),
                  pl.BlockSpec((1, C), lambda b: (0, 0))],
        out_specs=pl.BlockSpec((1, Ho, Wo, C), lambda b: (b, 0, 0, 0)),
        compiler_params=_cparams(1),
    )(*phases, w, scale, bias)


def _conv3x3_dense_kernel(x_ref, w_ref, s_ref, b_ref, o_ref, *, act, H, W):
    # Dense 3x3 stem conv computed in-kernel (no im2col HBM blow-up); Cin is
    # tiny (3), so a VPU broadcast-MAC over the 3x3xCin taps is used.
    x = x_ref[0].astype(jnp.float32)          # (H+2, W+2, Cin)
    w = w_ref[...]                            # (3, 3, Cin, Cout)
    Cin, Cout = w.shape[2], w.shape[3]
    acc = jnp.zeros((H, W, Cout), jnp.float32)
    for dy in range(3):
        for dx in range(3):
            patch = x[dy:dy + H, dx:dx + W, :]
            for ci in range(Cin):
                acc = acc + patch[:, :, ci:ci + 1] * w[dy, dx, ci, :]
    y = acc * s_ref[0] + b_ref[0]
    o_ref[0] = _apply_act(y, act).astype(o_ref.dtype)


def conv3x3_bn_act(x, p, act="relu"):
    B, H, W, Cin = x.shape
    Cout = p["scale"].shape[-1]
    xp = jnp.pad(x, ((0, 0), (1, 1), (1, 1), (0, 0)))
    return pl.pallas_call(
        functools.partial(_conv3x3_dense_kernel, act=act, H=H, W=W),
        out_shape=jax.ShapeDtypeStruct((B, H, W, Cout), jnp.bfloat16),
        grid=(B,),
        in_specs=[
            pl.BlockSpec((1, H + 2, W + 2, Cin), lambda b: (b, 0, 0, 0)),
            pl.BlockSpec((3, 3, Cin, Cout), lambda b: (0, 0, 0, 0)),
            pl.BlockSpec((1, Cout), lambda b: (0, 0)),
            pl.BlockSpec((1, Cout), lambda b: (0, 0)),
        ],
        out_specs=pl.BlockSpec((1, H, W, Cout), lambda b: (b, 0, 0, 0)),
        compiler_params=_cparams(1),
    )(xp, p["w"], p["scale"], p["bias"])


def _attn_kernel(q_ref, k_ref, v_ref, o_ref, *, num_heads, key_dim, d, act):
    # q/k/v are in native token-major layout (N, nh*kd / nh*d); heads are
    # selected via static channel slices -- no XLA transposes / HBM round trips.
    q = q_ref[0]                              # (N, nh*kd) bf16
    k = k_ref[0]
    v = v_ref[0]                              # (N, nh*d)  bf16
    outs = []
    for h in range(num_heads):
        q_h = q[:, h * key_dim:(h + 1) * key_dim]
        k_h = k[:, h * key_dim:(h + 1) * key_dim]
        v_h = v[:, h * d:(h + 1) * d]
        # NOTE: the reference applies no 1/sqrt(key_dim) scaling and no
        #       attention biases in forward(); neither is applied here.
        s = jax.lax.dot_general(q_h, k_h, (((1,), (1,)), ((), ())),
                                preferred_element_type=jnp.float32)
        s = s - jnp.max(s, axis=-1, keepdims=True)
        p = jnp.exp(s)
        p = p * pl.reciprocal(jnp.sum(p, axis=-1, keepdims=True), approx=True)
        o = jnp.dot(p.astype(v_h.dtype), v_h, preferred_element_type=jnp.float32)
        outs.append(_apply_act(o, act))       # ReLU6 preceding proj is fused
    o_ref[0] = jnp.concatenate(outs, axis=-1).astype(o_ref.dtype)


def attention_heads(q, k, v, num_heads, key_dim, d, act="relu6"):
    """q,k:(B,N,nh*kd)  v:(B,N,nh*d) -> (B,N,nh*d)."""
    B, N, nh_kd = q.shape
    dh = v.shape[-1]
    return pl.pallas_call(
        functools.partial(_attn_kernel, num_heads=num_heads, key_dim=key_dim,
                          d=d, act=act),
        out_shape=jax.ShapeDtypeStruct((B, N, dh), jnp.bfloat16),
        grid=(B,),
        in_specs=[
            pl.BlockSpec((1, N, nh_kd), lambda b: (b, 0, 0)),
            pl.BlockSpec((1, N, nh_kd), lambda b: (b, 0, 0)),
            pl.BlockSpec((1, N, dh), lambda b: (b, 0, 0)),
        ],
        out_specs=pl.BlockSpec((1, N, dh), lambda b: (b, 0, 0)),
        compiler_params=_cparams(1),
    )(q, k, v)


def _gap_kernel(x_ref, o_ref):
    o_ref[0] = jnp.mean(x_ref[0].astype(jnp.float32), axis=0, keepdims=True)


def global_avg_pool(x):
    """(B, L, C) -> (B, C) in f32."""
    B, L, C = x.shape
    out = pl.pallas_call(
        _gap_kernel,
        out_shape=jax.ShapeDtypeStruct((B, 1, C), jnp.float32),
        grid=(B,),
        in_specs=[pl.BlockSpec((1, L, C), lambda b: (b, 0, 0))],
        out_specs=pl.BlockSpec((1, 1, C), lambda b: (b, 0, 0)),
        compiler_params=_cparams(1),
    )(x)
    return out[:, 0, :]


# ----------------------------------------------------------------------------
# module-level forward pieces (glue around the Pallas kernels)
# ----------------------------------------------------------------------------
def conv1x1_bn_act(x, p, act="none", residual=None):
    B, H, W, C = x.shape
    res2d = None if residual is None else residual.reshape(B * H * W, residual.shape[-1])
    y = matmul_affine_act(x.reshape(B * H * W, C), p["w"], p["scale"], p["bias"],
                          act=act, residual=res2d)
    return y.reshape(B, H, W, -1)


def inverted_residual_forward(blk, x):
    out = x
    if "expand" in blk:
        out = conv1x1_bn_act(out, blk["expand"], act="relu")
    dw = blk["dw"]
    out = dwconv3x3_affine_act(out, dw["w"], dw["scale"], dw["bias"],
                               act="relu", stride=blk["stride"])
    # residual add fused into the pointwise-projection kernel
    out = conv1x1_bn_act(out, blk["pw"], act="none",
                         residual=x if blk["use_res"] else None)
    return out


def smb_forward(p, x):
    if p["stem"] is not None:
        x = conv3x3_bn_act(x, p["stem"], act="relu")
    for blk in p["blocks"]:
        x = inverted_residual_forward(blk, x)
    return x


def attention_forward(p, x, residual=None):
    B, H, W, C = x.shape
    nh, kd, d = p["num_heads"], p["key_dim"], p["d"]
    N = H * W
    q = conv1x1_bn_act(x, p["to_q"], act="none").reshape(B, N, nh * kd)
    k = conv1x1_bn_act(x, p["to_k"], act="none").reshape(B, N, nh * kd)
    v = conv1x1_bn_act(x, p["to_v"], act="none").reshape(B, N, nh * d)
    o = attention_heads(q, k, v, nh, kd, d, act="relu6")
    o = o.reshape(B, H, W, nh * d)
    # residual (x + attn(x)) is fused into the proj conv kernel
    return conv1x1_bn_act(o, p["proj"], act="none", residual=residual)


def mlp_forward(p, x, residual=None):
    h = conv1x1_bn_act(x, p["fc1"], act="none")
    ones = jnp.ones_like(p["dw_b"])
    h = dwconv3x3_affine_act(h, p["dw_w"], ones, p["dw_b"], act="relu6", stride=1)
    # residual (x + mlp(x)) is fused into the fc2 kernel
    return conv1x1_bn_act(h, p["fc2"], act="none", residual=residual)


def block_forward(p, x):
    # drop_path prob = 0 -> identity (exact); residual adds fused in-kernel
    x = attention_forward(p["attn"], x, residual=x)
    x = mlp_forward(p["mlp"], x, residual=x)
    return x


def transformer_forward(params, x_nchw):
    x = jnp.transpose(x_nchw, (0, 2, 3, 1))   # NCHW -> NHWC
    num_smb = len(params["smbs"])
    num_trans = len(params["trans"])
    for i in range(num_smb):
        x = smb_forward(params["smbs"][i], x)
        if num_trans + i >= num_smb:
            for blk in params["trans"][i + num_trans - num_smb]:
                x = block_forward(blk, x)
    B, H, W, C = x.shape
    pooled = global_avg_pool(x.reshape(B, H * W, C))
    ones = jnp.ones((1, params["linear_w"].shape[1]), jnp.float32)
    # classifier: pad N=num_classes up to 128 lanes inside the kernel
    return matmul_affine_act(pooled, params["linear_w"], ones, params["linear_b"],
                             act="none", out_dtype=jnp.float32, pad_n=True)


# ----------------------------------------------------------------------------
# deterministic parameter initialization (synthetic; eval-mode BN folded)
# ----------------------------------------------------------------------------
def init_conv_bn(kg, cin, cout, ks=1, groups=1):
    eps = 1e-5
    if groups == 1:
        w = 0.1 * jax.random.normal(kg(), (ks, ks, cin, cout), jnp.float32)
        if ks == 1:
            w = w.reshape(cin, cout)
    else:  # depthwise (groups == cin == cout)
        w = 0.1 * jax.random.normal(kg(), (ks, ks, cout), jnp.float32)
    gamma = 1.0 + 0.1 * jax.random.normal(kg(), (cout,), jnp.float32)
    beta = 0.1 * jax.random.normal(kg(), (cout,), jnp.float32)
    rmean = jnp.zeros((cout,), jnp.float32)
    rvar = jnp.ones((cout,), jnp.float32)
    scale = gamma / jnp.sqrt(rvar + eps)
    bias = beta - rmean * scale
    return {"w": w, "scale": scale.reshape(1, -1), "bias": bias.reshape(1, -1)}


def build_params(kg, cfgs, channels, emb_dims, key_dim, depths, num_heads,
                 attn_ratio, mlp_ratios, num_classes, width_mult=1.0):
    params = {"smbs": [], "trans": []}
    for i, stage_cfg in enumerate(cfgs):
        smb = {"stem": None, "blocks": []}
        inp_channel = channels[i]
        if i == 0:
            smb["stem"] = init_conv_bn(kg, 3, inp_channel, ks=3)
        for (k, t, c, s) in stage_cfg:
            out_c = _make_divisible(c * width_mult, 8)
            hidden = int(round(inp_channel * t))
            blk = {"stride": s, "use_res": (s == 1 and inp_channel == out_c)}
            if t != 1:
                blk["expand"] = init_conv_bn(kg, inp_channel, hidden, 1)
            blk["dw"] = init_conv_bn(kg, hidden, hidden, k, groups=hidden)
            blk["pw"] = init_conv_bn(kg, hidden, out_c, 1)
            smb["blocks"].append(blk)
            inp_channel = out_c
        params["smbs"].append(smb)

    for i in range(len(depths)):
        dim = emb_dims[i]
        nh = num_heads[i]
        d = int(attn_ratio * key_dim)
        dh = d * nh
        nh_kd = key_dim * nh
        mlp_hidden = int(dim * mlp_ratios[i])
        blocks = []
        for _ in range(depths[i]):
            attn = {
                "num_heads": nh, "key_dim": key_dim, "d": d,
                "to_q": init_conv_bn(kg, dim, nh_kd, 1),
                "to_k": init_conv_bn(kg, dim, nh_kd, 1),
                "to_v": init_conv_bn(kg, dim, dh, 1),
                "proj": init_conv_bn(kg, dh, dim, 1),
            }
            mlp = {
                "fc1": init_conv_bn(kg, dim, mlp_hidden, 1),
                "dw_w": 0.1 * jax.random.normal(kg(), (3, 3, mlp_hidden), jnp.float32),
                "dw_b": (0.1 * jax.random.normal(kg(), (mlp_hidden,), jnp.float32)).reshape(1, -1),
                "fc2": init_conv_bn(kg, mlp_hidden, dim, 1),
            }
            blocks.append({"attn": attn, "mlp": mlp})
        params["trans"].append(blocks)

    c_last = channels[-1]
    params["linear_w"] = 0.1 * jax.random.normal(kg(), (c_last, num_classes), jnp.float32)
    params["linear_b"] = (0.1 * jax.random.normal(kg(), (num_classes,), jnp.float32)).reshape(1, -1)
    return params


# ----------------------------------------------------------------------------
if __name__ == "__main__":
    # small, self-consistent config
    cfgs = [
        [(3, 1, 16, 1), (3, 4, 32, 2)],   # stage 1 (with stem): 16x16 -> 8x8, C: 16 -> 32
        [(3, 2, 32, 1)],                  # stage 2: 8x8, C: 32 -> 32
    ]
    channels = [16, 32]
    emb_dims = [32, 32]
    key_dim = 8
    depths = [1, 1]
    num_heads = [2, 2]
    attn_ratio = 2
    mlp_ratios = [2, 2]
    num_classes = 10

    root = jax.random.PRNGKey(0)
    key_params, key_input = jax.random.split(root)

    kg = KeyGen(key_params)
    params = build_params(kg, cfgs, channels, emb_dims, key_dim, depths,
                          num_heads, attn_ratio, mlp_ratios, num_classes)

    x = jax.random.normal(key_input, (2, 3, 16, 16), jnp.float32)  # NCHW like PyTorch

    out = transformer_forward(params, x)
    out = jax.block_until_ready(out)
    assert out.shape == (2, num_classes), out.shape
    assert bool(jnp.all(jnp.isfinite(out)))
    print("KERNEL_OK")
</pallas_src>

<mosaic_0001>
module attributes {stable_mosaic.version = 11 : i64} {
  func.func @_conv3x3_dense_kernel(%arg0: i32, %arg1: memref<1x18x18x3xf32, #tpu.memory_space<vmem>>, %arg2: memref<3x3x3x16xf32, #tpu.memory_space<vmem>>, %arg3: memref<1x16xf32, #tpu.memory_space<vmem>>, %arg4: memref<1x16xf32, #tpu.memory_space<vmem>>, %arg5: memref<1x16x16x16xbf16, #tpu.memory_space<vmem>>) attributes {dimension_semantics = [#tpu.dimension_semantics<parallel>], iteration_bounds = array<i64: 2>, scalar_prefetch = 0 : i64, scratch_operands = 0 : i64, tpu.core_type = #tpu.core_type<tc>, window_params = [{transform_indices = @transform_0, window_bounds = array<i64: 1, 18, 18, 3>}, {pipeline_mode = #tpu.pipeline_mode<synchronous>, transform_indices = @transform_1, window_bounds = array<i64: 3, 3, 3, 16>}, {pipeline_mode = #tpu.pipeline_mode<synchronous>, transform_indices = @transform_2, window_bounds = array<i64: 1, 16>}, {pipeline_mode = #tpu.pipeline_mode<synchronous>, transform_indices = @transform_3, window_bounds = array<i64: 1, 16>}, {transform_indices = @transform_4, window_bounds = array<i64: 1, 16, 16, 16>}]} {
    %c0 = arith.constant 0 : index
    %c0_0 = arith.constant 0 : index
    %c0_1 = arith.constant 0 : index
    %c0_2 = arith.constant 0 : index
    %0 = vector.load %arg1[%c0, %c0_0, %c0_1, %c0_2] : memref<1x18x18x3xf32, #tpu.memory_space<vmem>>, vector<1x18x18x3xf32>
    %1 = vector.shape_cast %0 : vector<1x18x18x3xf32> to vector<18x18x3xf32>
    %c0_3 = arith.constant 0 : index
    %c0_4 = arith.constant 0 : index
    %c0_5 = arith.constant 0 : index
    %c0_6 = arith.constant 0 : index
    %2 = vector.load %arg2[%c0_3, %c0_4, %c0_5, %c0_6] : memref<3x3x3x16xf32, #tpu.memory_space<vmem>>, vector<3x3x3x16xf32>
    %cst = arith.constant 0.000000e+00 : f32
    %3 = vector.broadcast %cst : f32 to vector<16x16x16xf32>
    %4 = vector.extract_strided_slice %1 {offsets = [0, 0, 0], sizes = [16, 16, 3], strides = [1, 1, 1]} : vector<18x18x3xf32> to vector<16x16x3xf32>
    %5 = vector.extract_strided_slice %4 {offsets = [0, 0, 0], sizes = [16, 16, 1], strides = [1, 1, 1]} : vector<16x16x3xf32> to vector<16x16x1xf32>
    %6 = vector.extract_strided_slice %2 {offsets = [0, 0, 0, 0], sizes = [1, 1, 1, 16], strides = [1, 1, 1, 1]} : vector<3x3x3x16xf32> to vector<1x1x1x16xf32>
    %7 = vector.shape_cast %6 : vector<1x1x1x16xf32> to vector<16xf32>
    %8 = vector.shape_cast %7 : vector<16xf32> to vector<1x1x16xf32>
    %9 = vector.broadcast %5 : vector<16x16x1xf32> to vector<16x16x16xf32>
    %10 = vector.broadcast %8 : vector<1x1x16xf32> to vector<16x16x16xf32>
    %11 = arith.mulf %9, %10 : vector<16x16x16xf32>
    %12 = arith.addf %3, %11 : vector<16x16x16xf32>
    %13 = vector.extract_strided_slice %4 {offsets = [0, 0, 1], sizes = [16, 16, 1], strides = [1, 1, 1]} : vector<16x16x3xf32> to vector<16x16x1xf32>
    %14 = vector.extract_strided_slice %2 {offsets = [0, 0, 1, 0], sizes = [1, 1, 1, 16], strides = [1, 1, 1, 1]} : vector<3x3x3x16xf32> to vector<1x1x1x16xf32>
    %15 = vector.shape_cast %14 : vector<1x1x1x16xf32> to vector<16xf32>
    %16 = vector.shape_cast %15 : vector<16xf32> to vector<1x1x16xf32>
    %17 = vector.broadcast %13 : vector<16x16x1xf32> to vector<16x16x16xf32>
    %18 = vector.broadcast %16 : vector<1x1x16xf32> to vector<16x16x16xf32>
    %19 = arith.mulf %17, %18 : vector<16x16x16xf32>
    %20 = arith.addf %12, %19 : vector<16x16x16xf32>
    %21 = vector.extract_strided_slice %4 {offsets = [0, 0, 2], sizes = [16, 16, 1], strides = [1, 1, 1]} : vector<16x16x3xf32> to vector<16x16x1xf32>
    %22 = vector.extract_strided_slice %2 {offsets = [0, 0, 2, 0], sizes = [1, 1, 1, 16], strides = [1, 1, 1, 1]} : vector<3x3x3x16xf32> to vector<1x1x1x16xf32>
    %23 = vector.shape_cast %22 : vector<1x1x1x16xf32> to vector<16xf32>
    %24 = vector.shape_cast %23 : vector<16xf32> to vector<1x1x16xf32>
    %25 = vector.broadcast %21 : vector<16x16x1xf32> to vector<16x16x16xf32>
    %26 = vector.broadcast %24 : vector<1x1x16xf32> to vector<16x16x16xf32>
    %27 = arith.mulf %25, %26 : vector<16x16x16xf32>
    %28 = arith.addf %20, %27 : vector<16x16x16xf32>
    %29 = vector.extract_strided_slice %1 {offsets = [0, 1, 0], sizes = [16, 16, 3], strides = [1, 1, 1]} : vector<18x18x3xf32> to vector<16x16x3xf32>
    %30 = vector.extract_strided_slice %29 {offsets = [0, 0, 0], sizes = [16, 16, 1], strides = [1, 1, 1]} : vector<16x16x3xf32> to vector<16x16x1xf32>
    %31 = vector.extract_strided_slice %2 {offsets = [0, 1, 0, 0], sizes = [1, 1, 1, 16], strides = [1, 1, 1, 1]} : vector<3x3x3x16xf32> to vector<1x1x1x16xf32>
    %32 = vector.shape_cast %31 : vector<1x1x1x16xf32> to vector<16xf32>
    %33 = vector.shape_cast %32 : vector<16xf32> to vector<1x1x16xf32>
    %34 = vector.broadcast %30 : vector<16x16x1xf32> to vector<16x16x16xf32>
    %35 = vector.broadcast %33 : vector<1x1x16xf32> to vector<16x16x16xf32>
    %36 = arith.mulf %34, %35 : vector<16x16x16xf32>
    %37 = arith.addf %28, %36 : vector<16x16x16xf32>
    %38 = vector.extract_strided_slice %29 {offsets = [0, 0, 1], sizes = [16, 16, 1], strides = [1, 1, 1]} : vector<16x16x3xf32> to vector<16x16x1xf32>
    %39 = vector.extract_strided_slice %2 {offsets = [0, 1, 1, 0], sizes = [1, 1, 1, 16], strides = [1, 1, 1, 1]} : vector<3x3x3x16xf32> to vector<1x1x1x16xf32>
    %40 = vector.shape_cast %39 : vector<1x1x1x16xf32> to vector<16xf32>
    %41 = vector.shape_cast %40 : vector<16xf32> to vector<1x1x16xf32>
    %42 = vector.broadcast %38 : vector<16x16x1xf32> to vector<16x16x16xf32>
    %43 = vector.broadcast %41 : vector<1x1x16xf32> to vector<16x16x16xf32>
    %44 = arith.mulf %42, %43 : vector<16x16x16xf32>
    %45 = arith.addf %37, %44 : vector<16x16x16xf32>
    %46 = vector.extract_strided_slice %29 {offsets = [0, 0, 2], sizes = [16, 16, 1], strides = [1, 1, 1]} : vector<16x16x3xf32> to vector<16x16x1xf32>
    %47 = vector.extract_strided_slice %2 {offsets = [0, 1, 2, 0], sizes = [1, 1, 1, 16], strides = [1, 1, 1, 1]} : vector<3x3x3x16xf32> to vector<1x1x1x16xf32>
    %48 = vector.shape_cast %47 : vector<1x1x1x16xf32> to vector<16xf32>
    %49 = vector.shape_cast %48 : vector<16xf32> to vector<1x1x16xf32>
    %50 = vector.broadcast %46 : vector<16x16x1xf32> to vector<16x16x16xf32>
    %51 = vector.broadcast %49 : vector<1x1x16xf32> to vector<16x16x16xf32>
    %52 = arith.mulf %50, %51 : vector<16x16x16xf32>
    %53 = arith.addf %45, %52 : vector<16x16x16xf32>
    %54 = vector.extract_strided_slice %1 {offsets = [0, 2, 0], sizes = [16, 16, 3], strides = [1, 1, 1]} : vector<18x18x3xf32> to vector<16x16x3xf32>
    %55 = vector.extract_strided_slice %54 {offsets = [0, 0, 0], sizes = [16, 16, 1], strides = [1, 1, 1]} : vector<16x16x3xf32> to vector<16x16x1xf32>
    %56 = vector.extract_strided_slice %2 {offsets = [0, 2, 0, 0], sizes = [1, 1, 1, 16], strides = [1, 1, 1, 1]} : vector<3x3x3x16xf32> to vector<1x1x1x16xf32>
    %57 = vector.shape_cast %56 : vector<1x1x1x16xf32> to vector<16xf32>
    %58 = vector.shape_cast %57 : vector<16xf32> to vector<1x1x16xf32>
    %59 = vector.broadcast %55 : vector<16x16x1xf32> to vector<16x16x16xf32>
    %60 = vector.broadcast %58 : vector<1x1x16xf32> to vector<16x16x16xf32>
    %61 = arith.mulf %59, %60 : vector<16x16x16xf32>
    %62 = arith.addf %53, %61 : vector<16x16x16xf32>
    %63 = vector.extract_strided_slice %54 {offsets = [0, 0, 1], sizes = [16, 16, 1], strides = [1, 1, 1]} : vector<16x16x3xf32> to vector<16x16x1xf32>
    %64 = vector.extract_strided_slice %2 {offsets = [0, 2, 1, 0], sizes = [1, 1, 1, 16], strides = [1, 1, 1, 1]} : vector<3x3x3x16xf32> to vector<1x1x1x16xf32>
    %65 = vector.shape_cast %64 : vector<1x1x1x16xf32> to vector<16xf32>
    %66 = vector.shape_cast %65 : vector<16xf32> to vector<1x1x16xf32>
    %67 = vector.broadcast %63 : vector<16x16x1xf32> to vector<16x16x16xf32>
    %68 = vector.broadcast %66 : vector<1x1x16xf32> to vector<16x16x16xf32>
    %69 = arith.mulf %67, %68 : vector<16x16x16xf32>
    %70 = arith.addf %62, %69 : vector<16x16x16xf32>
    %71 = vector.extract_strided_slice %54 {offsets = [0, 0, 2], sizes = [16, 16, 1], strides = [1, 1, 1]} : vector<16x16x3xf32> to vector<16x16x1xf32>
    %72 = vector.extract_strided_slice %2 {offsets = [0, 2, 2, 0], sizes = [1, 1, 1, 16], strides = [1, 1, 1, 1]} : vector<3x3x3x16xf32> to vector<1x1x1x16xf32>
    %73 = vector.shape_cast %72 : vector<1x1x1x16xf32> to vector<16xf32>
    %74 = vector.shape_cast %73 : vector<16xf32> to vector<1x1x16xf32>
    %75 = vector.broadcast %71 : vector<16x16x1xf32> to vector<16x16x16xf32>
    %76 = vector.broadcast %74 : vector<1x1x16xf32> to vector<16x16x16xf32>
    %77 = arith.mulf %75, %76 : vector<16x16x16xf32>
    %78 = arith.addf %70, %77 : vector<16x16x16xf32>
    %79 = vector.extract_strided_slice %1 {offsets = [1, 0, 0], sizes = [16, 16, 3], strides = [1, 1, 1]} : vector<18x18x3xf32> to vector<16x16x3xf32>
    %80 = vector.extract_strided_slice %79 {offsets = [0, 0, 0], sizes = [16, 16, 1], strides = [1, 1, 1]} : vector<16x16x3xf32> to vector<16x16x1xf32>
    %81 = vector.extract_strided_slice %2 {offsets = [1, 0, 0, 0], sizes = [1, 1, 1, 16], strides = [1, 1, 1, 1]} : vector<3x3x3x16xf32> to vector<1x1x1x16xf32>
    %82 = vector.shape_cast %81 : vector<1x1x1x16xf32> to vector<16xf32>
    %83 = vector.shape_cast %82 : vector<16xf32> to vector<1x1x16xf32>
    %84 = vector.broadcast %80 : vector<16x16x1xf32> to vector<16x16x16xf32>
    %85 = vector.broadcast %83 : vector<1x1x16xf32> to vector<16x16x16xf32>
    %86 = arith.mulf %84, %85 : vector<16x16x16xf32>
    %87 = arith.addf %78, %86 : vector<16x16x16xf32>
    %88 = vector.extract_strided_slice %79 {offsets = [0, 0, 1], sizes = [16, 16, 1], strides = [1, 1, 1]} : vector<16x16x3xf32> to vector<16x16x1xf32>
    %89 = vector.extract_strided_slice %2 {offsets = [1, 0, 1, 0], sizes = [1, 1, 1, 16], strides = [1, 1, 1, 1]} : vector<3x3x3x16xf32> to vector<1x1x1x16xf32>
    %90 = vector.shape_cast %89 : vector<1x1x1x16xf32> to vector<16xf32>
    %91 = vector.shape_cast %90 : vector<16xf32> to vector<1x1x16xf32>
    %92 = vector.broadcast %88 : vector<16x16x1xf32> to vector<16x16x16xf32>
    %93 = vector.broadcast %91 : vector<1x1x16xf32> to vector<16x16x16xf32>
    %94 = arith.mulf %92, %93 : vector<16x16x16xf32>
    %95 = arith.addf %87, %94 : vector<16x16x16xf32>
    %96 = vector.extract_strided_slice %79 {offsets = [0, 0, 2], sizes = [16, 16, 1], strides = [1, 1, 1]} : vector<16x16x3xf32> to vector<16x16x1xf32>
    %97 = vector.extract_strided_slice %2 {offsets = [1, 0, 2, 0], sizes = [1, 1, 1, 16], strides = [1, 1, 1, 1]} : vector<3x3x3x16xf32> to vector<1x1x1x16xf32>
    %98 = vector.shape_cast %97 : vector<1x1x1x16xf32> to vector<16xf32>
    %99 = vector.shape_cast %98 : vector<16xf32> to vector<1x1x16xf32>
    %100 = vector.broadcast %96 : vector<16x16x1xf32> to vector<16x16x16xf32>
    %101 = vector.broadcast %99 : vector<1x1x16xf32> to vector<16x16x16xf32>
    %102 = arith.mulf %100, %101 : vector<16x16x16xf32>
    %103 = arith.addf %95, %102 : vector<16x16x16xf32>
    %104 = vector.extract_strided_slice %1 {offsets = [1, 1, 0], sizes = [16, 16, 3], strides = [1, 1, 1]} : vector<18x18x3xf32> to vector<16x16x3xf32>
    %105 = vector.extract_strided_slice %104 {offsets = [0, 0, 0], sizes = [16, 16, 1], strides = [1, 1, 1]} : vector<16x16x3xf32> to vector<16x16x1xf32>
    %106 = vector.extract_strided_slice %2 {offsets = [1, 1, 0, 0], sizes = [1, 1, 1, 16], strides = [1, 1, 1, 1]} : vector<3x3x3x16xf32> to vector<1x1x1x16xf32>
    %107 = vector.shape_cast %106 : vector<1x1x1x16xf32> to vector<16xf32>
    %108 = vector.shape_cast %107 : vector<16xf32> to vector<1x1x16xf32>
    %109 = vector.broadcast %105 : vector<16x16x1xf32> to vector<16x16x16xf32>
    %110 = vector.broadcast %108 : vector<1x1x16xf32> to vector<16x16x16xf32>
    %111 = arith.mulf %109, %110 : vector<16x16x16xf32>
    %112 = arith.addf %103, %111 : vector<16x16x16xf32>
    %113 = vector.extract_strided_slice %104 {offsets = [0, 0, 1], sizes = [16, 16, 1], strides = [1, 1, 1]} : vector<16x16x3xf32> to vector<16x16x1xf32>
    %114 = vector.extract_strided_slice %2 {offsets = [1, 1, 1, 0], sizes = [1, 1, 1, 16], strides = [1, 1, 1, 1]} : vector<3x3x3x16xf32> to vector<1x1x1x16xf32>
    %115 = vector.shape_cast %114 : vector<1x1x1x16xf32> to vector<16xf32>
    %116 = vector.shape_cast %115 : vector<16xf32> to vector<1x1x16xf32>
    %117 = vector.broadcast %113 : vector<16x16x1xf32> to vector<16x16x16xf32>
    %118 = vector.broadcast %116 : vector<1x1x16xf32> to vector<16x16x16xf32>
    %119 = arith.mulf %117, %118 : vector<16x16x16xf32>
    %120 = arith.addf %112, %119 : vector<16x16x16xf32>
    %121 = vector.extract_strided_slice %104 {offsets = [0, 0, 2], sizes = [16, 16, 1], strides = [1, 1, 1]} : vector<16x16x3xf32> to vector<16x16x1xf32>
    %122 = vector.extract_strided_slice %2 {offsets = [1, 1, 2, 0], sizes = [1, 1, 1, 16], strides = [1, 1, 1, 1]} : vector<3x3x3x16xf32> to vector<1x1x1x16xf32>
    %123 = vector.shape_cast %122 : vector<1x1x1x16xf32> to vector<16xf32>
    %124 = vector.shape_cast %123 : vector<16xf32> to vector<1x1x16xf32>
    %125 = vector.broadcast %121 : vector<16x16x1xf32> to vector<16x16x16xf32>
    %126 = vector.broadcast %124 : vector<1x1x16xf32> to vector<16x16x16xf32>
    %127 = arith.mulf %125, %126 : vector<16x16x16xf32>
    %128 = arith.addf %120, %127 : vector<16x16x16xf32>
    %129 = vector.extract_strided_slice %1 {offsets = [1, 2, 0], sizes = [16, 16, 3], strides = [1, 1, 1]} : vector<18x18x3xf32> to vector<16x16x3xf32>
    %130 = vector.extract_strided_slice %129 {offsets = [0, 0, 0], sizes = [16, 16, 1], strides = [1, 1, 1]} : vector<16x16x3xf32> to vector<16x16x1xf32>
    %131 = vector.extract_strided_slice %2 {offsets = [1, 2, 0, 0], sizes = [1, 1, 1, 16], strides = [1, 1, 1, 1]} : vector<3x3x3x16xf32> to vector<1x1x1x16xf32>
    %132 = vector.shape_cast %131 : vector<1x1x1x16xf32> to vector<16xf32>
    %133 = vector.shape_cast %132 : vector<16xf32> to vector<1x1x16xf32>
    %134 = vector.broadcast %130 : vector<16x16x1xf32> to vector<16x16x16xf32>
    %135 = vector.broadcast %133 : vector<1x1x16xf32> to vector<16x16x16xf32>
    %136 = arith.mulf %134, %135 : vector<16x16x16xf32>
    %137 = arith.addf %128, %136 : vector<16x16x16xf32>
    %138 = vector.extract_strided_slice %129 {offsets = [0, 0, 1], sizes = [16, 16, 1], strides = [1, 1, 1]} : vector<16x16x3xf32> to vector<16x16x1xf32>
    %139 = vector.extract_strided_slice %2 {offsets = [1, 2, 1, 0], sizes = [1, 1, 1, 16], strides = [1, 1, 1, 1]} : vector<3x3x3x16xf32> to vector<1x1x1x16xf32>
    %140 = vector.shape_cast %139 : vector<1x1x1x16xf32> to vector<16xf32>
    %141 = vector.shape_cast %140 : vector<16xf32> to vector<1x1x16xf32>
    %142 = vector.broadcast %138 : vector<16x16x1xf32> to vector<16x16x16xf32>
    %143 = vector.broadcast %141 : vector<1x1x16xf32> to vector<16x16x16xf32>
    %144 = arith.mulf %142, %143 : vector<16x16x16xf32>
    %145 = arith.addf %137, %144 : vector<16x16x16xf32>
    %146 = vector.extract_strided_slice %129 {offsets = [0, 0, 2], sizes = [16, 16, 1], strides = [1, 1, 1]} : vector<16x16x3xf32> to vector<16x16x1xf32>
    %147 = vector.extract_strided_slice %2 {offsets = [1, 2, 2, 0], sizes = [1, 1, 1, 16], strides = [1, 1, 1, 1]} : vector<3x3x3x16xf32> to vector<1x1x1x16xf32>
    %148 = vector.shape_cast %147 : vector<1x1x1x16xf32> to vector<16xf32>
    %149 = vector.shape_cast %148 : vector<16xf32> to vector<1x1x16xf32>
    %150 = vector.broadcast %146 : vector<16x16x1xf32> to vector<16x16x16xf32>
    %151 = vector.broadcast %149 : vector<1x1x16xf32> to vector<16x16x16xf32>
    %152 = arith.mulf %150, %151 : vector<16x16x16xf32>
    %153 = arith.addf %145, %152 : vector<16x16x16xf32>
    %154 = vector.extract_strided_slice %1 {offsets = [2, 0, 0], sizes = [16, 16, 3], strides = [1, 1, 1]} : vector<18x18x3xf32> to vector<16x16x3xf32>
    %155 = vector.extract_strided_slice %154 {offsets = [0, 0, 0], sizes = [16, 16, 1], strides = [1, 1, 1]} : vector<16x16x3xf32> to vector<16x16x1xf32>
    %156 = vector.extract_strided_slice %2 {offsets = [2, 0, 0, 0], sizes = [1, 1, 1, 16], strides = [1, 1, 1, 1]} : vector<3x3x3x16xf32> to vector<1x1x1x16xf32>
    %157 = vector.shape_cast %156 : vector<1x1x1x16xf32> to vector<16xf32>
    %158 = vector.shape_cast %157 : vector<16xf32> to vector<1x1x16xf32>
    %159 = vector.broadcast %155 : vector<16x16x1xf32> to vector<16x16x16xf32>
    %160 = vector.broadcast %158 : vector<1x1x16xf32> to vector<16x16x16xf32>
    %161 = arith.mulf %159, %160 : vector<16x16x16xf32>
    %162 = arith.addf %153, %161 : vector<16x16x16xf32>
    %163 = vector.extract_strided_slice %154 {offsets = [0, 0, 1], sizes = [16, 16, 1], strides = [1, 1, 1]} : vector<16x16x3xf32> to vector<16x16x1xf32>
    %164 = vector.extract_strided_slice %2 {offsets = [2, 0, 1, 0], sizes = [1, 1, 1, 16], strides = [1, 1, 1, 1]} : vector<3x3x3x16xf32> to vector<1x1x1x16xf32>
    %165 = vector.shape_cast %164 : vector<1x1x1x16xf32> to vector<16xf32>
    %166 = vector.shape_cast %165 : vector<16xf32> to vector<1x1x16xf32>
    %167 = vector.broadcast %163 : vector<16x16x1xf32> to vector<16x16x16xf32>
    %168 = vector.broadcast %166 : vector<1x1x16xf32> to vector<16x16x16xf32>
    %169 = arith.mulf %167, %168 : vector<16x16x16xf32>
    %170 = arith.addf %162, %169 : vector<16x16x16xf32>
    %171 = vector.extract_strided_slice %154 {offsets = [0, 0, 2], sizes = [16, 16, 1], strides = [1, 1, 1]} : vector<16x16x3xf32> to vector<16x16x1xf32>
    %172 = vector.extract_strided_slice %2 {offsets = [2, 0, 2, 0], sizes = [1, 1, 1, 16], strides = [1, 1, 1, 1]} : vector<3x3x3x16xf32> to vector<1x1x1x16xf32>
    %173 = vector.shape_cast %172 : vector<1x1x1x16xf32> to vector<16xf32>
    %174 = vector.shape_cast %173 : vector<16xf32> to vector<1x1x16xf32>
    %175 = vector.broadcast %171 : vector<16x16x1xf32> to vector<16x16x16xf32>
    %176 = vector.broadcast %174 : vector<1x1x16xf32> to vector<16x16x16xf32>
    %177 = arith.mulf %175, %176 : vector<16x16x16xf32>
    %178 = arith.addf %170, %177 : vector<16x16x16xf32>
    %179 = vector.extract_strided_slice %1 {offsets = [2, 1, 0], sizes = [16, 16, 3], strides = [1, 1, 1]} : vector<18x18x3xf32> to vector<16x16x3xf32>
    %180 = vector.extract_strided_slice %179 {offsets = [0, 0, 0], sizes = [16, 16, 1], strides = [1, 1, 1]} : vector<16x16x3xf32> to vector<16x16x1xf32>
    %181 = vector.extract_strided_slice %2 {offsets = [2, 1, 0, 0], sizes = [1, 1, 1, 16], strides = [1, 1, 1, 1]} : vector<3x3x3x16xf32> to vector<1x1x1x16xf32>
    %182 = vector.shape_cast %181 : vector<1x1x1x16xf32> to vector<16xf32>
    %183 = vector.shape_cast %182 : vector<16xf32> to vector<1x1x16xf32>
    %184 = vector.broadcast %180 : vector<16x16x1xf32> to vector<16x16x16xf32>
    %185 = vector.broadcast %183 : vector<1x1x16xf32> to vector<16x16x16xf32>
    %186 = arith.mulf %184, %185 : vector<16x16x16xf32>
    %187 = arith.addf %178, %186 : vector<16x16x16xf32>
    %188 = vector.extract_strided_slice %179 {offsets = [0, 0, 1], sizes = [16, 16, 1], strides = [1, 1, 1]} : vector<16x16x3xf32> to vector<16x16x1xf32>
    %189 = vector.extract_strided_slice %2 {offsets = [2, 1, 1, 0], sizes = [1, 1, 1, 16], strides = [1, 1, 1, 1]} : vector<3x3x3x16xf32> to vector<1x1x1x16xf32>
    %190 = vector.shape_cast %189 : vector<1x1x1x16xf32> to vector<16xf32>
    %191 = vector.shape_cast %190 : vector<16xf32> to vector<1x1x16xf32>
    %192 = vector.broadcast %188 : vector<16x16x1xf32> to vector<16x16x16xf32>
    %193 = vector.broadcast %191 : vector<1x1x16xf32> to vector<16x16x16xf32>
    %194 = arith.mulf %192, %193 : vector<16x16x16xf32>
    %195 = arith.addf %187, %194 : vector<16x16x16xf32>
    %196 = vector.extract_strided_slice %179 {offsets = [0, 0, 2], sizes = [16, 16, 1], strides = [1, 1, 1]} : vector<16x16x3xf32> to vector<16x16x1xf32>
    %197 = vector.extract_strided_slice %2 {offsets = [2, 1, 2, 0], sizes = [1, 1, 1, 16], strides = [1, 1, 1, 1]} : vector<3x3x3x16xf32> to vector<1x1x1x16xf32>
    %198 = vector.shape_cast %197 : vector<1x1x1x16xf32> to vector<16xf32>
    %199 = vector.shape_cast %198 : vector<16xf32> to vector<1x1x16xf32>
    %200 = vector.broadcast %196 : vector<16x16x1xf32> to vector<16x16x16xf32>
    %201 = vector.broadcast %199 : vector<1x1x16xf32> to vector<16x16x16xf32>
    %202 = arith.mulf %200, %201 : vector<16x16x16xf32>
    %203 = arith.addf %195, %202 : vector<16x16x16xf32>
    %204 = vector.extract_strided_slice %1 {offsets = [2, 2, 0], sizes = [16, 16, 3], strides = [1, 1, 1]} : vector<18x18x3xf32> to vector<16x16x3xf32>
    %205 = vector.extract_strided_slice %204 {offsets = [0, 0, 0], sizes = [16, 16, 1], strides = [1, 1, 1]} : vector<16x16x3xf32> to vector<16x16x1xf32>
    %206 = vector.extract_strided_slice %2 {offsets = [2, 2, 0, 0], sizes = [1, 1, 1, 16], strides = [1, 1, 1, 1]} : vector<3x3x3x16xf32> to vector<1x1x1x16xf32>
    %207 = vector.shape_cast %206 : vector<1x1x1x16xf32> to vector<16xf32>
    %208 = vector.shape_cast %207 : vector<16xf32> to vector<1x1x16xf32>
    %209 = vector.broadcast %205 : vector<16x16x1xf32> to vector<16x16x16xf32>
    %210 = vector.broadcast %208 : vector<1x1x16xf32> to vector<16x16x16xf32>
    %211 = arith.mulf %209, %210 : vector<16x16x16xf32>
    %212 = arith.addf %203, %211 : vector<16x16x16xf32>
    %213 = vector.extract_strided_slice %204 {offsets = [0, 0, 1], sizes = [16, 16, 1], strides = [1, 1, 1]} : vector<16x16x3xf32> to vector<16x16x1xf32>
    %214 = vector.extract_strided_slice %2 {offsets = [2, 2, 1, 0], sizes = [1, 1, 1, 16], strides = [1, 1, 1, 1]} : vector<3x3x3x16xf32> to vector<1x1x1x16xf32>
    %215 = vector.shape_cast %214 : vector<1x1x1x16xf32> to vector<16xf32>
    %216 = vector.shape_cast %215 : vector<16xf32> to vector<1x1x16xf32>
    %217 = vector.broadcast %213 : vector<16x16x1xf32> to vector<16x16x16xf32>
    %218 = vector.broadcast %216 : vector<1x1x16xf32> to vector<16x16x16xf32>
    %219 = arith.mulf %217, %218 : vector<16x16x16xf32>
    %220 = arith.addf %212, %219 : vector<16x16x16xf32>
    %221 = vector.extract_strided_slice %204 {offsets = [0, 0, 2], sizes = [16, 16, 1], strides = [1, 1, 1]} : vector<16x16x3xf32> to vector<16x16x1xf32>
    %222 = vector.extract_strided_slice %2 {offsets = [2, 2, 2, 0], sizes = [1, 1, 1, 16], strides = [1, 1, 1, 1]} : vector<3x3x3x16xf32> to vector<1x1x1x16xf32>
    %223 = vector.shape_cast %222 : vector<1x1x1x16xf32> to vector<16xf32>
    %224 = vector.shape_cast %223 : vector<16xf32> to vector<1x1x16xf32>
    %225 = vector.broadcast %221 : vector<16x16x1xf32> to vector<16x16x16xf32>
    %226 = vector.broadcast %224 : vector<1x1x16xf32> to vector<16x16x16xf32>
    %227 = arith.mulf %225, %226 : vector<16x16x16xf32>
    %228 = arith.addf %220, %227 : vector<16x16x16xf32>
    %c0_7 = arith.constant 0 : index
    %c0_8 = arith.constant 0 : index
    %229 = vector.load %arg3[%c0_7, %c0_8] : memref<1x16xf32, #tpu.memory_space<vmem>>, vector<1x16xf32>
    %230 = vector.shape_cast %229 : vector<1x16xf32> to vector<16xf32>
    %231 = vector.shape_cast %230 : vector<16xf32> to vector<1x1x16xf32>
    %232 = vector.broadcast %231 : vector<1x1x16xf32> to vector<16x16x16xf32>
    %233 = arith.mulf %228, %232 : vector<16x16x16xf32>
    %c0_9 = arith.constant 0 : index
    %c0_10 = arith.constant 0 : index
    %234 = vector.load %arg4[%c0_9, %c0_10] : memref<1x16xf32, #tpu.memory_space<vmem>>, vector<1x16xf32>
    %235 = vector.shape_cast %234 : vector<1x16xf32> to vector<16xf32>
    %236 = vector.shape_cast %235 : vector<16xf32> to vector<1x1x16xf32>
    %237 = vector.broadcast %236 : vector<1x1x16xf32> to vector<16x16x16xf32>
    %238 = arith.addf %233, %237 : vector<16x16x16xf32>
    %cst_11 = arith.constant 0.000000e+00 : f32
    %239 = vector.broadcast %cst_11 : f32 to vector<16x16x16xf32>
    %240 = arith.maximumf %238, %239 : vector<16x16x16xf32>
    %241 = arith.truncf %240 : vector<16x16x16xf32> to vector<16x16x16xbf16>
    %c0_12 = arith.constant 0 : index
    %c0_13 = arith.constant 0 : index
    %c0_14 = arith.constant 0 : index
    %c0_15 = arith.constant 0 : index
    %242 = vector.load %arg5[%c0_12, %c0_13, %c0_14, %c0_15] : memref<1x16x16x16xbf16, #tpu.memory_space<vmem>>, vector<1x16x16x16xbf16>
    %243 = vector.shape_cast %242 : vector<1x16x16x16xbf16> to vector<16x16x16xbf16>
    %244 = vector.shape_cast %241 : vector<16x16x16xbf16> to vector<1x16x16x16xbf16>
    tpu.vector_store %arg5[%c0_12, %c0_13, %c0_14, %c0_15], %244 {strides = array<i32>} : memref<1x16x16x16xbf16, #tpu.memory_space<vmem>>, vector<1x16x16x16xbf16>,
    return
  }
  func.func @transform_0(%arg0: i32) -> (i32, i32, i32, i32) {
    %c0_i32 = arith.constant 0 : i32
    %c0_i32_0 = arith.constant 0 : i32
    %c0_i32_1 = arith.constant 0 : i32
    %c0_i32_2 = arith.constant 0 : i32
    return %arg0, %c0_i32, %c0_i32_0, %c0_i32_1 : i32, i32, i32, i32
  }
  func.func @transform_1(%arg0: i32) -> (i32, i32, i32, i32) {
    %c0_i32 = arith.constant 0 : i32
    %c0_i32_0 = arith.constant 0 : i32
    %c0_i32_1 = arith.constant 0 : i32
    %c0_i32_2 = arith.constant 0 : i32
    %c0_i32_3 = arith.constant 0 : i32
    return %c0_i32, %c0_i32_0, %c0_i32_1, %c0_i32_2 : i32, i32, i32, i32
  }
  func.func @transform_2(%arg0: i32) -> (i32, i32) {
    %c0_i32 = arith.constant 0 : i32
    %c0_i32_0 = arith.constant 0 : i32
    %c0_i32_1 = arith.constant 0 : i32
    return %c0_i32, %c0_i32_0 : i32, i32
  }
  func.func @transform_3(%arg0: i32) -> (i32, i32) {
    %c0_i32 = arith.constant 0 : i32
    %c0_i32_0 = arith.constant 0 : i32
    %c0_i32_1 = arith.constant 0 : i32
    return %c0_i32, %c0_i32_0 : i32, i32
  }
  func.func @transform_4(%arg0: i32) -> (i32, i32, i32, i32) {
    %c0_i32 = arith.constant 0 : i32
    %c0_i32_0 = arith.constant 0 : i32
    %c0_i32_1 = arith.constant 0 : i32
    %c0_i32_2 = arith.constant 0 : i32
    return %arg0, %c0_i32, %c0_i32_0, %c0_i32_1 : i32, i32, i32, i32
  }
}

</mosaic_0001>

<llo_original>
// kernel: tpu_custom_call.1
$region0: #{tpu_custom_call.1}
  #allocation0 [shape = 'u32[]', space=smem, size = 0x4, offset = 0x4, fixed_abs, tag = 'smem constant byte address 0x4 - core index']
  #allocation1 [shape = 'u32[144,128]{1,0:T(1,128)}', space=vmem, size = 0x12000, scoped, tag = 'internal scratch']
  %s0 = inlined_call_operand.vmem [shape: f32[2,18,18,3], index: 0, kind: input, shape index: {}]
  %s1 = inlined_call_operand.vmem [shape: f32[3,3,3,16], index: 1, kind: input, shape index: {}]
  %s2 = inlined_call_operand.vmem [shape: f32[1,16], index: 2, kind: input, shape index: {}]
  %s3 = inlined_call_operand.vmem [shape: f32[1,16], index: 3, kind: input, shape index: {}]
  %s4 = inlined_call_operand.hbm [shape: bf16[2,16,16,16], index: 4, kind: output, shape index: {}]
  %s5 = sld [smem:[#allocation0]]
  $region49: #{tpu_custom_call.1} parent=0
    _
  %s7 = ssub.s32 1, %s5
  %s8 = scalar_select 0, %s7, %s5
  $region1: #{tpu_custom_call.1} parent=0
    #allocation2 [shape = 'u8[131072]{0}', space=vmem, size = 0x20000, scoped, tag = 'output window, operand 0']
    #allocation3 [shape = 's32[2]{0}', space=sflag, size = 0x8, scoped, tag = 'scoped memory for tpu_custom_call.1']
    %9 = vsyncpa [#allocation3], 0
    %s10 = scalar_lea.sflag [#allocation3], 1
    %11 = vsyncpa %s10, 0
    loop: start=0, step=1, limit=4
    $region2: #{tpu_custom_call.1} parent=1 // loop_pre_header
      _
    $region3: #{tpu_custom_call.1} parent=1 // loop_header
      %s13 = sphi 0, %s17
      %p14 = scmp.ge.s32.totalorder %s13, 4
      %s23 = sphi 0, %s25
      %s26 = sphi 0, %s23
      %s27 = sphi 0, %s26
      %s43 = sphi 0, %s27
      %s47 = sphi 0, %s47
      %s49 = sphi 0, %s47
      %s50 = sphi 0, %s49
      %s64 = sphi 0, %s50
      %s68 = sphi 0, %s68
      %s70 = sphi 0, %s68
      %s71 = sphi 0, %s70
      %s85 = sphi 0, %s71
      %s89 = sphi 0, %s89
      %s91 = sphi 0, %s89
      %s92 = sphi 0, %s91
      %s106 = sphi 0, %s92
      %s112 = sphi 0, %s114
      %s115 = sphi 0, %s112
      %s116 = sphi 0, %s115
      %s132 = sphi 0, %s116
    $region4: #{tpu_custom_call.1} parent=1 // loop_header_branch
      %16 = sbr.rel (%p14) target = $region8
    $region5: #{tpu_custom_call.1} parent=1 // loop_body
      %s18 = ssub.s32 %s13, 1
      %s19 = ssub.s32 %s13, 2
      %s20 = sadd.s32 %s13, 1
      %s21 = ssub.s32 %s13, %s20
      %p22 = scmp.eq.s32.totalorder %s21, 0
      %s24 = sadd.s32 %s23, 1
      %s25 = scalar_select %p22, %s23, %s24
      %p28 = pneg %p22
      %p29 = scmp.eq.s32.totalorder %s13, 1
      %p30 = por %p28, %p29
      %p31 = scmp.ne.s32.totalorder %s23, %s26
      %p32 = scmp.eq.s32.totalorder %s13, 0
      %p33 = por %p31, %p32
      %p34 = scmp.ne.s32.totalorder %s23, %s26
      %p35 = scmp.eq.s32.totalorder %s18, 1
      %p36 = por %p34, %p35
      %p37 = scmp.ne.s32.totalorder %s26, %s27
      %p38 = scmp.eq.s32.totalorder %s18, 0
      %p39 = por %p37, %p38
      %p40 = scmp.ne.s32.totalorder %s26, %s27
      %p41 = scmp.eq.s32.totalorder %s19, 1
      %p42 = por %p40, %p41
      %p44 = scmp.ne.s32.totalorder %s27, %s43
      %p45 = scmp.eq.s32.totalorder %s19, 0
      %p46 = por %p44, %p45
      %s48 = sadd.s32 %s47, 1
      %p51 = scmp.eq.s32.totalorder %s13, 1
      %p52 = scmp.ne.s32.totalorder %s47, %s49
      %p53 = scmp.eq.s32.totalorder %s13, 0
      %p54 = por %p52, %p53
      %p55 = scmp.ne.s32.totalorder %s47, %s49
      %p56 = scmp.eq.s32.totalorder %s18, 1
      %p57 = por %p55, %p56
      %p58 = scmp.ne.s32.totalorder %s49, %s50
      %p59 = scmp.eq.s32.totalorder %s18, 0
      %p60 = por %p58, %p59
      %p61 = scmp.ne.s32.totalorder %s49, %s50
      %p62 = scmp.eq.s32.totalorder %s19, 1
      %p63 = por %p61, %p62
      %p65 = scmp.ne.s32.totalorder %s50, %s64
      %p66 = scmp.eq.s32.totalorder %s19, 0
      %p67 = por %p65, %p66
      %s69 = sadd.s32 %s68, 1
      %p72 = scmp.eq.s32.totalorder %s13, 1
      %p73 = scmp.ne.s32.totalorder %s68, %s70
      %p74 = scmp.eq.s32.totalorder %s13, 0
      %p75 = por %p73, %p74
      %p76 = scmp.ne.s32.totalorder %s68, %s70
      %p77 = scmp.eq.s32.totalorder %s18, 1
      %p78 = por %p76, %p77
      %p79 = scmp.ne.s32.totalorder %s70, %s71
      %p80 = scmp.eq.s32.totalorder %s18, 0
      %p81 = por %p79, %p80
      %p82 = scmp.ne.s32.totalorder %s70, %s71
      %p83 = scmp.eq.s32.totalorder %s19, 1
      %p84 = por %p82, %p83
      %p86 = scmp.ne.s32.totalorder %s71, %s85
      %p87 = scmp.eq.s32.totalorder %s19, 0
      %p88 = por %p86, %p87
      %s90 = sadd.s32 %s89, 1
      %p93 = scmp.eq.s32.totalorder %s13, 1
      %p94 = scmp.ne.s32.totalorder %s89, %s91
      %p95 = scmp.eq.s32.totalorder %s13, 0
      %p96 = por %p94, %p95
      %p97 = scmp.ne.s32.totalorder %s89, %s91
      %p98 = scmp.eq.s32.totalorder %s18, 1
      %p99 = por %p97, %p98
      %p100 = scmp.ne.s32.totalorder %s91, %s92
      %p101 = scmp.eq.s32.totalorder %s18, 0
      %p102 = por %p100, %p101
      %p103 = scmp.ne.s32.totalorder %s91, %s92
      %p104 = scmp.eq.s32.totalorder %s19, 1
      %p105 = por %p103, %p104
      %p107 = scmp.ne.s32.totalorder %s92, %s106
      %p108 = scmp.eq.s32.totalorder %s19, 0
      %p109 = por %p107, %p108
      %s110 = ssub.s32 %s13, %s20
      %p111 = scmp.eq.s32.totalorder %s110, 0
      %s113 = sadd.s32 %s112, 1
      %s114 = scalar_select %p111, %s112, %s113
      %p117 = pneg %p111
      %p118 = scmp.eq.s32.totalorder %s13, 1
      %p119 = por %p117, %p118
      %p120 = scmp.ne.s32.totalorder %s112, %s115
      %p121 = scmp.eq.s32.totalorder %s13, 0
      %p122 = por %p120, %p121
      %p123 = scmp.ne.s32.totalorder %s112, %s115
      %p124 = scmp.eq.s32.totalorder %s18, 1
      %p125 = por %p123, %p124
      %p126 = scmp.ne.s32.totalorder %s115, %s116
      %p127 = scmp.eq.s32.totalorder %s18, 0
      %p128 = por %p126, %p127
      %p129 = scmp.ne.s32.totalorder %s115, %s116
      %p130 = scmp.eq.s32.totalorder %s19, 1
      %p131 = por %p129, %p130
      %p133 = scmp.ne.s32.totalorder %s116, %s132
      %p134 = scmp.eq.s32.totalorder %s19, 0
      %p135 = por %p133, %p134
      %p136 = scmp.le.s32.totalorder 1, %s13
      %p137 = scmp.lt.s32.totalorder %s13, 3
      %p138 = pnand %p136, %p137
      %p139 = pneg %p138
      // Predicated region
      $region9: #{tpu_custom_call.1} parent=5 // pred_check
        _
      $region10: #{tpu_custom_call.1} parent=5 // pred_check_branch
        %141 = sbr.rel (%p138) target = $region12
      $region11: #{tpu_custom_call.1} parent=5 // pred_region
        %s142 = ssub.s32 %s13, 1
        // Predicated region
        $region13: #{tpu_custom_call.1} parent=11 // pred_check
          %p143 = pneg %p60
        $region14: #{tpu_custom_call.1} parent=11 // pred_check_branch
          %145 = sbr.rel (%p143) target = $region16
        $region15: #{tpu_custom_call.1} parent=11 // pred_region
          _
        $region16: #{tpu_custom_call.1} parent=11 // pred_fallthru
          _
        // Predicated region
        $region17: #{tpu_custom_call.1} parent=11 // pred_check
          %p146 = pneg %p81
        $region18: #{tpu_custom_call.1} parent=11 // pred_check_branch
          %148 = sbr.rel (%p146) target = $region20
        $region19: #{tpu_custom_call.1} parent=11 // pred_region
          _
        $region20: #{tpu_custom_call.1} parent=11 // pred_fallthru
          _
        // Predicated region
        $region21: #{tpu_custom_call.1} parent=11 // pred_check
          %p149 = pneg %p102
        $region22: #{tpu_custom_call.1} parent=11 // pred_check_branch
          %151 = sbr.rel (%p149) target = $region24
        $region23: #{tpu_custom_call.1} parent=11 // pred_region
          _
        $region24: #{tpu_custom_call.1} parent=11 // pred_fallthru
          _
      $region12: #{tpu_custom_call.1} parent=5 // pred_fallthru
        _
      %p152 = scmp.lt.s32.totalorder %s13, 2
      // Predicated region
      $region25: #{tpu_custom_call.1} parent=5 // pred_check
        %p153 = pneg %p152
      $region26: #{tpu_custom_call.1} parent=5 // pred_check_branch
        %155 = sbr.rel (%p153) target = $region28
      $region27: #{tpu_custom_call.1} parent=5 // pred_region
        // Predicated region
        $region29: #{tpu_custom_call.1} parent=27 // pred_check
          %p156 = pneg %p33
        $region30: #{tpu_custom_call.1} parent=27 // pred_check_branch
          %158 = sbr.rel (%p156) target = $region32
        $region31: #{tpu_custom_call.1} parent=27 // pred_region
          %p159 = scmp.lt.s32.totalorder %s13, 1
          %s160 = scalar_select %p159, %s13, 1
          %s161 = smul.addr %s160, 54
          %s162 = smul.addr %s161, 8
          %s163 = scalar_lea.vmem %s0, %s162
        $region32: #{tpu_custom_call.1} parent=27 // pred_fallthru
          _
      $region28: #{tpu_custom_call.1} parent=5 // pred_fallthru
        _
      %p164 = scmp.le.s32.totalorder 1, %s13
      %p165 = scmp.lt.s32.totalorder %s13, 3
      %p166 = pnand %p164, %p165
      %p167 = pneg %p166
      // Predicated region
      $region33: #{tpu_custom_call.1} parent=5 // pred_check
        _
      $region34: #{tpu_custom_call.1} parent=5 // pred_check_branch
        %169 = sbr.rel (%p166) target = $region36
      $region35: #{tpu_custom_call.1} parent=5 // pred_region
        %s170 = ssub.s32 %s13, 1
        %p171 = scmp.lt.s32.totalorder %s18, 1
        %s172 = scalar_select %p171, %s18, 1
        %s173 = smul.addr %s172, 54
        %s174 = smul.addr %s173, 8
        %s175 = scalar_lea.vmem %s0, %s174
        %p176 = pneg %p39
        %p177 = pneg %p36
        %p178 = pneg %p60
        %p179 = pneg %p57
        %p180 = pneg %p81
        %p181 = pneg %p78
        %p182 = pneg %p102
        %p183 = pneg %p99
        %p184 = pneg %p128
        %p185 = pneg %p125
        %s186 = sand.u32 %s115, 1
        %s187 = scalar_lea.sflag [#allocation3], %s186
        %s188 = sand.u32 %s115, 1
        %s189 = smul.addr %s188, 128
        %s190 = scalar_lea.vmem [#allocation2], %s189
        %p191 = scmp.lt.s32.totalorder %s18, 1
        %s192 = scalar_select %p191, %s18, 1
        %s193 = smul.addr %s192, 54
        %s194 = smul.addr %s193, 8
        %s195 = scalar_lea.vmem %s0, %s194
        %v196 = vld [vmem:[%s195] sm:$0xff]
        %v197 = vld [vmem:[%s195 + $0x8] sm:$0xff]
        %v198 = vld [vmem:[%s195 + $0x10] sm:$0x3]
        %v199 = vld [vmem:[%s195 + $0x18] sm:$0xff]
        %v200 = vld [vmem:[%s195 + $0x20] sm:$0xff]
        %v201 = vld [vmem:[%s195 + $0x28] sm:$0x3]
        %v202 = vld [vmem:[%s195 + $0x30] sm:$0xff]
        %v203 = vld [vmem:[%s195 + $0x38] sm:$0xff]
        %v204 = vld [vmem:[%s195 + $0x40] sm:$0x3]
        %v205 = vld [vmem:[%s195 + $0x48] sm:$0xff]
        %v206 = vld [vmem:[%s195 + $0x50] sm:$0xff]
        %v207 = vld [vmem:[%s195 + $0x58] sm:$0x3]
        %v208 = vld [vmem:[%s195 + $0x60] sm:$0xff]
        %v209 = vld [vmem:[%s195 + $0x68] sm:$0xff]
        %v210 = vld [vmem:[%s195 + $0x70] sm:$0x3]
        %v211 = vld [vmem:[%s195 + $0x78] sm:$0xff]
        %v212 = vld [vmem:[%s195 + $0x80] sm:$0xff]
        %v213 = vld [vmem:[%s195 + $0x88] sm:$0x3]
        %v214 = vld [vmem:[%s195 + $0x90] sm:$0xff]
        %v215 = vld [vmem:[%s195 + $0x98] sm:$0xff]
        %v216 = vld [vmem:[%s195 + $0xa0] sm:$0x3]
        %v217 = vld [vmem:[%s195 + $0xa8] sm:$0xff]
        %v218 = vld [vmem:[%s195 + $0xb0] sm:$0xff]
        %v219 = vld [vmem:[%s195 + $0xb8] sm:$0x3]
        %v220 = vld [vmem:[%s195 + $0xc0] sm:$0xff]
        %v221 = vld [vmem:[%s195 + $0xc8] sm:$0xff]
        %v222 = vld [vmem:[%s195 + $0xd0] sm:$0x3]
        %v223 = vld [vmem:[%s195 + $0xd8] sm:$0xff]
        %v224 = vld [vmem:[%s195 + $0xe0] sm:$0xff]
        %v225 = vld [vmem:[%s195 + $0xe8] sm:$0x3]
        %v226 = vld [vmem:[%s195 + $0xf0] sm:$0xff]
        %v227 = vld [vmem:[%s195 + $0xf8] sm:$0xff]
        %v228 = vld [vmem:[%s195 + $0x100] sm:$0x3]
        %v229 = vld [vmem:[%s195 + $0x108] sm:$0xff]
        %v230 = vld [vmem:[%s195 + $0x110] sm:$0xff]
        %v231 = vld [vmem:[%s195 + $0x118] sm:$0x3]
        %v232 = vld [vmem:[%s195 + $0x120] sm:$0xff]
        %v233 = vld [vmem:[%s195 + $0x128] sm:$0xff]
        %v234 = vld [vmem:[%s195 + $0x130] sm:$0x3]
        %v235 = vld [vmem:[%s195 + $0x138] sm:$0xff]
        %v236 = vld [vmem:[%s195 + $0x140] sm:$0xff]
        %v237 = vld [vmem:[%s195 + $0x148] sm:$0x3]
        %v238 = vld [vmem:[%s195 + $0x150] sm:$0xff]
        %v239 = vld [vmem:[%s195 + $0x158] sm:$0xff]
        %v240 = vld [vmem:[%s195 + $0x160] sm:$0x3]
        %v241 = vld [vmem:[%s195 + $0x168] sm:$0xff]
        %v242 = vld [vmem:[%s195 + $0x170] sm:$0xff]
        %v243 = vld [vmem:[%s195 + $0x178] sm:$0x3]
        %v244 = vld [vmem:[%s195 + $0x180] sm:$0xff]
        %v245 = vld [vmem:[%s195 + $0x188] sm:$0xff]
        %v246 = vld [vmem:[%s195 + $0x190] sm:$0x3]
        %v247 = vld [vmem:[%s195 + $0x198] sm:$0xff]
        %v248 = vld [vmem:[%s195 + $0x1a0] sm:$0xff]
        %v249 = vld [vmem:[%s195 + $0x1a8] sm:$0x3]
        %v250 = vld [vmem:[%s1] sm:$0x7]
        %v251 = vld [vmem:[%s1 + $0x4] sm:$0x7]
        %v252 = vld [vmem:[%s1 + $0x8] sm:$0x7]
        %v253 = vld [vmem:[%s1 + $0xc] sm:$0x7]
        %v254 = vld [vmem:[%s1 + $0x10] sm:$0x7]
        %v255 = vld [vmem:[%s1 + $0x14] sm:$0x7]
        %v256 = vld [vmem:[%s1 + $0x18] sm:$0x7]
        %v257 = vld [vmem:[%s1 + $0x1c] sm:$0x7]
        %v258 = vld [vmem:[%s1 + $0x20] sm:$0x7]
        %260 = vset.pattern.permute.xlu0 0
        %261 = vperm.xlu0 %260, %v196
        %v262 = vpop.permute.xlu0 %261
        %265 = vset.pattern.permute.xlu0 0
        %266 = vperm.xlu0 %265, %v197
        %v267 = vpop.permute.xlu0 %266
        %270 = vset.pattern.permute.xlu0 0
        %271 = vperm.xlu0 %270, %v199
        %v272 = vpop.permute.xlu0 %271
        %275 = vset.pattern.permute.xlu0 0
        %276 = vperm.xlu0 %275, %v200
        %v277 = vpop.permute.xlu0 %276
        %280 = vset.pattern.permute.xlu0 0
        %281 = vperm.xlu0 %280, %v202
        %v282 = vpop.permute.xlu0 %281
        %285 = vset.pattern.permute.xlu0 0
        %286 = vperm.xlu0 %285, %v203
        %v287 = vpop.permute.xlu0 %286
        %290 = vset.pattern.permute.xlu0 0
        %291 = vperm.xlu0 %290, %v205
        %v292 = vpop.permute.xlu0 %291
        %295 = vset.pattern.permute.xlu0 0
        %296 = vperm.xlu0 %295, %v206
        %v297 = vpop.permute.xlu0 %296
        %300 = vset.pattern.permute.xlu0 0
        %301 = vperm.xlu0 %300, %v208
        %v302 = vpop.permute.xlu0 %301
        %305 = vset.pattern.permute.xlu0 0
        %306 = vperm.xlu0 %305, %v209
        %v307 = vpop.permute.xlu0 %306
        %310 = vset.pattern.permute.xlu0 0
        %311 = vperm.xlu0 %310, %v211
        %v312 = vpop.permute.xlu0 %311
        %315 = vset.pattern.permute.xlu0 0
        %316 = vperm.xlu0 %315, %v212
        %v317 = vpop.permute.xlu0 %316
        %320 = vset.pattern.permute.xlu0 0
        %321 = vperm.xlu0 %320, %v214
        %v322 = vpop.permute.xlu0 %321
        %325 = vset.pattern.permute.xlu0 0
        %326 = vperm.xlu0 %325, %v215
        %v327 = vpop.permute.xlu0 %326
        %330 = vset.pattern.permute.xlu0 0
        %331 = vperm.xlu0 %330, %v217
        %v332 = vpop.permute.xlu0 %331
        %335 = vset.pattern.permute.xlu0 0
        %336 = vperm.xlu0 %335, %v218
        %v337 = vpop.permute.xlu0 %336
        %340 = vset.pattern.permute.xlu0 0
        %341 = vperm.xlu0 %340, %v220
        %v342 = vpop.permute.xlu0 %341
        %345 = vset.pattern.permute.xlu0 0
        %346 = vperm.xlu0 %345, %v221
        %v347 = vpop.permute.xlu0 %346
        %350 = vset.pattern.permute.xlu0 0
        %351 = vperm.xlu0 %350, %v223
        %v352 = vpop.permute.xlu0 %351
        %355 = vset.pattern.permute.xlu0 0
        %356 = vperm.xlu0 %355, %v224
        %v357 = vpop.permute.xlu0 %356
        %360 = vset.pattern.permute.xlu0 0
        %361 = vperm.xlu0 %360, %v226
        %v362 = vpop.permute.xlu0 %361
        %365 = vset.pattern.permute.xlu0 0
        %366 = vperm.xlu0 %365, %v227
        %v367 = vpop.permute.xlu0 %366
        %370 = vset.pattern.permute.xlu0 0
        %371 = vperm.xlu0 %370, %v229
        %v372 = vpop.permute.xlu0 %371
        %375 = vset.pattern.permute.xlu0 0
        %376 = vperm.xlu0 %375, %v230
        %v377 = vpop.permute.xlu0 %376
        %380 = vset.pattern.permute.xlu0 0
        %381 = vperm.xlu0 %380, %v232
        %v382 = vpop.permute.xlu0 %381
        %385 = vset.pattern.permute.xlu0 0
        %386 = vperm.xlu0 %385, %v233
        %v387 = vpop.permute.xlu0 %386
        %390 = vset.pattern.permute.xlu0 0
        %391 = vperm.xlu0 %390, %v235
        %v392 = vpop.permute.xlu0 %391
        %395 = vset.pattern.permute.xlu0 0
        %396 = vperm.xlu0 %395, %v236
        %v397 = vpop.permute.xlu0 %396
        %400 = vset.pattern.permute.xlu0 0
        %401 = vperm.xlu0 %400, %v238
        %v402 = vpop.permute.xlu0 %401
        %405 = vset.pattern.permute.xlu0 0
        %406 = vperm.xlu0 %405, %v239
        %v407 = vpop.permute.xlu0 %406
        %410 = vset.pattern.permute.xlu0 0
        %411 = vperm.xlu0 %410, %v241
        %v412 = vpop.permute.xlu0 %411
        %415 = vset.pattern.permute.xlu0 0
        %416 = vperm.xlu0 %415, %v242
        %v417 = vpop.permute.xlu0 %416
        %v419 = vlaneseq
        %v420 = vshrl.u32 %v419, 7
        %v421 = vsub.s32 0, %v420
        %v422 = vrot.slane %v250, %v421
        %v423 = vmul.f32 %v262, %v422
        %v424 = vmul.f32 %v267, %v422
        %v425 = vmul.f32 %v272, %v422
        %v426 = vmul.f32 %v277, %v422
        %v427 = vmul.f32 %v282, %v422
        %v428 = vmul.f32 %v287, %v422
        %v429 = vmul.f32 %v292, %v422
        %v430 = vmul.f32 %v297, %v422
        %v431 = vmul.f32 %v302, %v422
        %v432 = vmul.f32 %v307, %v422
        %v433 = vmul.f32 %v312, %v422
        %v434 = vmul.f32 %v317, %v422
        %v435 = vmul.f32 %v322, %v422
        %v436 = vmul.f32 %v327, %v422
        %v437 = vmul.f32 %v332, %v422
        %v438 = vmul.f32 %v337, %v422
        %v439 = vmul.f32 %v342, %v422
        %v440 = vmul.f32 %v347, %v422
        %v441 = vmul.f32 %v352, %v422
        %v442 = vmul.f32 %v357, %v422
        %v443 = vmul.f32 %v362, %v422
        %v444 = vmul.f32 %v367, %v422
        %v445 = vmul.f32 %v372, %v422
        %v446 = vmul.f32 %v377, %v422
        %v447 = vmul.f32 %v382, %v422
        %v448 = vmul.f32 %v387, %v422
        %v449 = vmul.f32 %v392, %v422
        %v450 = vmul.f32 %v397, %v422
        %v451 = vmul.f32 %v402, %v422
        %v452 = vmul.f32 %v407, %v422
        %v453 = vmul.f32 %v412, %v422
        %v454 = vmul.f32 %v417, %v422
        %v455 = vadd.f32 %v423, 0.0
        %v456 = vadd.f32 %v424, 0.0
        %v457 = vadd.f32 %v425, 0.0
        %v458 = vadd.f32 %v426, 0.0
        %v459 = vadd.f32 %v427, 0.0
        %v460 = vadd.f32 %v428, 0.0
        %v461 = vadd.f32 %v429, 0.0
        %v462 = vadd.f32 %v430, 0.0
        %v463 = vadd.f32 %v431, 0.0
        %v464 = vadd.f32 %v432, 0.0
        %v465 = vadd.f32 %v433, 0.0
        %v466 = vadd.f32 %v434, 0.0
        %v467 = vadd.f32 %v435, 0.0
        %v468 = vadd.f32 %v436, 0.0
        %v469 = vadd.f32 %v437, 0.0
        %v470 = vadd.f32 %v438, 0.0
        %v471 = vadd.f32 %v439, 0.0
        %v472 = vadd.f32 %v440, 0.0
        %v473 = vadd.f32 %v441, 0.0
        %v474 = vadd.f32 %v442, 0.0
        %v475 = vadd.f32 %v443, 0.0
        %v476 = vadd.f32 %v444, 0.0
        %v477 = vadd.f32 %v445, 0.0
        %v478 = vadd.f32 %v446, 0.0
        %v479 = vadd.f32 %v447, 0.0
        %v480 = vadd.f32 %v448, 0.0
        %v481 = vadd.f32 %v449, 0.0
        %v482 = vadd.f32 %v450, 0.0
        %v483 = vadd.f32 %v451, 0.0
        %v484 = vadd.f32 %v452, 0.0
        %v485 = vadd.f32 %v453, 0.0
        %v486 = vadd.f32 %v454, 0.0
        %487 = vset.pattern.permute.xlu0 1
        %488 = vperm.xlu0 %487, %v196
        %v489 = vpop.permute.xlu0 %488
        %491 = vset.pattern.permute.xlu0 1
        %492 = vperm.xlu0 %491, %v197
        %v493 = vpop.permute.xlu0 %492
        %495 = vset.pattern.permute.xlu0 1
        %496 = vperm.xlu0 %495, %v199
        %v497 = vpop.permute.xlu0 %496
        %499 = vset.pattern.permute.xlu0 1
        %500 = vperm.xlu0 %499, %v200
        %v501 = vpop.permute.xlu0 %500
        %503 = vset.pattern.permute.xlu0 1
        %504 = vperm.xlu0 %503, %v202
        %v505 = vpop.permute.xlu0 %504
        %507 = vset.pattern.permute.xlu0 1
        %508 = vperm.xlu0 %507, %v203
        %v509 = vpop.permute.xlu0 %508
        %511 = vset.pattern.permute.xlu0 1
        %512 = vperm.xlu0 %511, %v205
        %v513 = vpop.permute.xlu0 %512
        %515 = vset.pattern.permute.xlu0 1
        %516 = vperm.xlu0 %515, %v206
        %v517 = vpop.permute.xlu0 %516
        %519 = vset.pattern.permute.xlu0 1
        %520 = vperm.xlu0 %519, %v208
        %v521 = vpop.permute.xlu0 %520
        %523 = vset.pattern.permute.xlu0 1
        %524 = vperm.xlu0 %523, %v209
        %v525 = vpop.permute.xlu0 %524
        %527 = vset.pattern.permute.xlu0 1
        %528 = vperm.xlu0 %527, %v211
        %v529 = vpop.permute.xlu0 %528
        %531 = vset.pattern.permute.xlu0 1
        %532 = vperm.xlu0 %531, %v212
        %v533 = vpop.permute.xlu0 %532
        %535 = vset.pattern.permute.xlu0 1
        %536 = vperm.xlu0 %535, %v214
        %v537 = vpop.permute.xlu0 %536
        %539 = vset.pattern.permute.xlu0 1
        %540 = vperm.xlu0 %539, %v215
        %v541 = vpop.permute.xlu0 %540
        %543 = vset.pattern.permute.xlu0 1
        %544 = vperm.xlu0 %543, %v217
        %v545 = vpop.permute.xlu0 %544
        %547 = vset.pattern.permute.xlu0 1
        %548 = vperm.xlu0 %547, %v218
        %v549 = vpop.permute.xlu0 %548
        %551 = vset.pattern.permute.xlu0 1
        %552 = vperm.xlu0 %551, %v220
        %v553 = vpop.permute.xlu0 %552
        %555 = vset.pattern.permute.xlu0 1
        %556 = vperm.xlu0 %555, %v221
        %v557 = vpop.permute.xlu0 %556
        %559 = vset.pattern.permute.xlu0 1
        %560 = vperm.xlu0 %559, %v223
        %v561 = vpop.permute.xlu0 %560
        %563 = vset.pattern.permute.xlu0 1
        %564 = vperm.xlu0 %563, %v224
        %v565 = vpop.permute.xlu0 %564
        %567 = vset.pattern.permute.xlu0 1
        %568 = vperm.xlu0 %567, %v226
        %v569 = vpop.permute.xlu0 %568
        %571 = vset.pattern.permute.xlu0 1
        %572 = vperm.xlu0 %571, %v227
        %v573 = vpop.permute.xlu0 %572
        %575 = vset.pattern.permute.xlu0 1
        %576 = vperm.xlu0 %575, %v229
        %v577 = vpop.permute.xlu0 %576
        %579 = vset.pattern.permute.xlu0 1
        %580 = vperm.xlu0 %579, %v230
        %v581 = vpop.permute.xlu0 %580
        %583 = vset.pattern.permute.xlu0 1
        %584 = vperm.xlu0 %583, %v232
        %v585 = vpop.permute.xlu0 %584
        %587 = vset.pattern.permute.xlu0 1
        %588 = vperm.xlu0 %587, %v233
        %v589 = vpop.permute.xlu0 %588
        %591 = vset.pattern.permute.xlu0 1
        %592 = vperm.xlu0 %591, %v235
        %v593 = vpop.permute.xlu0 %592
        %595 = vset.pattern.permute.xlu0 1
        %596 = vperm.xlu0 %595, %v236
        %v597 = vpop.permute.xlu0 %596
        %599 = vset.pattern.permute.xlu0 1
        %600 = vperm.xlu0 %599, %v238
        %v601 = vpop.permute.xlu0 %600
        %603 = vset.pattern.permute.xlu0 1
        %604 = vperm.xlu0 %603, %v239
        %v605 = vpop.permute.xlu0 %604
        %607 = vset.pattern.permute.xlu0 1
        %608 = vperm.xlu0 %607, %v241
        %v609 = vpop.permute.xlu0 %608
        %611 = vset.pattern.permute.xlu0 1
        %612 = vperm.xlu0 %611, %v242
        %v613 = vpop.permute.xlu0 %612
        %v615 = vlaneseq
        %v616 = vshrl.u32 %v615, 7
        %v617 = vsub.s32 1, %v616
        %v618 = vrot.slane %v250, %v617
        %v619 = vmul.f32 %v489, %v618
        %v620 = vmul.f32 %v493, %v618
        %v621 = vmul.f32 %v497, %v618
        %v622 = vmul.f32 %v501, %v618
        %v623 = vmul.f32 %v505, %v618
        %v624 = vmul.f32 %v509, %v618
        %v625 = vmul.f32 %v513, %v618
        %v626 = vmul.f32 %v517, %v618
        %v627 = vmul.f32 %v521, %v618
        %v628 = vmul.f32 %v525, %v618
        %v629 = vmul.f32 %v529, %v618
        %v630 = vmul.f32 %v533, %v618
        %v631 = vmul.f32 %v537, %v618
        %v632 = vmul.f32 %v541, %v618
        %v633 = vmul.f32 %v545, %v618
        %v634 = vmul.f32 %v549, %v618
        %v635 = vmul.f32 %v553, %v618
        %v636 = vmul.f32 %v557, %v618
        %v637 = vmul.f32 %v561, %v618
        %v638 = vmul.f32 %v565, %v618
        %v639 = vmul.f32 %v569, %v618
        %v640 = vmul.f32 %v573, %v618
        %v641 = vmul.f32 %v577, %v618
        %v642 = vmul.f32 %v581, %v618
        %v643 = vmul.f32 %v585, %v618
        %v644 = vmul.f32 %v589, %v618
        %v645 = vmul.f32 %v593, %v618
        %v646 = vmul.f32 %v597, %v618
        %v647 = vmul.f32 %v601, %v618
        %v648 = vmul.f32 %v605, %v618
        %v649 = vmul.f32 %v609, %v618
        %v650 = vmul.f32 %v613, %v618
        %v651 = vadd.f32 %v455, %v619
        %v652 = vadd.f32 %v456, %v620
        %v653 = vadd.f32 %v457, %v621
        %v654 = vadd.f32 %v458, %v622
        %v655 = vadd.f32 %v459, %v623
        %v656 = vadd.f32 %v460, %v624
        %v657 = vadd.f32 %v461, %v625
        %v658 = vadd.f32 %v462, %v626
        %v659 = vadd.f32 %v463, %v627
        %v660 = vadd.f32 %v464, %v628
        %v661 = vadd.f32 %v465, %v629
        %v662 = vadd.f32 %v466, %v630
        %v663 = vadd.f32 %v467, %v631
        %v664 = vadd.f32 %v468, %v632
        %v665 = vadd.f32 %v469, %v633
        %v666 = vadd.f32 %v470, %v634
        %v667 = vadd.f32 %v471, %v635
        %v668 = vadd.f32 %v472, %v636
        %v669 = vadd.f32 %v473, %v637
        %v670 = vadd.f32 %v474, %v638
        %v671 = vadd.f32 %v475, %v639
        %v672 = vadd.f32 %v476, %v640
        %v673 = vadd.f32 %v477, %v641
        %v674 = vadd.f32 %v478, %v642
        %v675 = vadd.f32 %v479, %v643
        %v676 = vadd.f32 %v480, %v644
        %v677 = vadd.f32 %v481, %v645
        %v678 = vadd.f32 %v482, %v646
        %v679 = vadd.f32 %v483, %v647
        %v680 = vadd.f32 %v484, %v648
        %v681 = vadd.f32 %v485, %v649
        %v682 = vadd.f32 %v486, %v650
        %683 = vset.pattern.permute.xlu0 2
        %684 = vperm.xlu0 %683, %v196
        %v685 = vpop.permute.xlu0 %684
        %687 = vset.pattern.permute.xlu0 2
        %688 = vperm.xlu0 %687, %v197
        %v689 = vpop.permute.xlu0 %688
        %691 = vset.pattern.permute.xlu0 2
        %692 = vperm.xlu0 %691, %v199
        %v693 = vpop.permute.xlu0 %692
        %695 = vset.pattern.permute.xlu0 2
        %696 = vperm.xlu0 %695, %v200
        %v697 = vpop.permute.xlu0 %696
        %699 = vset.pattern.permute.xlu0 2
        %700 = vperm.xlu0 %699, %v202
        %v701 = vpop.permute.xlu0 %700
        %703 = vset.pattern.permute.xlu0 2
        %704 = vperm.xlu0 %703, %v203
        %v705 = vpop.permute.xlu0 %704
        %707 = vset.pattern.permute.xlu0 2
        %708 = vperm.xlu0 %707, %v205
        %v709 = vpop.permute.xlu0 %708
        %711 = vset.pattern.permute.xlu0 2
        %712 = vperm.xlu0 %711, %v206
        %v713 = vpop.permute.xlu0 %712
        %715 = vset.pattern.permute.xlu0 2
        %716 = vperm.xlu0 %715, %v208
        %v717 = vpop.permute.xlu0 %716
        %719 = vset.pattern.permute.xlu0 2
        %720 = vperm.xlu0 %719, %v209
        %v721 = vpop.permute.xlu0 %720
        %723 = vset.pattern.permute.xlu0 2
        %724 = vperm.xlu0 %723, %v211
        %v725 = vpop.permute.xlu0 %724
        %727 = vset.pattern.permute.xlu0 2
        %728 = vperm.xlu0 %727, %v212
        %v729 = vpop.permute.xlu0 %728
        %731 = vset.pattern.permute.xlu0 2
        %732 = vperm.xlu0 %731, %v214
        %v733 = vpop.permute.xlu0 %732
        %735 = vset.pattern.permute.xlu0 2
        %736 = vperm.xlu0 %735, %v215
        %v737 = vpop.permute.xlu0 %736
        %739 = vset.pattern.permute.xlu0 2
        %740 = vperm.xlu0 %739, %v217
        %v741 = vpop.permute.xlu0 %740
        %743 = vset.pattern.permute.xlu0 2
        %744 = vperm.xlu0 %743, %v218
        %v745 = vpop.permute.xlu0 %744
        %747 = vset.pattern.permute.xlu0 2
        %748 = vperm.xlu0 %747, %v220
        %v749 = vpop.permute.xlu0 %748
        %751 = vset.pattern.permute.xlu0 2
        %752 = vperm.xlu0 %751, %v221
        %v753 = vpop.permute.xlu0 %752
        %755 = vset.pattern.permute.xlu0 2
        %756 = vperm.xlu0 %755, %v223
        %v757 = vpop.permute.xlu0 %756
        %759 = vset.pattern.permute.xlu0 2
        %760 = vperm.xlu0 %759, %v224
        %v761 = vpop.permute.xlu0 %760
        %763 = vset.pattern.permute.xlu0 2
        %764 = vperm.xlu0 %763, %v226
        %v765 = vpop.permute.xlu0 %764
        %767 = vset.pattern.permute.xlu0 2
        %768 = vperm.xlu0 %767, %v227
        %v769 = vpop.permute.xlu0 %768
        %771 = vset.pattern.permute.xlu0 2
        %772 = vperm.xlu0 %771, %v229
        %v773 = vpop.permute.xlu0 %772
        %775 = vset.pattern.permute.xlu0 2
        %776 = vperm.xlu0 %775, %v230
        %v777 = vpop.permute.xlu0 %776
        %779 = vset.pattern.permute.xlu0 2
        %780 = vperm.xlu0 %779, %v232
        %v781 = vpop.permute.xlu0 %780
        %783 = vset.pattern.permute.xlu0 2
        %784 = vperm.xlu0 %783, %v233
        %v785 = vpop.permute.xlu0 %784
        %787 = vset.pattern.permute.xlu0 2
        %788 = vperm.xlu0 %787, %v235
        %v789 = vpop.permute.xlu0 %788
        %791 = vset.pattern.permute.xlu0 2
        %792 = vperm.xlu0 %791, %v236
        %v793 = vpop.permute.xlu0 %792
        %795 = vset.pattern.permute.xlu0 2
        %796 = vperm.xlu0 %795, %v238
        %v797 = vpop.permute.xlu0 %796
        %799 = vset.pattern.permute.xlu0 2
        %800 = vperm.xlu0 %799, %v239
        %v801 = vpop.permute.xlu0 %800
        %803 = vset.pattern.permute.xlu0 2
        %804 = vperm.xlu0 %803, %v241
        %v805 = vpop.permute.xlu0 %804
        %807 = vset.pattern.permute.xlu0 2
        %808 = vperm.xlu0 %807, %v242
        %v809 = vpop.permute.xlu0 %808
        %v811 = vlaneseq
        %v812 = vshrl.u32 %v811, 7
        %v813 = vsub.s32 2, %v812
        %v814 = vrot.slane %v250, %v813
        %v815 = vmul.f32 %v685, %v814
        %v816 = vmul.f32 %v689, %v814
        %v817 = vmul.f32 %v693, %v814
        %v818 = vmul.f32 %v697, %v814
        %v819 = vmul.f32 %v701, %v814
        %v820 = vmul.f32 %v705, %v814
        %v821 = vmul.f32 %v709, %v814
        %v822 = vmul.f32 %v713, %v814
        %v823 = vmul.f32 %v717, %v814
        %v824 = vmul.f32 %v721, %v814
        %v825 = vmul.f32 %v725, %v814
        %v826 = vmul.f32 %v729, %v814
        %v827 = vmul.f32 %v733, %v814
        %v828 = vmul.f32 %v737, %v814
        %v829 = vmul.f32 %v741, %v814
        %v830 = vmul.f32 %v745, %v814
        %v831 = vmul.f32 %v749, %v814
        %v832 = vmul.f32 %v753, %v814
        %v833 = vmul.f32 %v757, %v814
        %v834 = vmul.f32 %v761, %v814
        %v835 = vmul.f32 %v765, %v814
        %v836 = vmul.f32 %v769, %v814
        %v837 = vmul.f32 %v773, %v814
        %v838 = vmul.f32 %v777, %v814
        %v839 = vmul.f32 %v781, %v814
        %v840 = vmul.f32 %v785, %v814
        %v841 = vmul.f32 %v789, %v814
        %v842 = vmul.f32 %v793, %v814
        %v843 = vmul.f32 %v797, %v814
        %v844 = vmul.f32 %v801, %v814
        %v845 = vmul.f32 %v805, %v814
        %v846 = vmul.f32 %v809, %v814
        %v847 = vadd.f32 %v651, %v815
        %v848 = vadd.f32 %v652, %v816
        %v849 = vadd.f32 %v653, %v817
        %v850 = vadd.f32 %v654, %v818
        %v851 = vadd.f32 %v655, %v819
        %v852 = vadd.f32 %v656, %v820
        %v853 = vadd.f32 %v657, %v821
        %v854 = vadd.f32 %v658, %v822
        %v855 = vadd.f32 %v659, %v823
        %v856 = vadd.f32 %v660, %v824
        %v857 = vadd.f32 %v661, %v825
        %v858 = vadd.f32 %v662, %v826
        %v859 = vadd.f32 %v663, %v827
        %v860 = vadd.f32 %v664, %v828
        %v861 = vadd.f32 %v665, %v829
        %v862 = vadd.f32 %v666, %v830
        %v863 = vadd.f32 %v667, %v831
        %v864 = vadd.f32 %v668, %v832
        %v865 = vadd.f32 %v669, %v833
        %v866 = vadd.f32 %v670, %v834
        %v867 = vadd.f32 %v671, %v835
        %v868 = vadd.f32 %v672, %v836
        %v869 = vadd.f32 %v673, %v837
        %v870 = vadd.f32 %v674, %v838
        %v871 = vadd.f32 %v675, %v839
        %v872 = vadd.f32 %v676, %v840
        %v873 = vadd.f32 %v677, %v841
        %v874 = vadd.f32 %v678, %v842
        %v875 = vadd.f32 %v679, %v843
        %v876 = vadd.f32 %v680, %v844
        %v877 = vadd.f32 %v681, %v845
        %v878 = vadd.f32 %v682, %v846
        %880 = vset.pattern.permute.xlu0 0
        %881 = vperm.xlu0 %880, %v198
        %v882 = vpop.permute.xlu0 %881
        %885 = vset.pattern.permute.xlu0 0
        %886 = vperm.xlu0 %885, %v201
        %v887 = vpop.permute.xlu0 %886
        %890 = vset.pattern.permute.xlu0 0
        %891 = vperm.xlu0 %890, %v204
        %v892 = vpop.permute.xlu0 %891
        %895 = vset.pattern.permute.xlu0 0
        %896 = vperm.xlu0 %895, %v207
        %v897 = vpop.permute.xlu0 %896
        %900 = vset.pattern.permute.xlu0 0
        %901 = vperm.xlu0 %900, %v210
        %v902 = vpop.permute.xlu0 %901
        %905 = vset.pattern.permute.xlu0 0
        %906 = vperm.xlu0 %905, %v213
        %v907 = vpop.permute.xlu0 %906
        %910 = vset.pattern.permute.xlu0 0
        %911 = vperm.xlu0 %910, %v216
        %v912 = vpop.permute.xlu0 %911
        %915 = vset.pattern.permute.xlu0 0
        %916 = vperm.xlu0 %915, %v219
        %v917 = vpop.permute.xlu0 %916
        %920 = vset.pattern.permute.xlu0 0
        %921 = vperm.xlu0 %920, %v222
        %v922 = vpop.permute.xlu0 %921
        %925 = vset.pattern.permute.xlu0 0
        %926 = vperm.xlu0 %925, %v225
        %v927 = vpop.permute.xlu0 %926
        %930 = vset.pattern.permute.xlu0 0
        %931 = vperm.xlu0 %930, %v228
        %v932 = vpop.permute.xlu0 %931
        %935 = vset.pattern.permute.xlu0 0
        %936 = vperm.xlu0 %935, %v231
        %v937 = vpop.permute.xlu0 %936
        %940 = vset.pattern.permute.xlu0 0
        %941 = vperm.xlu0 %940, %v234
        %v942 = vpop.permute.xlu0 %941
        %945 = vset.pattern.permute.xlu0 0
        %946 = vperm.xlu0 %945, %v237
        %v947 = vpop.permute.xlu0 %946
        %950 = vset.pattern.permute.xlu0 0
        %951 = vperm.xlu0 %950, %v240
        %v952 = vpop.permute.xlu0 %951
        %955 = vset.pattern.permute.xlu0 0
        %956 = vperm.xlu0 %955, %v243
        %v957 = vpop.permute.xlu0 %956
        %v959 = vlaneseq
        %v960 = vshrl.u32 %v959, 7
        %v961 = vsub.s32 0, %v960
        %v962 = vrot.slane %v251, %v961
        %v963 = vmul.f32 %v262, %v962
        %v964 = vmul.f32 %v267, %v962
        %v965 = vmul.f32 %v882, %v962
        %v966 = vmul.f32 %v272, %v962
        %v967 = vmul.f32 %v277, %v962
        %v968 = vmul.f32 %v887, %v962
        %v969 = vmul.f32 %v282, %v962
        %v970 = vmul.f32 %v287, %v962
        %v971 = vmul.f32 %v892, %v962
        %v972 = vmul.f32 %v292, %v962
        %v973 = vmul.f32 %v297, %v962
        %v974 = vmul.f32 %v897, %v962
        %v975 = vmul.f32 %v302, %v962
        %v976 = vmul.f32 %v307, %v962
        %v977 = vmul.f32 %v902, %v962
        %v978 = vmul.f32 %v312, %v962
        %v979 = vmul.f32 %v317, %v962
        %v980 = vmul.f32 %v907, %v962
        %v981 = vmul.f32 %v322, %v962
        %v982 = vmul.f32 %v327, %v962
        %v983 = vmul.f32 %v912, %v962
        %v984 = vmul.f32 %v332, %v962
        %v985 = vmul.f32 %v337, %v962
        %v986 = vmul.f32 %v917, %v962
        %v987 = vmul.f32 %v342, %v962
        %v988 = vmul.f32 %v347, %v962
        %v989 = vmul.f32 %v922, %v962
        %v990 = vmul.f32 %v352, %v962
        %v991 = vmul.f32 %v357, %v962
        %v992 = vmul.f32 %v927, %v962
        %v993 = vmul.f32 %v362, %v962
        %v994 = vmul.f32 %v367, %v962
        %v995 = vmul.f32 %v932, %v962
        %v996 = vmul.f32 %v372, %v962
        %v997 = vmul.f32 %v377, %v962
        %v998 = vmul.f32 %v937, %v962
        %v999 = vmul.f32 %v382, %v962
        %v1000 = vmul.f32 %v387, %v962
        %v1001 = vmul.f32 %v942, %v962
        %v1002 = vmul.f32 %v392, %v962
        %v1003 = vmul.f32 %v397, %v962
        %v1004 = vmul.f32 %v947, %v962
        %v1005 = vmul.f32 %v402, %v962
        %v1006 = vmul.f32 %v407, %v962
        %v1007 = vmul.f32 %v952, %v962
        %v1008 = vmul.f32 %v412, %v962
        %v1009 = vmul.f32 %v417, %v962
        %v1010 = vmul.f32 %v957, %v962
        %vm1059 = vcmask 1046528
        %v1060 = vrot.slane %v963, 1
        %v1061 = vrot.slane %v964, 1
        %v1062 = vsel %vm1059, %v1060, %v1061
        %v1063 = vrot.slane %v965, 1
        %v1064 = vsel %vm1059, %v1061, %v1063
        %v1065 = vrot.slane %v966, 1
        %v1066 = vrot.slane %v967, 1
        %v1067 = vsel %vm1059, %v1065, %v1066
        %v1068 = vrot.slane %v968, 1
        %v1069 = vsel %vm1059, %v1066, %v1068
        %v1070 = vrot.slane %v969, 1
        %v1071 = vrot.slane %v970, 1
        %v1072 = vsel %vm1059, %v1070, %v1071
        %v1073 = vrot.slane %v971, 1
        %v1074 = vsel %vm1059, %v1071, %v1073
        %v1075 = vrot.slane %v972, 1
        %v1076 = vrot.slane %v973, 1
        %v1077 = vsel %vm1059, %v1075, %v1076
        %v1078 = vrot.slane %v974, 1
        %v1079 = vsel %vm1059, %v1076, %v1078
        %v1080 = vrot.slane %v975, 1
        %v1081 = vrot.slane %v976, 1
        %v1082 = vsel %vm1059, %v1080, %v1081
        %v1083 = vrot.slane %v977, 1
        %v1084 = vsel %vm1059, %v1081, %v1083
        %v1085 = vrot.slane %v978, 1
        %v1086 = vrot.slane %v979, 1
        %v1087 = vsel %vm1059, %v1085, %v1086
        %v1088 = vrot.slane %v980, 1
        %v1089 = vsel %vm1059, %v1086, %v1088
        %v1090 = vrot.slane %v981, 1
        %v1091 = vrot.slane %v982, 1
        %v1092 = vsel %vm1059, %v1090, %v1091
        %v1093 = vrot.slane %v983, 1
        %v1094 = vsel %vm1059, %v1091, %v1093
        %v1095 = vrot.slane %v984, 1
        %v1096 = vrot.slane %v985, 1
        %v1097 = vsel %vm1059, %v1095, %v1096
        %v1098 = vrot.slane %v986, 1
        %v1099 = vsel %vm1059, %v1096, %v1098
        %v1100 = vrot.slane %v987, 1
        %v1101 = vrot.slane %v988, 1
        %v1102 = vsel %vm1059, %v1100, %v1101
        %v1103 = vrot.slane %v989, 1
        %v1104 = vsel %vm1059, %v1101, %v1103
        %v1105 = vrot.slane %v990, 1
        %v1106 = vrot.slane %v991, 1
        %v1107 = vsel %vm1059, %v1105, %v1106
        %v1108 = vrot.slane %v992, 1
        %v1109 = vsel %vm1059, %v1106, %v1108
        %v1110 = vrot.slane %v993, 1
        %v1111 = vrot.slane %v994, 1
        %v1112 = vsel %vm1059, %v1110, %v1111
        %v1113 = vrot.slane %v995, 1
        %v1114 = vsel %vm1059, %v1111, %v1113
        %v1115 = vrot.slane %v996, 1
        %v1116 = vrot.slane %v997, 1
        %v1117 = vsel %vm1059, %v1115, %v1116
        %v1118 = vrot.slane %v998, 1
        %v1119 = vsel %vm1059, %v1116, %v1118
        %v1120 = vrot.slane %v999, 1
        %v1121 = vrot.slane %v1000, 1
        %v1122 = vsel %vm1059, %v1120, %v1121
        %v1123 = vrot.slane %v1001, 1
        %v1124 = vsel %vm1059, %v1121, %v1123
        %v1125 = vrot.slane %v1002, 1
        %v1126 = vrot.slane %v1003, 1
        %v1127 = vsel %vm1059, %v1125, %v1126
        %v1128 = vrot.slane %v1004, 1
        %v1129 = vsel %vm1059, %v1126, %v1128
        %v1130 = vrot.slane %v1005, 1
        %v1131 = vrot.slane %v1006, 1
        %v1132 = vsel %vm1059, %v1130, %v1131
        %v1133 = vrot.slane %v1007, 1
        %v1134 = vsel %vm1059, %v1131, %v1133
        %v1135 = vrot.slane %v1008, 1
        %v1136 = vrot.slane %v1009, 1
        %v1137 = vsel %vm1059, %v1135, %v1136
        %v1138 = vrot.slane %v1010, 1
        %v1139 = vsel %vm1059, %v1136, %v1138
        %v1172 = vadd.f32 %v847, %v1062
        %v1173 = vadd.f32 %v848, %v1064
        %v1174 = vadd.f32 %v849, %v1067
        %v1175 = vadd.f32 %v850, %v1069
        %v1176 = vadd.f32 %v851, %v1072
        %v1177 = vadd.f32 %v852, %v1074
        %v1178 = vadd.f32 %v853, %v1077
        %v1179 = vadd.f32 %v854, %v1079
        %v1180 = vadd.f32 %v855, %v1082
        %v1181 = vadd.f32 %v856, %v1084
        %v1182 = vadd.f32 %v857, %v1087
        %v1183 = vadd.f32 %v858, %v1089
        %v1184 = vadd.f32 %v859, %v1092
        %v1185 = vadd.f32 %v860, %v1094
        %v1186 = vadd.f32 %v861, %v1097
        %v1187 = vadd.f32 %v862, %v1099
        %v1188 = vadd.f32 %v863, %v1102
        %v1189 = vadd.f32 %v864, %v1104
        %v1190 = vadd.f32 %v865, %v1107
        %v1191 = vadd.f32 %v866, %v1109
        %v1192 = vadd.f32 %v867, %v1112
        %v1193 = vadd.f32 %v868, %v1114
        %v1194 = vadd.f32 %v869, %v1117
        %v1195 = vadd.f32 %v870, %v1119
        %v1196 = vadd.f32 %v871, %v1122
        %v1197 = vadd.f32 %v872, %v1124
        %v1198 = vadd.f32 %v873, %v1127
        %v1199 = vadd.f32 %v874, %v1129
        %v1200 = vadd.f32 %v875, %v1132
        %v1201 = vadd.f32 %v876, %v1134
        %v1202 = vadd.f32 %v877, %v1137
        %v1203 = vadd.f32 %v878, %v1139
        %1204 = vset.pattern.permute.xlu0 1
        %1205 = vperm.xlu0 %1204, %v198
        %v1206 = vpop.permute.xlu0 %1205
        %1208 = vset.pattern.permute.xlu0 1
        %1209 = vperm.xlu0 %1208, %v201
        %v1210 = vpop.permute.xlu0 %1209
        %1212 = vset.pattern.permute.xlu0 1
        %1213 = vperm.xlu0 %1212, %v204
        %v1214 = vpop.permute.xlu0 %1213
        %1216 = vset.pattern.permute.xlu0 1
        %1217 = vperm.xlu0 %1216, %v207
        %v1218 = vpop.permute.xlu0 %1217
        %1220 = vset.pattern.permute.xlu0 1
        %1221 = vperm.xlu0 %1220, %v210
        %v1222 = vpop.permute.xlu0 %1221
        %1224 = vset.pattern.permute.xlu0 1
        %1225 = vperm.xlu0 %1224, %v213
        %v1226 = vpop.permute.xlu0 %1225
        %1228 = vset.pattern.permute.xlu0 1
        %1229 = vperm.xlu0 %1228, %v216
        %v1230 = vpop.permute.xlu0 %1229
        %1232 = vset.pattern.permute.xlu0 1
        %1233 = vperm.xlu0 %1232, %v219
        %v1234 = vpop.permute.xlu0 %1233
        %1236 = vset.pattern.permute.xlu0 1
        %1237 = vperm.xlu0 %1236, %v222
        %v1238 = vpop.permute.xlu0 %1237
        %1240 = vset.pattern.permute.xlu0 1
        %1241 = vperm.xlu0 %1240, %v225
        %v1242 = vpop.permute.xlu0 %1241
        %1244 = vset.pattern.permute.xlu0 1
        %1245 = vperm.xlu0 %1244, %v228
        %v1246 = vpop.permute.xlu0 %1245
        %1248 = vset.pattern.permute.xlu0 1
        %1249 = vperm.xlu0 %1248, %v231
        %v1250 = vpop.permute.xlu0 %1249
        %1252 = vset.pattern.permute.xlu0 1
        %1253 = vperm.xlu0 %1252, %v234
        %v1254 = vpop.permute.xlu0 %1253
        %1256 = vset.pattern.permute.xlu0 1
        %1257 = vperm.xlu0 %1256, %v237
        %v1258 = vpop.permute.xlu0 %1257
        %1260 = vset.pattern.permute.xlu0 1
        %1261 = vperm.xlu0 %1260, %v240
        %v1262 = vpop.permute.xlu0 %1261
        %1264 = vset.pattern.permute.xlu0 1
        %1265 = vperm.xlu0 %1264, %v243
        %v1266 = vpop.permute.xlu0 %1265
        %v1268 = vlaneseq
        %v1269 = vshrl.u32 %v1268, 7
        %v1270 = vsub.s32 1, %v1269
        %v1271 = vrot.slane %v251, %v1270
        %v1272 = vmul.f32 %v489, %v1271
        %v1273 = vmul.f32 %v493, %v1271
        %v1274 = vmul.f32 %v1206, %v1271
        %v1275 = vmul.f32 %v497, %v1271
        %v1276 = vmul.f32 %v501, %v1271
        %v1277 = vmul.f32 %v1210, %v1271
        %v1278 = vmul.f32 %v505, %v1271
        %v1279 = vmul.f32 %v509, %v1271
        %v1280 = vmul.f32 %v1214, %v1271
        %v1281 = vmul.f32 %v513, %v1271
        %v1282 = vmul.f32 %v517, %v1271
        %v1283 = vmul.f32 %v1218, %v1271
        %v1284 = vmul.f32 %v521, %v1271
        %v1285 = vmul.f32 %v525, %v1271
        %v1286 = vmul.f32 %v1222, %v1271
        %v1287 = vmul.f32 %v529, %v1271
        %v1288 = vmul.f32 %v533, %v1271
        %v1289 = vmul.f32 %v1226, %v1271
        %v1290 = vmul.f32 %v537, %v1271
        %v1291 = vmul.f32 %v541, %v1271
        %v1292 = vmul.f32 %v1230, %v1271
        %v1293 = vmul.f32 %v545, %v1271
        %v1294 = vmul.f32 %v549, %v1271
        %v1295 = vmul.f32 %v1234, %v1271
        %v1296 = vmul.f32 %v553, %v1271
        %v1297 = vmul.f32 %v557, %v1271
        %v1298 = vmul.f32 %v1238, %v1271
        %v1299 = vmul.f32 %v561, %v1271
        %v1300 = vmul.f32 %v565, %v1271
        %v1301 = vmul.f32 %v1242, %v1271
        %v1302 = vmul.f32 %v569, %v1271
        %v1303 = vmul.f32 %v573, %v1271
        %v1304 = vmul.f32 %v1246, %v1271
        %v1305 = vmul.f32 %v577, %v1271
        %v1306 = vmul.f32 %v581, %v1271
        %v1307 = vmul.f32 %v1250, %v1271
        %v1308 = vmul.f32 %v585, %v1271
        %v1309 = vmul.f32 %v589, %v1271
        %v1310 = vmul.f32 %v1254, %v1271
        %v1311 = vmul.f32 %v593, %v1271
        %v1312 = vmul.f32 %v597, %v1271
        %v1313 = vmul.f32 %v1258, %v1271
        %v1314 = vmul.f32 %v601, %v1271
        %v1315 = vmul.f32 %v605, %v1271
        %v1316 = vmul.f32 %v1262, %v1271
        %v1317 = vmul.f32 %v609, %v1271
        %v1318 = vmul.f32 %v613, %v1271
        %v1319 = vmul.f32 %v1266, %v1271
        %v1368 = vrot.slane %v1272, 1
        %v1369 = vrot.slane %v1273, 1
        %v1370 = vsel %vm1059, %v1368, %v1369
        %v1371 = vrot.slane %v1274, 1
        %v1372 = vsel %vm1059, %v1369, %v1371
        %v1373 = vrot.slane %v1275, 1
        %v1374 = vrot.slane %v1276, 1
        %v1375 = vsel %vm1059, %v1373, %v1374
        %v1376 = vrot.slane %v1277, 1
        %v1377 = vsel %vm1059, %v1374, %v1376
        %v1378 = vrot.slane %v1278, 1
        %v1379 = vrot.slane %v1279, 1
        %v1380 = vsel %vm1059, %v1378, %v1379
        %v1381 = vrot.slane %v1280, 1
        %v1382 = vsel %vm1059, %v1379, %v1381
        %v1383 = vrot.slane %v1281, 1
        %v1384 = vrot.slane %v1282, 1
        %v1385 = vsel %vm1059, %v1383, %v1384
        %v1386 = vrot.slane %v1283, 1
        %v1387 = vsel %vm1059, %v1384, %v1386
        %v1388 = vrot.slane %v1284, 1
        %v1389 = vrot.slane %v1285, 1
        %v1390 = vsel %vm1059, %v1388, %v1389
        %v1391 = vrot.slane %v1286, 1
        %v1392 = vsel %vm1059, %v1389, %v1391
        %v1393 = vrot.slane %v1287, 1
        %v1394 = vrot.slane %v1288, 1
        %v1395 = vsel %vm1059, %v1393, %v1394
        %v1396 = vrot.slane %v1289, 1
        %v1397 = vsel %vm1059, %v1394, %v1396
        %v1398 = vrot.slane %v1290, 1
        %v1399 = vrot.slane %v1291, 1
        %v1400 = vsel %vm1059, %v1398, %v1399
        %v1401 = vrot.slane %v1292, 1
        %v1402 = vsel %vm1059, %v1399, %v1401
        %v1403 = vrot.slane %v1293, 1
        %v1404 = vrot.slane %v1294, 1
        %v1405 = vsel %vm1059, %v1403, %v1404
        %v1406 = vrot.slane %v1295, 1
        %v1407 = vsel %vm1059, %v1404, %v1406
        %v1408 = vrot.slane %v1296, 1
        %v1409 = vrot.slane %v1297, 1
        %v1410 = vsel %vm1059, %v1408, %v1409
        %v1411 = vrot.slane %v1298, 1
        %v1412 = vsel %vm1059, %v1409, %v1411
        %v1413 = vrot.slane %v1299, 1
        %v1414 = vrot.slane %v1300, 1
        %v1415 = vsel %vm1059, %v1413, %v1414
        %v1416 = vrot.slane %v1301, 1
        %v1417 = vsel %vm1059, %v1414, %v1416
        %v1418 = vrot.slane %v1302, 1
        %v1419 = vrot.slane %v1303, 1
        %v1420 = vsel %vm1059, %v1418, %v1419
        %v1421 = vrot.slane %v1304, 1
        %v1422 = vsel %vm1059, %v1419, %v1421
        %v1423 = vrot.slane %v1305, 1
        %v1424 = vrot.slane %v1306, 1
        %v1425 = vsel %vm1059, %v1423, %v1424
        %v1426 = vrot.slane %v1307, 1
        %v1427 = vsel %vm1059, %v1424, %v1426
        %v1428 = vrot.slane %v1308, 1
        %v1429 = vrot.slane %v1309, 1
        %v1430 = vsel %vm1059, %v1428, %v1429
        %v1431 = vrot.slane %v1310, 1
        %v1432 = vsel %vm1059, %v1429, %v1431
        %v1433 = vrot.slane %v1311, 1
        %v1434 = vrot.slane %v1312, 1
        %v1435 = vsel %vm1059, %v1433, %v1434
        %v1436 = vrot.slane %v1313, 1
        %v1437 = vsel %vm1059, %v1434, %v1436
        %v1438 = vrot.slane %v1314, 1
        %v1439 = vrot.slane %v1315, 1
        %v1440 = vsel %vm1059, %v1438, %v1439
        %v1441 = vrot.slane %v1316, 1
        %v1442 = vsel %vm1059, %v1439, %v1441
        %v1443 = vrot.slane %v1317, 1
        %v1444 = vrot.slane %v1318, 1
        %v1445 = vsel %vm1059, %v1443, %v1444
        %v1446 = vrot.slane %v1319, 1
        %v1447 = vsel %vm1059, %v1444, %v1446
        %v1480 = vadd.f32 %v1172, %v1370
        %v1481 = vadd.f32 %v1173, %v1372
        %v1482 = vadd.f32 %v1174, %v1375
        %v1483 = vadd.f32 %v1175, %v1377
        %v1484 = vadd.f32 %v1176, %v1380
        %v1485 = vadd.f32 %v1177, %v1382
        %v1486 = vadd.f32 %v1178, %v1385
        %v1487 = vadd.f32 %v1179, %v1387
        %v1488 = vadd.f32 %v1180, %v1390
        %v1489 = vadd.f32 %v1181, %v1392
        %v1490 = vadd.f32 %v1182, %v1395
        %v1491 = vadd.f32 %v1183, %v1397
        %v1492 = vadd.f32 %v1184, %v1400
        %v1493 = vadd.f32 %v1185, %v1402
        %v1494 = vadd.f32 %v1186, %v1405
        %v1495 = vadd.f32 %v1187, %v1407
        %v1496 = vadd.f32 %v1188, %v1410
        %v1497 = vadd.f32 %v1189, %v1412
        %v1498 = vadd.f32 %v1190, %v1415
        %v1499 = vadd.f32 %v1191, %v1417
        %v1500 = vadd.f32 %v1192, %v1420
        %v1501 = vadd.f32 %v1193, %v1422
        %v1502 = vadd.f32 %v1194, %v1425
        %v1503 = vadd.f32 %v1195, %v1427
        %v1504 = vadd.f32 %v1196, %v1430
        %v1505 = vadd.f32 %v1197, %v1432
        %v1506 = vadd.f32 %v1198, %v1435
        %v1507 = vadd.f32 %v1199, %v1437
        %v1508 = vadd.f32 %v1200, %v1440
        %v1509 = vadd.f32 %v1201, %v1442
        %v1510 = vadd.f32 %v1202, %v1445
        %v1511 = vadd.f32 %v1203, %v1447
        %1512 = vset.pattern.permute.xlu0 2
        %1513 = vperm.xlu0 %1512, %v198
        %v1514 = vpop.permute.xlu0 %1513
        %1516 = vset.pattern.permute.xlu0 2
        %1517 = vperm.xlu0 %1516, %v201
        %v1518 = vpop.permute.xlu0 %1517
        %1520 = vset.pattern.permute.xlu0 2
        %1521 = vperm.xlu0 %1520, %v204
        %v1522 = vpop.permute.xlu0 %1521
        %1524 = vset.pattern.permute.xlu0 2
        %1525 = vperm.xlu0 %1524, %v207
        %v1526 = vpop.permute.xlu0 %1525
        %1528 = vset.pattern.permute.xlu0 2
        %1529 = vperm.xlu0 %1528, %v210
        %v1530 = vpop.permute.xlu0 %1529
        %1532 = vset.pattern.permute.xlu0 2
        %1533 = vperm.xlu0 %1532, %v213
        %v1534 = vpop.permute.xlu0 %1533
        %1536 = vset.pattern.permute.xlu0 2
        %1537 = vperm.xlu0 %1536, %v216
        %v1538 = vpop.permute.xlu0 %1537
        %1540 = vset.pattern.permute.xlu0 2
        %1541 = vperm.xlu0 %1540, %v219
        %v1542 = vpop.permute.xlu0 %1541
        %1544 = vset.pattern.permute.xlu0 2
        %1545 = vperm.xlu0 %1544, %v222
        %v1546 = vpop.permute.xlu0 %1545
        %1548 = vset.pattern.permute.xlu0 2
        %1549 = vperm.xlu0 %1548, %v225
        %v1550 = vpop.permute.xlu0 %1549
        %1552 = vset.pattern.permute.xlu0 2
        %1553 = vperm.xlu0 %1552, %v228
        %v1554 = vpop.permute.xlu0 %1553
        %1556 = vset.pattern.permute.xlu0 2
        %1557 = vperm.xlu0 %1556, %v231
        %v1558 = vpop.permute.xlu0 %1557
        %1560 = vset.pattern.permute.xlu0 2
        %1561 = vperm.xlu0 %1560, %v234
        %v1562 = vpop.permute.xlu0 %1561
        %1564 = vset.pattern.permute.xlu0 2
        %1565 = vperm.xlu0 %1564, %v237
        %v1566 = vpop.permute.xlu0 %1565
        %1568 = vset.pattern.permute.xlu0 2
        %1569 = vperm.xlu0 %1568, %v240
        %v1570 = vpop.permute.xlu0 %1569
        %1572 = vset.pattern.permute.xlu0 2
        %1573 = vperm.xlu0 %1572, %v243
        %v1574 = vpop.permute.xlu0 %1573
        %v1576 = vlaneseq
        %v1577 = vshrl.u32 %v1576, 7
        %v1578 = vsub.s32 2, %v1577
        %v1579 = vrot.slane %v251, %v1578
        %v1580 = vmul.f32 %v685, %v1579
        %v1581 = vmul.f32 %v689, %v1579
        %v1582 = vmul.f32 %v1514, %v1579
        %v1583 = vmul.f32 %v693, %v1579
        %v1584 = vmul.f32 %v697, %v1579
        %v1585 = vmul.f32 %v1518, %v1579
        %v1586 = vmul.f32 %v701, %v1579
        %v1587 = vmul.f32 %v705, %v1579
        %v1588 = vmul.f32 %v1522, %v1579
        %v1589 = vmul.f32 %v709, %v1579
        %v1590 = vmul.f32 %v713, %v1579
        %v1591 = vmul.f32 %v1526, %v1579
        %v1592 = vmul.f32 %v717, %v1579
        %v1593 = vmul.f32 %v721, %v1579
        %v1594 = vmul.f32 %v1530, %v1579
        %v1595 = vmul.f32 %v725, %v1579
        %v1596 = vmul.f32 %v729, %v1579
        %v1597 = vmul.f32 %v1534, %v1579
        %v1598 = vmul.f32 %v733, %v1579
        %v1599 = vmul.f32 %v737, %v1579
        %v1600 = vmul.f32 %v1538, %v1579
        %v1601 = vmul.f32 %v741, %v1579
        %v1602 = vmul.f32 %v745, %v1579
        %v1603 = vmul.f32 %v1542, %v1579
        %v1604 = vmul.f32 %v749, %v1579
        %v1605 = vmul.f32 %v753, %v1579
        %v1606 = vmul.f32 %v1546, %v1579
        %v1607 = vmul.f32 %v757, %v1579
        %v1608 = vmul.f32 %v761, %v1579
        %v1609 = vmul.f32 %v1550, %v1579
        %v1610 = vmul.f32 %v765, %v1579
        %v1611 = vmul.f32 %v769, %v1579
        %v1612 = vmul.f32 %v1554, %v1579
        %v1613 = vmul.f32 %v773, %v1579
        %v1614 = vmul.f32 %v777, %v1579
        %v1615 = vmul.f32 %v1558, %v1579
        %v1616 = vmul.f32 %v781, %v1579
        %v1617 = vmul.f32 %v785, %v1579
        %v1618 = vmul.f32 %v1562, %v1579
        %v1619 = vmul.f32 %v789, %v1579
        %v1620 = vmul.f32 %v793, %v1579
        %v1621 = vmul.f32 %v1566, %v1579
        %v1622 = vmul.f32 %v797, %v1579
        %v1623 = vmul.f32 %v801, %v1579
        %v1624 = vmul.f32 %v1570, %v1579
        %v1625 = vmul.f32 %v805, %v1579
        %v1626 = vmul.f32 %v809, %v1579
        %v1627 = vmul.f32 %v1574, %v1579
        %v1676 = vrot.slane %v1580, 1
        %v1677 = vrot.slane %v1581, 1
        %v1678 = vsel %vm1059, %v1676, %v1677
        %v1679 = vrot.slane %v1582, 1
        %v1680 = vsel %vm1059, %v1677, %v1679
        %v1681 = vrot.slane %v1583, 1
        %v1682 = vrot.slane %v1584, 1
        %v1683 = vsel %vm1059, %v1681, %v1682
        %v1684 = vrot.slane %v1585, 1
        %v1685 = vsel %vm1059, %v1682, %v1684
        %v1686 = vrot.slane %v1586, 1
        %v1687 = vrot.slane %v1587, 1
        %v1688 = vsel %vm1059, %v1686, %v1687
        %v1689 = vrot.slane %v1588, 1
        %v1690 = vsel %vm1059, %v1687, %v1689
        %v1691 = vrot.slane %v1589, 1
        %v1692 = vrot.slane %v1590, 1
        %v1693 = vsel %vm1059, %v1691, %v1692
        %v1694 = vrot.slane %v1591, 1
        %v1695 = vsel %vm1059, %v1692, %v1694
        %v1696 = vrot.slane %v1592, 1
        %v1697 = vrot.slane %v1593, 1
        %v1698 = vsel %vm1059, %v1696, %v1697
        %v1699 = vrot.slane %v1594, 1
        %v1700 = vsel %vm1059, %v1697, %v1699
        %v1701 = vrot.slane %v1595, 1
        %v1702 = vrot.slane %v1596, 1
        %v1703 = vsel %vm1059, %v1701, %v1702
        %v1704 = vrot.slane %v1597, 1
        %v1705 = vsel %vm1059, %v1702, %v1704
        %v1706 = vrot.slane %v1598, 1
        %v1707 = vrot.slane %v1599, 1
        %v1708 = vsel %vm1059, %v1706, %v1707
        %v1709 = vrot.slane %v1600, 1
        %v1710 = vsel %vm1059, %v1707, %v1709
        %v1711 = vrot.slane %v1601, 1
        %v1712 = vrot.slane %v1602, 1
        %v1713 = vsel %vm1059, %v1711, %v1712
        %v1714 = vrot.slane %v1603, 1
        %v1715 = vsel %vm1059, %v1712, %v1714
        %v1716 = vrot.slane %v1604, 1
        %v1717 = vrot.slane %v1605, 1
        %v1718 = vsel %vm1059, %v1716, %v1717
        %v1719 = vrot.slane %v1606, 1
        %v1720 = vsel %vm1059, %v1717, %v1719
        %v1721 = vrot.slane %v1607, 1
        %v1722 = vrot.slane %v1608, 1
        %v1723 = vsel %vm1059, %v1721, %v1722
        %v1724 = vrot.slane %v1609, 1
        %v1725 = vsel %vm1059, %v1722, %v1724
        %v1726 = vrot.slane %v1610, 1
        %v1727 = vrot.slane %v1611, 1
        %v1728 = vsel %vm1059, %v1726, %v1727
        %v1729 = vrot.slane %v1612, 1
        %v1730 = vsel %vm1059, %v1727, %v1729
        %v1731 = vrot.slane %v1613, 1
        %v1732 = vrot.slane %v1614, 1
        %v1733 = vsel %vm1059, %v1731, %v1732
        %v1734 = vrot.slane %v1615, 1
        %v1735 = vsel %vm1059, %v1732, %v1734
        %v1736 = vrot.slane %v1616, 1
        %v1737 = vrot.slane %v1617, 1
        %v1738 = vsel %vm1059, %v1736, %v1737
        %v1739 = vrot.slane %v1618, 1
        %v1740 = vsel %vm1059, %v1737, %v1739
        %v1741 = vrot.slane %v1619, 1
        %v1742 = vrot.slane %v1620, 1
        %v1743 = vsel %vm1059, %v1741, %v1742
        %v1744 = vrot.slane %v1621, 1
        %v1745 = vsel %vm1059, %v1742, %v1744
        %v1746 = vrot.slane %v1622, 1
        %v1747 = vrot.slane %v1623, 1
        %v1748 = vsel %vm1059, %v1746, %v1747
        %v1749 = vrot.slane %v1624, 1
        %v1750 = vsel %vm1059, %v1747, %v1749
        %v1751 = vrot.slane %v1625, 1
        %v1752 = vrot.slane %v1626, 1
        %v1753 = vsel %vm1059, %v1751, %v1752
        %v1754 = vrot.slane %v1627, 1
        %v1755 = vsel %vm1059, %v1752, %v1754
        %v1788 = vadd.f32 %v1480, %v1678
        %v1789 = vadd.f32 %v1481, %v1680
        %v1790 = vadd.f32 %v1482, %v1683
        %v1791 = vadd.f32 %v1483, %v1685
        %v1792 = vadd.f32 %v1484, %v1688
        %v1793 = vadd.f32 %v1485, %v1690
        %v1794 = vadd.f32 %v1486, %v1693
        %v1795 = vadd.f32 %v1487, %v1695
        %v1796 = vadd.f32 %v1488, %v1698
        %v1797 = vadd.f32 %v1489, %v1700
        %v1798 = vadd.f32 %v1490, %v1703
        %v1799 = vadd.f32 %v1491, %v1705
        %v1800 = vadd.f32 %v1492, %v1708
        %v1801 = vadd.f32 %v1493, %v1710
        %v1802 = vadd.f32 %v1494, %v1713
        %v1803 = vadd.f32 %v1495, %v1715
        %v1804 = vadd.f32 %v1496, %v1718
        %v1805 = vadd.f32 %v1497, %v1720
        %v1806 = vadd.f32 %v1498, %v1723
        %v1807 = vadd.f32 %v1499, %v1725
        %v1808 = vadd.f32 %v1500, %v1728
        %v1809 = vadd.f32 %v1501, %v1730
        %v1810 = vadd.f32 %v1502, %v1733
        %v1811 = vadd.f32 %v1503, %v1735
        %v1812 = vadd.f32 %v1504, %v1738
        %v1813 = vadd.f32 %v1505, %v1740
        %v1814 = vadd.f32 %v1506, %v1743
        %v1815 = vadd.f32 %v1507, %v1745
        %v1816 = vadd.f32 %v1508, %v1748
        %v1817 = vadd.f32 %v1509, %v1750
        %v1818 = vadd.f32 %v1510, %v1753
        %v1819 = vadd.f32 %v1511, %v1755
        %v1820 = vlaneseq
        %v1821 = vshrl.u32 %v1820, 7
        %v1822 = vsub.s32 0, %v1821
        %v1823 = vrot.slane %v252, %v1822
        %v1824 = vmul.f32 %v262, %v1823
        %v1825 = vmul.f32 %v267, %v1823
        %v1826 = vmul.f32 %v882, %v1823
        %v1827 = vmul.f32 %v272, %v1823
        %v1828 = vmul.f32 %v277, %v1823
        %v1829 = vmul.f32 %v887, %v1823
        %v1830 = vmul.f32 %v282, %v1823
        %v1831 = vmul.f32 %v287, %v1823
        %v1832 = vmul.f32 %v892, %v1823
        %v1833 = vmul.f32 %v292, %v1823
        %v1834 = vmul.f32 %v297, %v1823
        %v1835 = vmul.f32 %v897, %v1823
        %v1836 = vmul.f32 %v302, %v1823
        %v1837 = vmul.f32 %v307, %v1823
        %v1838 = vmul.f32 %v902, %v1823
        %v1839 = vmul.f32 %v312, %v1823
        %v1840 = vmul.f32 %v317, %v1823
        %v1841 = vmul.f32 %v907, %v1823
        %v1842 = vmul.f32 %v322, %v1823
        %v1843 = vmul.f32 %v327, %v1823
        %v1844 = vmul.f32 %v912, %v1823
        %v1845 = vmul.f32 %v332, %v1823
        %v1846 = vmul.f32 %v337, %v1823
        %v1847 = vmul.f32 %v917, %v1823
        %v1848 = vmul.f32 %v342, %v1823
        %v1849 = vmul.f32 %v347, %v1823
        %v1850 = vmul.f32 %v922, %v1823
        %v1851 = vmul.f32 %v352, %v1823
        %v1852 = vmul.f32 %v357, %v1823
        %v1853 = vmul.f32 %v927, %v1823
        %v1854 = vmul.f32 %v362, %v1823
        %v1855 = vmul.f32 %v367, %v1823
        %v1856 = vmul.f32 %v932, %v1823
        %v1857 = vmul.f32 %v372, %v1823
        %v1858 = vmul.f32 %v377, %v1823
        %v1859 = vmul.f32 %v937, %v1823
        %v1860 = vmul.f32 %v382, %v1823
        %v1861 = vmul.f32 %v387, %v1823
        %v1862 = vmul.f32 %v942, %v1823
        %v1863 = vmul.f32 %v392, %v1823
        %v1864 = vmul.f32 %v397, %v1823
        %v1865 = vmul.f32 %v947, %v1823
        %v1866 = vmul.f32 %v402, %v1823
        %v1867 = vmul.f32 %v407, %v1823
        %v1868 = vmul.f32 %v952, %v1823
        %v1869 = vmul.f32 %v412, %v1823
        %v1870 = vmul.f32 %v417, %v1823
        %v1871 = vmul.f32 %v957, %v1823
        %vm1920 = vcmask 1045504
        %v1921 = vrot.slane %v1824, 2
        %v1922 = vrot.slane %v1825, 2
        %v1923 = vsel %vm1920, %v1921, %v1922
        %v1924 = vrot.slane %v1826, 2
        %v1925 = vsel %vm1920, %v1922, %v1924
        %v1926 = vrot.slane %v1827, 2
        %v1927 = vrot.slane %v1828, 2
        %v1928 = vsel %vm1920, %v1926, %v1927
        %v1929 = vrot.slane %v1829, 2
        %v1930 = vsel %vm1920, %v1927, %v1929
        %v1931 = vrot.slane %v1830, 2
        %v1932 = vrot.slane %v1831, 2
        %v1933 = vsel %vm1920, %v1931, %v1932
        %v1934 = vrot.slane %v1832, 2
        %v1935 = vsel %vm1920, %v1932, %v1934
        %v1936 = vrot.slane %v1833, 2
        %v1937 = vrot.slane %v1834, 2
        %v1938 = vsel %vm1920, %v1936, %v1937
        %v1939 = vrot.slane %v1835, 2
        %v1940 = vsel %vm1920, %v1937, %v1939
        %v1941 = vrot.slane %v1836, 2
        %v1942 = vrot.slane %v1837, 2
        %v1943 = vsel %vm1920, %v1941, %v1942
        %v1944 = vrot.slane %v1838, 2
        %v1945 = vsel %vm1920, %v1942, %v1944
        %v1946 = vrot.slane %v1839, 2
        %v1947 = vrot.slane %v1840, 2
        %v1948 = vsel %vm1920, %v1946, %v1947
        %v1949 = vrot.slane %v1841, 2
        %v1950 = vsel %vm1920, %v1947, %v1949
        %v1951 = vrot.slane %v1842, 2
        %v1952 = vrot.slane %v1843, 2
        %v1953 = vsel %vm1920, %v1951, %v1952
        %v1954 = vrot.slane %v1844, 2
        %v1955 = vsel %vm1920, %v1952, %v1954
        %v1956 = vrot.slane %v1845, 2
        %v1957 = vrot.slane %v1846, 2
        %v1958 = vsel %vm1920, %v1956, %v1957
        %v1959 = vrot.slane %v1847, 2
        %v1960 = vsel %vm1920, %v1957, %v1959
        %v1961 = vrot.slane %v1848, 2
        %v1962 = vrot.slane %v1849, 2
        %v1963 = vsel %vm1920, %v1961, %v1962
        %v1964 = vrot.slane %v1850, 2
        %v1965 = vsel %vm1920, %v1962, %v1964
        %v1966 = vrot.slane %v1851, 2
        %v1967 = vrot.slane %v1852, 2
        %v1968 = vsel %vm1920, %v1966, %v1967
        %v1969 = vrot.slane %v1853, 2
        %v1970 = vsel %vm1920, %v1967, %v1969
        %v1971 = vrot.slane %v1854, 2
        %v1972 = vrot.slane %v1855, 2
        %v1973 = vsel %vm1920, %v1971, %v1972
        %v1974 = vrot.slane %v1856, 2
        %v1975 = vsel %vm1920, %v1972, %v1974
        %v1976 = vrot.slane %v1857, 2
        %v1977 = vrot.slane %v1858, 2
        %v1978 = vsel %vm1920, %v1976, %v1977
        %v1979 = vrot.slane %v1859, 2
        %v1980 = vsel %vm1920, %v1977, %v1979
        %v1981 = vrot.slane %v1860, 2
        %v1982 = vrot.slane %v1861, 2
        %v1983 = vsel %vm1920, %v1981, %v1982
        %v1984 = vrot.slane %v1862, 2
        %v1985 = vsel %vm1920, %v1982, %v1984
        %v1986 = vrot.slane %v1863, 2
        %v1987 = vrot.slane %v1864, 2
        %v1988 = vsel %vm1920, %v1986, %v1987
        %v1989 = vrot.slane %v1865, 2
        %v1990 = vsel %vm1920, %v1987, %v1989
        %v1991 = vrot.slane %v1866, 2
        %v1992 = vrot.slane %v1867, 2
        %v1993 = vsel %vm1920, %v1991, %v1992
        %v1994 = vrot.slane %v1868, 2
        %v1995 = vsel %vm1920, %v1992, %v1994
        %v1996 = vrot.slane %v1869, 2
        %v1997 = vrot.slane %v1870, 2
        %v1998 = vsel %vm1920, %v1996, %v1997
        %v1999 = vrot.slane %v1871, 2
        %v2000 = vsel %vm1920, %v1997, %v1999
        %v2033 = vadd.f32 %v1788, %v1923
        %v2034 = vadd.f32 %v1789, %v1925
        %v2035 = vadd.f32 %v1790, %v1928
        %v2036 = vadd.f32 %v1791, %v1930
        %v2037 = vadd.f32 %v1792, %v1933
        %v2038 = vadd.f32 %v1793, %v1935
        %v2039 = vadd.f32 %v1794, %v1938
        %v2040 = vadd.f32 %v1795, %v1940
        %v2041 = vadd.f32 %v1796, %v1943
        %v2042 = vadd.f32 %v1797, %v1945
        %v2043 = vadd.f32 %v1798, %v1948
        %v2044 = vadd.f32 %v1799, %v1950
        %v2045 = vadd.f32 %v1800, %v1953
        %v2046 = vadd.f32 %v1801, %v1955
        %v2047 = vadd.f32 %v1802, %v1958
        %v2048 = vadd.f32 %v1803, %v1960
        %v2049 = vadd.f32 %v1804, %v1963
        %v2050 = vadd.f32 %v1805, %v1965
        %v2051 = vadd.f32 %v1806, %v1968
        %v2052 = vadd.f32 %v1807, %v1970
        %v2053 = vadd.f32 %v1808, %v1973
        %v2054 = vadd.f32 %v1809, %v1975
        %v2055 = vadd.f32 %v1810, %v1978
        %v2056 = vadd.f32 %v1811, %v1980
        %v2057 = vadd.f32 %v1812, %v1983
        %v2058 = vadd.f32 %v1813, %v1985
        %v2059 = vadd.f32 %v1814, %v1988
        %v2060 = vadd.f32 %v1815, %v1990
        %v2061 = vadd.f32 %v1816, %v1993
        %v2062 = vadd.f32 %v1817, %v1995
        %v2063 = vadd.f32 %v1818, %v1998
        %v2064 = vadd.f32 %v1819, %v2000
        %v2065 = vlaneseq
        %v2066 = vshrl.u32 %v2065, 7
        %v2067 = vsub.s32 1, %v2066
        %v2068 = vrot.slane %v252, %v2067
        %v2069 = vmul.f32 %v489, %v2068
        %v2070 = vmul.f32 %v493, %v2068
        %v2071 = vmul.f32 %v1206, %v2068
        %v2072 = vmul.f32 %v497, %v2068
        %v2073 = vmul.f32 %v501, %v2068
        %v2074 = vmul.f32 %v1210, %v2068
        %v2075 = vmul.f32 %v505, %v2068
        %v2076 = vmul.f32 %v509, %v2068
        %v2077 = vmul.f32 %v1214, %v2068
        %v2078 = vmul.f32 %v513, %v2068
        %v2079 = vmul.f32 %v517, %v2068
        %v2080 = vmul.f32 %v1218, %v2068
        %v2081 = vmul.f32 %v521, %v2068
        %v2082 = vmul.f32 %v525, %v2068
        %v2083 = vmul.f32 %v1222, %v2068
        %v2084 = vmul.f32 %v529, %v2068
        %v2085 = vmul.f32 %v533, %v2068
        %v2086 = vmul.f32 %v1226, %v2068
        %v2087 = vmul.f32 %v537, %v2068
        %v2088 = vmul.f32 %v541, %v2068
        %v2089 = vmul.f32 %v1230, %v2068
        %v2090 = vmul.f32 %v545, %v2068
        %v2091 = vmul.f32 %v549, %v2068
        %v2092 = vmul.f32 %v1234, %v2068
        %v2093 = vmul.f32 %v553, %v2068
        %v2094 = vmul.f32 %v557, %v2068
        %v2095 = vmul.f32 %v1238, %v2068
        %v2096 = vmul.f32 %v561, %v2068
        %v2097 = vmul.f32 %v565, %v2068
        %v2098 = vmul.f32 %v1242, %v2068
        %v2099 = vmul.f32 %v569, %v2068
        %v2100 = vmul.f32 %v573, %v2068
        %v2101 = vmul.f32 %v1246, %v2068
        %v2102 = vmul.f32 %v577, %v2068
        %v2103 = vmul.f32 %v581, %v2068
        %v2104 = vmul.f32 %v1250, %v2068
        %v2105 = vmul.f32 %v585, %v2068
        %v2106 = vmul.f32 %v589, %v2068
        %v2107 = vmul.f32 %v1254, %v2068
        %v2108 = vmul.f32 %v593, %v2068
        %v2109 = vmul.f32 %v597, %v2068
        %v2110 = vmul.f32 %v1258, %v2068
        %v2111 = vmul.f32 %v601, %v2068
        %v2112 = vmul.f32 %v605, %v2068
        %v2113 = vmul.f32 %v1262, %v2068
        %v2114 = vmul.f32 %v609, %v2068
        %v2115 = vmul.f32 %v613, %v2068
        %v2116 = vmul.f32 %v1266, %v2068
        %v2165 = vrot.slane %v2069, 2
        %v2166 = vrot.slane %v2070, 2
        %v2167 = vsel %vm1920, %v2165, %v2166
        %v2168 = vrot.slane %v2071, 2
        %v2169 = vsel %vm1920, %v2166, %v2168
        %v2170 = vrot.slane %v2072, 2
        %v2171 = vrot.slane %v2073, 2
        %v2172 = vsel %vm1920, %v2170, %v2171
        %v2173 = vrot.slane %v2074, 2
        %v2174 = vsel %vm1920, %v2171, %v2173
        %v2175 = vrot.slane %v2075, 2
        %v2176 = vrot.slane %v2076, 2
        %v2177 = vsel %vm1920, %v2175, %v2176
        %v2178 = vrot.slane %v2077, 2
        %v2179 = vsel %vm1920, %v2176, %v2178
        %v2180 = vrot.slane %v2078, 2
        %v2181 = vrot.slane %v2079, 2
        %v2182 = vsel %vm1920, %v2180, %v2181
        %v2183 = vrot.slane %v2080, 2
        %v2184 = vsel %vm1920, %v2181, %v2183
        %v2185 = vrot.slane %v2081, 2
        %v2186 = vrot.slane %v2082, 2
        %v2187 = vsel %vm1920, %v2185, %v2186
        %v2188 = vrot.slane %v2083, 2
        %v2189 = vsel %vm1920, %v2186, %v2188
        %v2190 = vrot.slane %v2084, 2
        %v2191 = vrot.slane %v2085, 2
        %v2192 = vsel %vm1920, %v2190, %v2191
        %v2193 = vrot.slane %v2086, 2
        %v2194 = vsel %vm1920, %v2191, %v2193
        %v2195 = vrot.slane %v2087, 2
        %v2196 = vrot.slane %v2088, 2
        %v2197 = vsel %vm1920, %v2195, %v2196
        %v2198 = vrot.slane %v2089, 2
        %v2199 = vsel %vm1920, %v2196, %v2198
        %v2200 = vrot.slane %v2090, 2
        %v2201 = vrot.slane %v2091, 2
        %v2202 = vsel %vm1920, %v2200, %v2201
        %v2203 = vrot.slane %v2092, 2
        %v2204 = vsel %vm1920, %v2201, %v2203
        %v2205 = vrot.slane %v2093, 2
        %v2206 = vrot.slane %v2094, 2
        %v2207 = vsel %vm1920, %v2205, %v2206
        %v2208 = vrot.slane %v2095, 2
        %v2209 = vsel %vm1920, %v2206, %v2208
        %v2210 = vrot.slane %v2096, 2
        %v2211 = vrot.slane %v2097, 2
        %v2212 = vsel %vm1920, %v2210, %v2211
        %v2213 = vrot.slane %v2098, 2
        %v2214 = vsel %vm1920, %v2211, %v2213
        %v2215 = vrot.slane %v2099, 2
        %v2216 = vrot.slane %v2100, 2
        %v2217 = vsel %vm1920, %v2215, %v2216
        %v2218 = vrot.slane %v2101, 2
        %v2219 = vsel %vm1920, %v2216, %v2218
        %v2220 = vrot.slane %v2102, 2
        %v2221 = vrot.slane %v2103, 2
        %v2222 = vsel %vm1920, %v2220, %v2221
        %v2223 = vrot.slane %v2104, 2
        %v2224 = vsel %vm1920, %v2221, %v2223
        %v2225 = vrot.slane %v2105, 2
        %v2226 = vrot.slane %v2106, 2
        %v2227 = vsel %vm1920, %v2225, %v2226
        %v2228 = vrot.slane %v2107, 2
        %v2229 = vsel %vm1920, %v2226, %v2228
        %v2230 = vrot.slane %v2108, 2
        %v2231 = vrot.slane %v2109, 2
        %v2232 = vsel %vm1920, %v2230, %v2231
        %v2233 = vrot.slane %v2110, 2
        %v2234 = vsel %vm1920, %v2231, %v2233
        %v2235 = vrot.slane %v2111, 2
        %v2236 = vrot.slane %v2112, 2
        %v2237 = vsel %vm1920, %v2235, %v2236
        %v2238 = vrot.slane %v2113, 2
        %v2239 = vsel %vm1920, %v2236, %v2238
        %v2240 = vrot.slane %v2114, 2
        %v2241 = vrot.slane %v2115, 2
        %v2242 = vsel %vm1920, %v2240, %v2241
        %v2243 = vrot.slane %v2116, 2
        %v2244 = vsel %vm1920, %v2241, %v2243
        %v2277 = vadd.f32 %v2033, %v2167
        %v2278 = vadd.f32 %v2034, %v2169
        %v2279 = vadd.f32 %v2035, %v2172
        %v2280 = vadd.f32 %v2036, %v2174
        %v2281 = vadd.f32 %v2037, %v2177
        %v2282 = vadd.f32 %v2038, %v2179
        %v2283 = vadd.f32 %v2039, %v2182
        %v2284 = vadd.f32 %v2040, %v2184
        %v2285 = vadd.f32 %v2041, %v2187
        %v2286 = vadd.f32 %v2042, %v2189
        %v2287 = vadd.f32 %v2043, %v2192
        %v2288 = vadd.f32 %v2044, %v2194
        %v2289 = vadd.f32 %v2045, %v2197
        %v2290 = vadd.f32 %v2046, %v2199
        %v2291 = vadd.f32 %v2047, %v2202
        %v2292 = vadd.f32 %v2048, %v2204
        %v2293 = vadd.f32 %v2049, %v2207
        %v2294 = vadd.f32 %v2050, %v2209
        %v2295 = vadd.f32 %v2051, %v2212
        %v2296 = vadd.f32 %v2052, %v2214
        %v2297 = vadd.f32 %v2053, %v2217
        %v2298 = vadd.f32 %v2054, %v2219
        %v2299 = vadd.f32 %v2055, %v2222
        %v2300 = vadd.f32 %v2056, %v2224
        %v2301 = vadd.f32 %v2057, %v2227
        %v2302 = vadd.f32 %v2058, %v2229
        %v2303 = vadd.f32 %v2059, %v2232
        %v2304 = vadd.f32 %v2060, %v2234
        %v2305 = vadd.f32 %v2061, %v2237
        %v2306 = vadd.f32 %v2062, %v2239
        %v2307 = vadd.f32 %v2063, %v2242
        %v2308 = vadd.f32 %v2064, %v2244
        %v2309 = vlaneseq
        %v2310 = vshrl.u32 %v2309, 7
        %v2311 = vsub.s32 2, %v2310
        %v2312 = vrot.slane %v252, %v2311
        %v2313 = vmul.f32 %v685, %v2312
        %v2314 = vmul.f32 %v689, %v2312
        %v2315 = vmul.f32 %v1514, %v2312
        %v2316 = vmul.f32 %v693, %v2312
        %v2317 = vmul.f32 %v697, %v2312
        %v2318 = vmul.f32 %v1518, %v2312
        %v2319 = vmul.f32 %v701, %v2312
        %v2320 = vmul.f32 %v705, %v2312
        %v2321 = vmul.f32 %v1522, %v2312
        %v2322 = vmul.f32 %v709, %v2312
        %v2323 = vmul.f32 %v713, %v2312
        %v2324 = vmul.f32 %v1526, %v2312
        %v2325 = vmul.f32 %v717, %v2312
        %v2326 = vmul.f32 %v721, %v2312
        %v2327 = vmul.f32 %v1530, %v2312
        %v2328 = vmul.f32 %v725, %v2312
        %v2329 = vmul.f32 %v729, %v2312
        %v2330 = vmul.f32 %v1534, %v2312
        %v2331 = vmul.f32 %v733, %v2312
        %v2332 = vmul.f32 %v737, %v2312
        %v2333 = vmul.f32 %v1538, %v2312
        %v2334 = vmul.f32 %v741, %v2312
        %v2335 = vmul.f32 %v745, %v2312
        %v2336 = vmul.f32 %v1542, %v2312
        %v2337 = vmul.f32 %v749, %v2312
        %v2338 = vmul.f32 %v753, %v2312
        %v2339 = vmul.f32 %v1546, %v2312
        %v2340 = vmul.f32 %v757, %v2312
        %v2341 = vmul.f32 %v761, %v2312
        %v2342 = vmul.f32 %v1550, %v2312
        %v2343 = vmul.f32 %v765, %v2312
        %v2344 = vmul.f32 %v769, %v2312
        %v2345 = vmul.f32 %v1554, %v2312
        %v2346 = vmul.f32 %v773, %v2312
        %v2347 = vmul.f32 %v777, %v2312
        %v2348 = vmul.f32 %v1558, %v2312
        %v2349 = vmul.f32 %v781, %v2312
        %v2350 = vmul.f32 %v785, %v2312
        %v2351 = vmul.f32 %v1562, %v2312
        %v2352 = vmul.f32 %v789, %v2312
        %v2353 = vmul.f32 %v793, %v2312
        %v2354 = vmul.f32 %v1566, %v2312
        %v2355 = vmul.f32 %v797, %v2312
        %v2356 = vmul.f32 %v801, %v2312
        %v2357 = vmul.f32 %v1570, %v2312
        %v2358 = vmul.f32 %v805, %v2312
        %v2359 = vmul.f32 %v809, %v2312
        %v2360 = vmul.f32 %v1574, %v2312
        %v2409 = vrot.slane %v2313, 2
        %v2410 = vrot.slane %v2314, 2
        %v2411 = vsel %vm1920, %v2409, %v2410
        %v2412 = vrot.slane %v2315, 2
        %v2413 = vsel %vm1920, %v2410, %v2412
        %v2414 = vrot.slane %v2316, 2
        %v2415 = vrot.slane %v2317, 2
        %v2416 = vsel %vm1920, %v2414, %v2415
        %v2417 = vrot.slane %v2318, 2
        %v2418 = vsel %vm1920, %v2415, %v2417
        %v2419 = vrot.slane %v2319, 2
        %v2420 = vrot.slane %v2320, 2
        %v2421 = vsel %vm1920, %v2419, %v2420
        %v2422 = vrot.slane %v2321, 2
        %v2423 = vsel %vm1920, %v2420, %v2422
        %v2424 = vrot.slane %v2322, 2
        %v2425 = vrot.slane %v2323, 2
        %v2426 = vsel %vm1920, %v2424, %v2425
        %v2427 = vrot.slane %v2324, 2
        %v2428 = vsel %vm1920, %v2425, %v2427
        %v2429 = vrot.slane %v2325, 2
        %v2430 = vrot.slane %v2326, 2
        %v2431 = vsel %vm1920, %v2429, %v2430
        %v2432 = vrot.slane %v2327, 2
        %v2433 = vsel %vm1920, %v2430, %v2432
        %v2434 = vrot.slane %v2328, 2
        %v2435 = vrot.slane %v2329, 2
        %v2436 = vsel %vm1920, %v2434, %v2435
        %v2437 = vrot.slane %v2330, 2
        %v2438 = vsel %vm1920, %v2435, %v2437
        %v2439 = vrot.slane %v2331, 2
        %v2440 = vrot.slane %v2332, 2
        %v2441 = vsel %vm1920, %v2439, %v2440
        %v2442 = vrot.slane %v2333, 2
        %v2443 = vsel %vm1920, %v2440, %v2442
        %v2444 = vrot.slane %v2334, 2
        %v2445 = vrot.slane %v2335, 2
        %v2446 = vsel %vm1920, %v2444, %v2445
        %v2447 = vrot.slane %v2336, 2
        %v2448 = vsel %vm1920, %v2445, %v2447
        %v2449 = vrot.slane %v2337, 2
        %v2450 = vrot.slane %v2338, 2
        %v2451 = vsel %vm1920, %v2449, %v2450
        %v2452 = vrot.slane %v2339, 2
        %v2453 = vsel %vm1920, %v2450, %v2452
        %v2454 = vrot.slane %v2340, 2
        %v2455 = vrot.slane %v2341, 2
        %v2456 = vsel %vm1920, %v2454, %v2455
        %v2457 = vrot.slane %v2342, 2
        %v2458 = vsel %vm1920, %v2455, %v2457
        %v2459 = vrot.slane %v2343, 2
        %v2460 = vrot.slane %v2344, 2
        %v2461 = vsel %vm1920, %v2459, %v2460
        %v2462 = vrot.slane %v2345, 2
        %v2463 = vsel %vm1920, %v2460, %v2462
        %v2464 = vrot.slane %v2346, 2
        %v2465 = vrot.slane %v2347, 2
        %v2466 = vsel %vm1920, %v2464, %v2465
        %v2467 = vrot.slane %v2348, 2
        %v2468 = vsel %vm1920, %v2465, %v2467
        %v2469 = vrot.slane %v2349, 2
        %v2470 = vrot.slane %v2350, 2
        %v2471 = vsel %vm1920, %v2469, %v2470
        %v2472 = vrot.slane %v2351, 2
        %v2473 = vsel %vm1920, %v2470, %v2472
        %v2474 = vrot.slane %v2352, 2
        %v2475 = vrot.slane %v2353, 2
        %v2476 = vsel %vm1920, %v2474, %v2475
        %v2477 = vrot.slane %v2354, 2
        %v2478 = vsel %vm1920, %v2475, %v2477
        %v2479 = vrot.slane %v2355, 2
        %v2480 = vrot.slane %v2356, 2
        %v2481 = vsel %vm1920, %v2479, %v2480
        %v2482 = vrot.slane %v2357, 2
        %v2483 = vsel %vm1920, %v2480, %v2482
        %v2484 = vrot.slane %v2358, 2
        %v2485 = vrot.slane %v2359, 2
        %v2486 = vsel %vm1920, %v2484, %v2485
        %v2487 = vrot.slane %v2360, 2
        %v2488 = vsel %vm1920, %v2485, %v2487
        %v2521 = vadd.f32 %v2277, %v2411
        %v2522 = vadd.f32 %v2278, %v2413
        %v2523 = vadd.f32 %v2279, %v2416
        %v2524 = vadd.f32 %v2280, %v2418
        %v2525 = vadd.f32 %v2281, %v2421
        %v2526 = vadd.f32 %v2282, %v2423
        %v2527 = vadd.f32 %v2283, %v2426
        %v2528 = vadd.f32 %v2284, %v2428
        %v2529 = vadd.f32 %v2285, %v2431
        %v2530 = vadd.f32 %v2286, %v2433
        %v2531 = vadd.f32 %v2287, %v2436
        %v2532 = vadd.f32 %v2288, %v2438
        %v2533 = vadd.f32 %v2289, %v2441
        %v2534 = vadd.f32 %v2290, %v2443
        %v2535 = vadd.f32 %v2291, %v2446
        %v2536 = vadd.f32 %v2292, %v2448
        %v2537 = vadd.f32 %v2293, %v2451
        %v2538 = vadd.f32 %v2294, %v2453
        %v2539 = vadd.f32 %v2295, %v2456
        %v2540 = vadd.f32 %v2296, %v2458
        %v2541 = vadd.f32 %v2297, %v2461
        %v2542 = vadd.f32 %v2298, %v2463
        %v2543 = vadd.f32 %v2299, %v2466
        %v2544 = vadd.f32 %v2300, %v2468
        %v2545 = vadd.f32 %v2301, %v2471
        %v2546 = vadd.f32 %v2302, %v2473
        %v2547 = vadd.f32 %v2303, %v2476
        %v2548 = vadd.f32 %v2304, %v2478
        %v2549 = vadd.f32 %v2305, %v2481
        %v2550 = vadd.f32 %v2306, %v2483
        %v2551 = vadd.f32 %v2307, %v2486
        %v2552 = vadd.f32 %v2308, %v2488
        %2554 = vset.pattern.permute.xlu0 0
        %2555 = vperm.xlu0 %2554, %v244
        %v2556 = vpop.permute.xlu0 %2555
        %2559 = vset.pattern.permute.xlu0 0
        %2560 = vperm.xlu0 %2559, %v245
        %v2561 = vpop.permute.xlu0 %2560
        %v2563 = vlaneseq
        %v2564 = vshrl.u32 %v2563, 7
        %v2565 = vsub.s32 0, %v2564
        %v2566 = vrot.slane %v253, %v2565
        %v2567 = vmul.f32 %v272, %v2566
        %v2568 = vmul.f32 %v277, %v2566
        %v2569 = vmul.f32 %v282, %v2566
        %v2570 = vmul.f32 %v287, %v2566
        %v2571 = vmul.f32 %v292, %v2566
        %v2572 = vmul.f32 %v297, %v2566
        %v2573 = vmul.f32 %v302, %v2566
        %v2574 = vmul.f32 %v307, %v2566
        %v2575 = vmul.f32 %v312, %v2566
        %v2576 = vmul.f32 %v317, %v2566
        %v2577 = vmul.f32 %v322, %v2566
        %v2578 = vmul.f32 %v327, %v2566
        %v2579 = vmul.f32 %v332, %v2566
        %v2580 = vmul.f32 %v337, %v2566
        %v2581 = vmul.f32 %v342, %v2566
        %v2582 = vmul.f32 %v347, %v2566
        %v2583 = vmul.f32 %v352, %v2566
        %v2584 = vmul.f32 %v357, %v2566
        %v2585 = vmul.f32 %v362, %v2566
        %v2586 = vmul.f32 %v367, %v2566
        %v2587 = vmul.f32 %v372, %v2566
        %v2588 = vmul.f32 %v377, %v2566
        %v2589 = vmul.f32 %v382, %v2566
        %v2590 = vmul.f32 %v387, %v2566
        %v2591 = vmul.f32 %v392, %v2566
        %v2592 = vmul.f32 %v397, %v2566
        %v2593 = vmul.f32 %v402, %v2566
        %v2594 = vmul.f32 %v407, %v2566
        %v2595 = vmul.f32 %v412, %v2566
        %v2596 = vmul.f32 %v417, %v2566
        %v2597 = vmul.f32 %v2556, %v2566
        %v2598 = vmul.f32 %v2561, %v2566
        %v2599 = vadd.f32 %v2521, %v2567
        %v2600 = vadd.f32 %v2522, %v2568
        %v2601 = vadd.f32 %v2523, %v2569
        %v2602 = vadd.f32 %v2524, %v2570
        %v2603 = vadd.f32 %v2525, %v2571
        %v2604 = vadd.f32 %v2526, %v2572
        %v2605 = vadd.f32 %v2527, %v2573
        %v2606 = vadd.f32 %v2528, %v2574
        %v2607 = vadd.f32 %v2529, %v2575
        %v2608 = vadd.f32 %v2530, %v2576
        %v2609 = vadd.f32 %v2531, %v2577
        %v2610 = vadd.f32 %v2532, %v2578
        %v2611 = vadd.f32 %v2533, %v2579
        %v2612 = vadd.f32 %v2534, %v2580
        %v2613 = vadd.f32 %v2535, %v2581
        %v2614 = vadd.f32 %v2536, %v2582
        %v2615 = vadd.f32 %v2537, %v2583
        %v2616 = vadd.f32 %v2538, %v2584
        %v2617 = vadd.f32 %v2539, %v2585
        %v2618 = vadd.f32 %v2540, %v2586
        %v2619 = vadd.f32 %v2541, %v2587
        %v2620 = vadd.f32 %v2542, %v2588
        %v2621 = vadd.f32 %v2543, %v2589
        %v2622 = vadd.f32 %v2544, %v2590
        %v2623 = vadd.f32 %v2545, %v2591
        %v2624 = vadd.f32 %v2546, %v2592
        %v2625 = vadd.f32 %v2547, %v2593
        %v2626 = vadd.f32 %v2548, %v2594
        %v2627 = vadd.f32 %v2549, %v2595
        %v2628 = vadd.f32 %v2550, %v2596
        %v2629 = vadd.f32 %v2551, %v2597
        %v2630 = vadd.f32 %v2552, %v2598
        %2631 = vset.pattern.permute.xlu0 1
        %2632 = vperm.xlu0 %2631, %v244
        %v2633 = vpop.permute.xlu0 %2632
        %2635 = vset.pattern.permute.xlu0 1
        %2636 = vperm.xlu0 %2635, %v245
        %v2637 = vpop.permute.xlu0 %2636
        %v2639 = vlaneseq
        %v2640 = vshrl.u32 %v2639, 7
        %v2641 = vsub.s32 1, %v2640
        %v2642 = vrot.slane %v253, %v2641
        %v2643 = vmul.f32 %v497, %v2642
        %v2644 = vmul.f32 %v501, %v2642
        %v2645 = vmul.f32 %v505, %v2642
        %v2646 = vmul.f32 %v509, %v2642
        %v2647 = vmul.f32 %v513, %v2642
        %v2648 = vmul.f32 %v517, %v2642
        %v2649 = vmul.f32 %v521, %v2642
        %v2650 = vmul.f32 %v525, %v2642
        %v2651 = vmul.f32 %v529, %v2642
        %v2652 = vmul.f32 %v533, %v2642
        %v2653 = vmul.f32 %v537, %v2642
        %v2654 = vmul.f32 %v541, %v2642
        %v2655 = vmul.f32 %v545, %v2642
        %v2656 = vmul.f32 %v549, %v2642
        %v2657 = vmul.f32 %v553, %v2642
        %v2658 = vmul.f32 %v557, %v2642
        %v2659 = vmul.f32 %v561, %v2642
        %v2660 = vmul.f32 %v565, %v2642
        %v2661 = vmul.f32 %v569, %v2642
        %v2662 = vmul.f32 %v573, %v2642
        %v2663 = vmul.f32 %v577, %v2642
        %v2664 = vmul.f32 %v581, %v2642
        %v2665 = vmul.f32 %v585, %v2642
        %v2666 = vmul.f32 %v589, %v2642
        %v2667 = vmul.f32 %v593, %v2642
        %v2668 = vmul.f32 %v597, %v2642
        %v2669 = vmul.f32 %v601, %v2642
        %v2670 = vmul.f32 %v605, %v2642
        %v2671 = vmul.f32 %v609, %v2642
        %v2672 = vmul.f32 %v613, %v2642
        %v2673 = vmul.f32 %v2633, %v2642
        %v2674 = vmul.f32 %v2637, %v2642
        %v2675 = vadd.f32 %v2599, %v2643
        %v2676 = vadd.f32 %v2600, %v2644
        %v2677 = vadd.f32 %v2601, %v2645
        %v2678 = vadd.f32 %v2602, %v2646
        %v2679 = vadd.f32 %v2603, %v2647
        %v2680 = vadd.f32 %v2604, %v2648
        %v2681 = vadd.f32 %v2605, %v2649
        %v2682 = vadd.f32 %v2606, %v2650
        %v2683 = vadd.f32 %v2607, %v2651
        %v2684 = vadd.f32 %v2608, %v2652
        %v2685 = vadd.f32 %v2609, %v2653
        %v2686 = vadd.f32 %v2610, %v2654
        %v2687 = vadd.f32 %v2611, %v2655
        %v2688 = vadd.f32 %v2612, %v2656
        %v2689 = vadd.f32 %v2613, %v2657
        %v2690 = vadd.f32 %v2614, %v2658
        %v2691 = vadd.f32 %v2615, %v2659
        %v2692 = vadd.f32 %v2616, %v2660
        %v2693 = vadd.f32 %v2617, %v2661
        %v2694 = vadd.f32 %v2618, %v2662
        %v2695 = vadd.f32 %v2619, %v2663
        %v2696 = vadd.f32 %v2620, %v2664
        %v2697 = vadd.f32 %v2621, %v2665
        %v2698 = vadd.f32 %v2622, %v2666
        %v2699 = vadd.f32 %v2623, %v2667
        %v2700 = vadd.f32 %v2624, %v2668
        %v2701 = vadd.f32 %v2625, %v2669
        %v2702 = vadd.f32 %v2626, %v2670
        %v2703 = vadd.f32 %v2627, %v2671
        %v2704 = vadd.f32 %v2628, %v2672
        %v2705 = vadd.f32 %v2629, %v2673
        %v2706 = vadd.f32 %v2630, %v2674
        %2707 = vset.pattern.permute.xlu0 2
        %2708 = vperm.xlu0 %2707, %v244
        %v2709 = vpop.permute.xlu0 %2708
        %2711 = vset.pattern.permute.xlu0 2
        %2712 = vperm.xlu0 %2711, %v245
        %v2713 = vpop.permute.xlu0 %2712
        %v2715 = vlaneseq
        %v2716 = vshrl.u32 %v2715, 7
        %v2717 = vsub.s32 2, %v2716
        %v2718 = vrot.slane %v253, %v2717
        %v2719 = vmul.f32 %v693, %v2718
        %v2720 = vmul.f32 %v697, %v2718
        %v2721 = vmul.f32 %v701, %v2718
        %v2722 = vmul.f32 %v705, %v2718
        %v2723 = vmul.f32 %v709, %v2718
        %v2724 = vmul.f32 %v713, %v2718
        %v2725 = vmul.f32 %v717, %v2718
        %v2726 = vmul.f32 %v721, %v2718
        %v2727 = vmul.f32 %v725, %v2718
        %v2728 = vmul.f32 %v729, %v2718
        %v2729 = vmul.f32 %v733, %v2718
        %v2730 = vmul.f32 %v737, %v2718
        %v2731 = vmul.f32 %v741, %v2718
        %v2732 = vmul.f32 %v745, %v2718
        %v2733 = vmul.f32 %v749, %v2718
        %v2734 = vmul.f32 %v753, %v2718
        %v2735 = vmul.f32 %v757, %v2718
        %v2736 = vmul.f32 %v761, %v2718
        %v2737 = vmul.f32 %v765, %v2718
        %v2738 = vmul.f32 %v769, %v2718
        %v2739 = vmul.f32 %v773, %v2718
        %v2740 = vmul.f32 %v777, %v2718
        %v2741 = vmul.f32 %v781, %v2718
        %v2742 = vmul.f32 %v785, %v2718
        %v2743 = vmul.f32 %v789, %v2718
        %v2744 = vmul.f32 %v793, %v2718
        %v2745 = vmul.f32 %v797, %v2718
        %v2746 = vmul.f32 %v801, %v2718
        %v2747 = vmul.f32 %v805, %v2718
        %v2748 = vmul.f32 %v809, %v2718
        %v2749 = vmul.f32 %v2709, %v2718
        %v2750 = vmul.f32 %v2713, %v2718
        %v2751 = vadd.f32 %v2675, %v2719
        %v2752 = vadd.f32 %v2676, %v2720
        %v2753 = vadd.f32 %v2677, %v2721
        %v2754 = vadd.f32 %v2678, %v2722
        %v2755 = vadd.f32 %v2679, %v2723
        %v2756 = vadd.f32 %v2680, %v2724
        %v2757 = vadd.f32 %v2681, %v2725
        %v2758 = vadd.f32 %v2682, %v2726
        %v2759 = vadd.f32 %v2683, %v2727
        %v2760 = vadd.f32 %v2684, %v2728
        %v2761 = vadd.f32 %v2685, %v2729
        %v2762 = vadd.f32 %v2686, %v2730
        %v2763 = vadd.f32 %v2687, %v2731
        %v2764 = vadd.f32 %v2688, %v2732
        %v2765 = vadd.f32 %v2689, %v2733
        %v2766 = vadd.f32 %v2690, %v2734
        %v2767 = vadd.f32 %v2691, %v2735
        %v2768 = vadd.f32 %v2692, %v2736
        %v2769 = vadd.f32 %v2693, %v2737
        %v2770 = vadd.f32 %v2694, %v2738
        %v2771 = vadd.f32 %v2695, %v2739
        %v2772 = vadd.f32 %v2696, %v2740
        %v2773 = vadd.f32 %v2697, %v2741
        %v2774 = vadd.f32 %v2698, %v2742
        %v2775 = vadd.f32 %v2699, %v2743
        %v2776 = vadd.f32 %v2700, %v2744
        %v2777 = vadd.f32 %v2701, %v2745
        %v2778 = vadd.f32 %v2702, %v2746
        %v2779 = vadd.f32 %v2703, %v2747
        %v2780 = vadd.f32 %v2704, %v2748
        %v2781 = vadd.f32 %v2705, %v2749
        %v2782 = vadd.f32 %v2706, %v2750
        %2784 = vset.pattern.permute.xlu0 0
        %2785 = vperm.xlu0 %2784, %v246
        %v2786 = vpop.permute.xlu0 %2785
        %v2788 = vlaneseq
        %v2789 = vshrl.u32 %v2788, 7
        %v2790 = vsub.s32 0, %v2789
        %v2791 = vrot.slane %v254, %v2790
        %v2792 = vmul.f32 %v272, %v2791
        %v2793 = vmul.f32 %v277, %v2791
        %v2794 = vmul.f32 %v887, %v2791
        %v2795 = vmul.f32 %v282, %v2791
        %v2796 = vmul.f32 %v287, %v2791
        %v2797 = vmul.f32 %v892, %v2791
        %v2798 = vmul.f32 %v292, %v2791
        %v2799 = vmul.f32 %v297, %v2791
        %v2800 = vmul.f32 %v897, %v2791
        %v2801 = vmul.f32 %v302, %v2791
        %v2802 = vmul.f32 %v307, %v2791
        %v2803 = vmul.f32 %v902, %v2791
        %v2804 = vmul.f32 %v312, %v2791
        %v2805 = vmul.f32 %v317, %v2791
        %v2806 = vmul.f32 %v907, %v2791
        %v2807 = vmul.f32 %v322, %v2791
        %v2808 = vmul.f32 %v327, %v2791
        %v2809 = vmul.f32 %v912, %v2791
        %v2810 = vmul.f32 %v332, %v2791
        %v2811 = vmul.f32 %v337, %v2791
        %v2812 = vmul.f32 %v917, %v2791
        %v2813 = vmul.f32 %v342, %v2791
        %v2814 = vmul.f32 %v347, %v2791
        %v2815 = vmul.f32 %v922, %v2791
        %v2816 = vmul.f32 %v352, %v2791
        %v2817 = vmul.f32 %v357, %v2791
        %v2818 = vmul.f32 %v927, %v2791
        %v2819 = vmul.f32 %v362, %v2791
        %v2820 = vmul.f32 %v367, %v2791
        %v2821 = vmul.f32 %v932, %v2791
        %v2822 = vmul.f32 %v372, %v2791
        %v2823 = vmul.f32 %v377, %v2791
        %v2824 = vmul.f32 %v937, %v2791
        %v2825 = vmul.f32 %v382, %v2791
        %v2826 = vmul.f32 %v387, %v2791
        %v2827 = vmul.f32 %v942, %v2791
        %v2828 = vmul.f32 %v392, %v2791
        %v2829 = vmul.f32 %v397, %v2791
        %v2830 = vmul.f32 %v947, %v2791
        %v2831 = vmul.f32 %v402, %v2791
        %v2832 = vmul.f32 %v407, %v2791
        %v2833 = vmul.f32 %v952, %v2791
        %v2834 = vmul.f32 %v412, %v2791
        %v2835 = vmul.f32 %v417, %v2791
        %v2836 = vmul.f32 %v957, %v2791
        %v2837 = vmul.f32 %v2556, %v2791
        %v2838 = vmul.f32 %v2561, %v2791
        %v2839 = vmul.f32 %v2786, %v2791
        %v2888 = vrot.slane %v2792, 1
        %v2889 = vrot.slane %v2793, 1
        %v2890 = vsel %vm1059, %v2888, %v2889
        %v2891 = vrot.slane %v2794, 1
        %v2892 = vsel %vm1059, %v2889, %v2891
        %v2893 = vrot.slane %v2795, 1
        %v2894 = vrot.slane %v2796, 1
        %v2895 = vsel %vm1059, %v2893, %v2894
        %v2896 = vrot.slane %v2797, 1
        %v2897 = vsel %vm1059, %v2894, %v2896
        %v2898 = vrot.slane %v2798, 1
        %v2899 = vrot.slane %v2799, 1
        %v2900 = vsel %vm1059, %v2898, %v2899
        %v2901 = vrot.slane %v2800, 1
        %v2902 = vsel %vm1059, %v2899, %v2901
        %v2903 = vrot.slane %v2801, 1
        %v2904 = vrot.slane %v2802, 1
        %v2905 = vsel %vm1059, %v2903, %v2904
        %v2906 = vrot.slane %v2803, 1
        %v2907 = vsel %vm1059, %v2904, %v2906
        %v2908 = vrot.slane %v2804, 1
        %v2909 = vrot.slane %v2805, 1
        %v2910 = vsel %vm1059, %v2908, %v2909
        %v2911 = vrot.slane %v2806, 1
        %v2912 = vsel %vm1059, %v2909, %v2911
        %v2913 = vrot.slane %v2807, 1
        %v2914 = vrot.slane %v2808, 1
        %v2915 = vsel %vm1059, %v2913, %v2914
        %v2916 = vrot.slane %v2809, 1
        %v2917 = vsel %vm1059, %v2914, %v2916
        %v2918 = vrot.slane %v2810, 1
        %v2919 = vrot.slane %v2811, 1
        %v2920 = vsel %vm1059, %v2918, %v2919
        %v2921 = vrot.slane %v2812, 1
        %v2922 = vsel %vm1059, %v2919, %v2921
        %v2923 = vrot.slane %v2813, 1
        %v2924 = vrot.slane %v2814, 1
        %v2925 = vsel %vm1059, %v2923, %v2924
        %v2926 = vrot.slane %v2815, 1
        %v2927 = vsel %vm1059, %v2924, %v2926
        %v2928 = vrot.slane %v2816, 1
        %v2929 = vrot.slane %v2817, 1
        %v2930 = vsel %vm1059, %v2928, %v2929
        %v2931 = vrot.slane %v2818, 1
        %v2932 = vsel %vm1059, %v2929, %v2931
        %v2933 = vrot.slane %v2819, 1
        %v2934 = vrot.slane %v2820, 1
        %v2935 = vsel %vm1059, %v2933, %v2934
        %v2936 = vrot.slane %v2821, 1
        %v2937 = vsel %vm1059, %v2934, %v2936
        %v2938 = vrot.slane %v2822, 1
        %v2939 = vrot.slane %v2823, 1
        %v2940 = vsel %vm1059, %v2938, %v2939
        %v2941 = vrot.slane %v2824, 1
        %v2942 = vsel %vm1059, %v2939, %v2941
        %v2943 = vrot.slane %v2825, 1
        %v2944 = vrot.slane %v2826, 1
        %v2945 = vsel %vm1059, %v2943, %v2944
        %v2946 = vrot.slane %v2827, 1
        %v2947 = vsel %vm1059, %v2944, %v2946
        %v2948 = vrot.slane %v2828, 1
        %v2949 = vrot.slane %v2829, 1
        %v2950 = vsel %vm1059, %v2948, %v2949
        %v2951 = vrot.slane %v2830, 1
        %v2952 = vsel %vm1059, %v2949, %v2951
        %v2953 = vrot.slane %v2831, 1
        %v2954 = vrot.slane %v2832, 1
        %v2955 = vsel %vm1059, %v2953, %v2954
        %v2956 = vrot.slane %v2833, 1
        %v2957 = vsel %vm1059, %v2954, %v2956
        %v2958 = vrot.slane %v2834, 1
        %v2959 = vrot.slane %v2835, 1
        %v2960 = vsel %vm1059, %v2958, %v2959
        %v2961 = vrot.slane %v2836, 1
        %v2962 = vsel %vm1059, %v2959, %v2961
        %v2963 = vrot.slane %v2837, 1
        %v2964 = vrot.slane %v2838, 1
        %v2965 = vsel %vm1059, %v2963, %v2964
        %v2966 = vrot.slane %v2839, 1
        %v2967 = vsel %vm1059, %v2964, %v2966
        %v3000 = vadd.f32 %v2751, %v2890
        %v3001 = vadd.f32 %v2752, %v2892
        %v3002 = vadd.f32 %v2753, %v2895
        %v3003 = vadd.f32 %v2754, %v2897
        %v3004 = vadd.f32 %v2755, %v2900
        %v3005 = vadd.f32 %v2756, %v2902
        %v3006 = vadd.f32 %v2757, %v2905
        %v3007 = vadd.f32 %v2758, %v2907
        %v3008 = vadd.f32 %v2759, %v2910
        %v3009 = vadd.f32 %v2760, %v2912
        %v3010 = vadd.f32 %v2761, %v2915
        %v3011 = vadd.f32 %v2762, %v2917
        %v3012 = vadd.f32 %v2763, %v2920
        %v3013 = vadd.f32 %v2764, %v2922
        %v3014 = vadd.f32 %v2765, %v2925
        %v3015 = vadd.f32 %v2766, %v2927
        %v3016 = vadd.f32 %v2767, %v2930
        %v3017 = vadd.f32 %v2768, %v2932
        %v3018 = vadd.f32 %v2769, %v2935
        %v3019 = vadd.f32 %v2770, %v2937
        %v3020 = vadd.f32 %v2771, %v2940
        %v3021 = vadd.f32 %v2772, %v2942
        %v3022 = vadd.f32 %v2773, %v2945
        %v3023 = vadd.f32 %v2774, %v2947
        %v3024 = vadd.f32 %v2775, %v2950
        %v3025 = vadd.f32 %v2776, %v2952
        %v3026 = vadd.f32 %v2777, %v2955
        %v3027 = vadd.f32 %v2778, %v2957
        %v3028 = vadd.f32 %v2779, %v2960
        %v3029 = vadd.f32 %v2780, %v2962
        %v3030 = vadd.f32 %v2781, %v2965
        %v3031 = vadd.f32 %v2782, %v2967
        %3032 = vset.pattern.permute.xlu0 1
        %3033 = vperm.xlu0 %3032, %v246
        %v3034 = vpop.permute.xlu0 %3033
        %v3036 = vlaneseq
        %v3037 = vshrl.u32 %v3036, 7
        %v3038 = vsub.s32 1, %v3037
        %v3039 = vrot.slane %v254, %v3038
        %v3040 = vmul.f32 %v497, %v3039
        %v3041 = vmul.f32 %v501, %v3039
        %v3042 = vmul.f32 %v1210, %v3039
        %v3043 = vmul.f32 %v505, %v3039
        %v3044 = vmul.f32 %v509, %v3039
        %v3045 = vmul.f32 %v1214, %v3039
        %v3046 = vmul.f32 %v513, %v3039
        %v3047 = vmul.f32 %v517, %v3039
        %v3048 = vmul.f32 %v1218, %v3039
        %v3049 = vmul.f32 %v521, %v3039
        %v3050 = vmul.f32 %v525, %v3039
        %v3051 = vmul.f32 %v1222, %v3039
        %v3052 = vmul.f32 %v529, %v3039
        %v3053 = vmul.f32 %v533, %v3039
        %v3054 = vmul.f32 %v1226, %v3039
        %v3055 = vmul.f32 %v537, %v3039
        %v3056 = vmul.f32 %v541, %v3039
        %v3057 = vmul.f32 %v1230, %v3039
        %v3058 = vmul.f32 %v545, %v3039
        %v3059 = vmul.f32 %v549, %v3039
        %v3060 = vmul.f32 %v1234, %v3039
        %v3061 = vmul.f32 %v553, %v3039
        %v3062 = vmul.f32 %v557, %v3039
        %v3063 = vmul.f32 %v1238, %v3039
        %v3064 = vmul.f32 %v561, %v3039
        %v3065 = vmul.f32 %v565, %v3039
        %v3066 = vmul.f32 %v1242, %v3039
        %v3067 = vmul.f32 %v569, %v3039
        %v3068 = vmul.f32 %v573, %v3039
        %v3069 = vmul.f32 %v1246, %v3039
        %v3070 = vmul.f32 %v577, %v3039
        %v3071 = vmul.f32 %v581, %v3039
        %v3072 = vmul.f32 %v1250, %v3039
        %v3073 = vmul.f32 %v585, %v3039
        %v3074 = vmul.f32 %v589, %v3039
        %v3075 = vmul.f32 %v1254, %v3039
        %v3076 = vmul.f32 %v593, %v3039
        %v3077 = vmul.f32 %v597, %v3039
        %v3078 = vmul.f32 %v1258, %v3039
        %v3079 = vmul.f32 %v601, %v3039
        %v3080 = vmul.f32 %v605, %v3039
        %v3081 = vmul.f32 %v1262, %v3039
        %v3082 = vmul.f32 %v609, %v3039
        %v3083 = vmul.f32 %v613, %v3039
        %v3084 = vmul.f32 %v1266, %v3039
        %v3085 = vmul.f32 %v2633, %v3039
        %v3086 = vmul.f32 %v2637, %v3039
        %v3087 = vmul.f32 %v3034, %v3039
        %v3136 = vrot.slane %v3040, 1
        %v3137 = vrot.slane %v3041, 1
        %v3138 = vsel %vm1059, %v3136, %v3137
        %v3139 = vrot.slane %v3042, 1
        %v3140 = vsel %vm1059, %v3137, %v3139
        %v3141 = vrot.slane %v3043, 1
        %v3142 = vrot.slane %v3044, 1
        %v3143 = vsel %vm1059, %v3141, %v3142
        %v3144 = vrot.slane %v3045, 1
        %v3145 = vsel %vm1059, %v3142, %v3144
        %v3146 = vrot.slane %v3046, 1
        %v3147 = vrot.slane %v3047, 1
        %v3148 = vsel %vm1059, %v3146, %v3147
        %v3149 = vrot.slane %v3048, 1
        %v3150 = vsel %vm1059, %v3147, %v3149
        %v3151 = vrot.slane %v3049, 1
        %v3152 = vrot.slane %v3050, 1
        %v3153 = vsel %vm1059, %v3151, %v3152
        %v3154 = vrot.slane %v3051, 1
        %v3155 = vsel %vm1059, %v3152, %v3154
        %v3156 = vrot.slane %v3052, 1
        %v3157 = vrot.slane %v3053, 1
        %v3158 = vsel %vm1059, %v3156, %v3157
        %v3159 = vrot.slane %v3054, 1
        %v3160 = vsel %vm1059, %v3157, %v3159
        %v3161 = vrot.slane %v3055, 1
        %v3162 = vrot.slane %v3056, 1
        %v3163 = vsel %vm1059, %v3161, %v3162
        %v3164 = vrot.slane %v3057, 1
        %v3165 = vsel %vm1059, %v3162, %v3164
        %v3166 = vrot.slane %v3058, 1
        %v3167 = vrot.slane %v3059, 1
        %v3168 = vsel %vm1059, %v3166, %v3167
        %v3169 = vrot.slane %v3060, 1
        %v3170 = vsel %vm1059, %v3167, %v3169
        %v3171 = vrot.slane %v3061, 1
        %v3172 = vrot.slane %v3062, 1
        %v3173 = vsel %vm1059, %v3171, %v3172
        %v3174 = vrot.slane %v3063, 1
        %v3175 = vsel %vm1059, %v3172, %v3174
        %v3176 = vrot.slane %v3064, 1
        %v3177 = vrot.slane %v3065, 1
        %v3178 = vsel %vm1059, %v3176, %v3177
        %v3179 = vrot.slane %v3066, 1
        %v3180 = vsel %vm1059, %v3177, %v3179
        %v3181 = vrot.slane %v3067, 1
        %v3182 = vrot.slane %v3068, 1
        %v3183 = vsel %vm1059, %v3181, %v3182
        %v3184 = vrot.slane %v3069, 1
        %v3185 = vsel %vm1059, %v3182, %v3184
        %v3186 = vrot.slane %v3070, 1
        %v3187 = vrot.slane %v3071, 1
        %v3188 = vsel %vm1059, %v3186, %v3187
        %v3189 = vrot.slane %v3072, 1
        %v3190 = vsel %vm1059, %v3187, %v3189
        %v3191 = vrot.slane %v3073, 1
        %v3192 = vrot.slane %v3074, 1
        %v3193 = vsel %vm1059, %v3191, %v3192
        %v3194 = vrot.slane %v3075, 1
        %v3195 = vsel %vm1059, %v3192, %v3194
        %v3196 = vrot.slane %v3076, 1
        %v3197 = vrot.slane %v3077, 1
        %v3198 = vsel %vm1059, %v3196, %v3197
        %v3199 = vrot.slane %v3078, 1
        %v3200 = vsel %vm1059, %v3197, %v3199
        %v3201 = vrot.slane %v3079, 1
        %v3202 = vrot.slane %v3080, 1
        %v3203 = vsel %vm1059, %v3201, %v3202
        %v3204 = vrot.slane %v3081, 1
        %v3205 = vsel %vm1059, %v3202, %v3204
        %v3206 = vrot.slane %v3082, 1
        %v3207 = vrot.slane %v3083, 1
        %v3208 = vsel %vm1059, %v3206, %v3207
        %v3209 = vrot.slane %v3084, 1
        %v3210 = vsel %vm1059, %v3207, %v3209
        %v3211 = vrot.slane %v3085, 1
        %v3212 = vrot.slane %v3086, 1
        %v3213 = vsel %vm1059, %v3211, %v3212
        %v3214 = vrot.slane %v3087, 1
        %v3215 = vsel %vm1059, %v3212, %v3214
        %v3248 = vadd.f32 %v3000, %v3138
        %v3249 = vadd.f32 %v3001, %v3140
        %v3250 = vadd.f32 %v3002, %v3143
        %v3251 = vadd.f32 %v3003, %v3145
        %v3252 = vadd.f32 %v3004, %v3148
        %v3253 = vadd.f32 %v3005, %v3150
        %v3254 = vadd.f32 %v3006, %v3153
        %v3255 = vadd.f32 %v3007, %v3155
        %v3256 = vadd.f32 %v3008, %v3158
        %v3257 = vadd.f32 %v3009, %v3160
        %v3258 = vadd.f32 %v3010, %v3163
        %v3259 = vadd.f32 %v3011, %v3165
        %v3260 = vadd.f32 %v3012, %v3168
        %v3261 = vadd.f32 %v3013, %v3170
        %v3262 = vadd.f32 %v3014, %v3173
        %v3263 = vadd.f32 %v3015, %v3175
        %v3264 = vadd.f32 %v3016, %v3178
        %v3265 = vadd.f32 %v3017, %v3180
        %v3266 = vadd.f32 %v3018, %v3183
        %v3267 = vadd.f32 %v3019, %v3185
        %v3268 = vadd.f32 %v3020, %v3188
        %v3269 = vadd.f32 %v3021, %v3190
        %v3270 = vadd.f32 %v3022, %v3193
        %v3271 = vadd.f32 %v3023, %v3195
        %v3272 = vadd.f32 %v3024, %v3198
        %v3273 = vadd.f32 %v3025, %v3200
        %v3274 = vadd.f32 %v3026, %v3203
        %v3275 = vadd.f32 %v3027, %v3205
        %v3276 = vadd.f32 %v3028, %v3208
        %v3277 = vadd.f32 %v3029, %v3210
        %v3278 = vadd.f32 %v3030, %v3213
        %v3279 = vadd.f32 %v3031, %v3215
        %3280 = vset.pattern.permute.xlu0 2
        %3281 = vperm.xlu0 %3280, %v246
        %v3282 = vpop.permute.xlu0 %3281
        %v3284 = vlaneseq
        %v3285 = vshrl.u32 %v3284, 7
        %v3286 = vsub.s32 2, %v3285
        %v3287 = vrot.slane %v254, %v3286
        %v3288 = vmul.f32 %v693, %v3287
        %v3289 = vmul.f32 %v697, %v3287
        %v3290 = vmul.f32 %v1518, %v3287
        %v3291 = vmul.f32 %v701, %v3287
        %v3292 = vmul.f32 %v705, %v3287
        %v3293 = vmul.f32 %v1522, %v3287
        %v3294 = vmul.f32 %v709, %v3287
        %v3295 = vmul.f32 %v713, %v3287
        %v3296 = vmul.f32 %v1526, %v3287
        %v3297 = vmul.f32 %v717, %v3287
        %v3298 = vmul.f32 %v721, %v3287
        %v3299 = vmul.f32 %v1530, %v3287
        %v3300 = vmul.f32 %v725, %v3287
        %v3301 = vmul.f32 %v729, %v3287
        %v3302 = vmul.f32 %v1534, %v3287
        %v3303 = vmul.f32 %v733, %v3287
        %v3304 = vmul.f32 %v737, %v3287
        %v3305 = vmul.f32 %v1538, %v3287
        %v3306 = vmul.f32 %v741, %v3287
        %v3307 = vmul.f32 %v745, %v3287
        %v3308 = vmul.f32 %v1542, %v3287
        %v3309 = vmul.f32 %v749, %v3287
        %v3310 = vmul.f32 %v753, %v3287
        %v3311 = vmul.f32 %v1546, %v3287
        %v3312 = vmul.f32 %v757, %v3287
        %v3313 = vmul.f32 %v761, %v3287
        %v3314 = vmul.f32 %v1550, %v3287
        %v3315 = vmul.f32 %v765, %v3287
        %v3316 = vmul.f32 %v769, %v3287
        %v3317 = vmul.f32 %v1554, %v3287
        %v3318 = vmul.f32 %v773, %v3287
        %v3319 = vmul.f32 %v777, %v3287
        %v3320 = vmul.f32 %v1558, %v3287
        %v3321 = vmul.f32 %v781, %v3287
        %v3322 = vmul.f32 %v785, %v3287
        %v3323 = vmul.f32 %v1562, %v3287
        %v3324 = vmul.f32 %v789, %v3287
        %v3325 = vmul.f32 %v793, %v3287
        %v3326 = vmul.f32 %v1566, %v3287
        %v3327 = vmul.f32 %v797, %v3287
        %v3328 = vmul.f32 %v801, %v3287
        %v3329 = vmul.f32 %v1570, %v3287
        %v3330 = vmul.f32 %v805, %v3287
        %v3331 = vmul.f32 %v809, %v3287
        %v3332 = vmul.f32 %v1574, %v3287
        %v3333 = vmul.f32 %v2709, %v3287
        %v3334 = vmul.f32 %v2713, %v3287
        %v3335 = vmul.f32 %v3282, %v3287
        %v3384 = vrot.slane %v3288, 1
        %v3385 = vrot.slane %v3289, 1
        %v3386 = vsel %vm1059, %v3384, %v3385
        %v3387 = vrot.slane %v3290, 1
        %v3388 = vsel %vm1059, %v3385, %v3387
        %v3389 = vrot.slane %v3291, 1
        %v3390 = vrot.slane %v3292, 1
        %v3391 = vsel %vm1059, %v3389, %v3390
        %v3392 = vrot.slane %v3293, 1
        %v3393 = vsel %vm1059, %v3390, %v3392
        %v3394 = vrot.slane %v3294, 1
        %v3395 = vrot.slane %v3295, 1
        %v3396 = vsel %vm1059, %v3394, %v3395
        %v3397 = vrot.slane %v3296, 1
        %v3398 = vsel %vm1059, %v3395, %v3397
        %v3399 = vrot.slane %v3297, 1
        %v3400 = vrot.slane %v3298, 1
        %v3401 = vsel %vm1059, %v3399, %v3400
        %v3402 = vrot.slane %v3299, 1
        %v3403 = vsel %vm1059, %v3400, %v3402
        %v3404 = vrot.slane %v3300, 1
        %v3405 = vrot.slane %v3301, 1
        %v3406 = vsel %vm1059, %v3404, %v3405
        %v3407 = vrot.slane %v3302, 1
        %v3408 = vsel %vm1059, %v3405, %v3407
        %v3409 = vrot.slane %v3303, 1
        %v3410 = vrot.slane %v3304, 1
        %v3411 = vsel %vm1059, %v3409, %v3410
        %v3412 = vrot.slane %v3305, 1
        %v3413 = vsel %vm1059, %v3410, %v3412
        %v3414 = vrot.slane %v3306, 1
        %v3415 = vrot.slane %v3307, 1
        %v3416 = vsel %vm1059, %v3414, %v3415
        %v3417 = vrot.slane %v3308, 1
        %v3418 = vsel %vm1059, %v3415, %v3417
        %v3419 = vrot.slane %v3309, 1
        %v3420 = vrot.slane %v3310, 1
        %v3421 = vsel %vm1059, %v3419, %v3420
        %v3422 = vrot.slane %v3311, 1
        %v3423 = vsel %vm1059, %v3420, %v3422
        %v3424 = vrot.slane %v3312, 1
        %v3425 = vrot.slane %v3313, 1
        %v3426 = vsel %vm1059, %v3424, %v3425
        %v3427 = vrot.slane %v3314, 1
        %v3428 = vsel %vm1059, %v3425, %v3427
        %v3429 = vrot.slane %v3315, 1
        %v3430 = vrot.slane %v3316, 1
        %v3431 = vsel %vm1059, %v3429, %v3430
        %v3432 = vrot.slane %v3317, 1
        %v3433 = vsel %vm1059, %v3430, %v3432
        %v3434 = vrot.slane %v3318, 1
        %v3435 = vrot.slane %v3319, 1
        %v3436 = vsel %vm1059, %v3434, %v3435
        %v3437 = vrot.slane %v3320, 1
        %v3438 = vsel %vm1059, %v3435, %v3437
        %v3439 = vrot.slane %v3321, 1
        %v3440 = vrot.slane %v3322, 1
        %v3441 = vsel %vm1059, %v3439, %v3440
        %v3442 = vrot.slane %v3323, 1
        %v3443 = vsel %vm1059, %v3440, %v3442
        %v3444 = vrot.slane %v3324, 1
        %v3445 = vrot.slane %v3325, 1
        %v3446 = vsel %vm1059, %v3444, %v3445
        %v3447 = vrot.slane %v3326, 1
        %v3448 = vsel %vm1059, %v3445, %v3447
        %v3449 = vrot.slane %v3327, 1
        %v3450 = vrot.slane %v3328, 1
        %v3451 = vsel %vm1059, %v3449, %v3450
        %v3452 = vrot.slane %v3329, 1
        %v3453 = vsel %vm1059, %v3450, %v3452
        %v3454 = vrot.slane %v3330, 1
        %v3455 = vrot.slane %v3331, 1
        %v3456 = vsel %vm1059, %v3454, %v3455
        %v3457 = vrot.slane %v3332, 1
        %v3458 = vsel %vm1059, %v3455, %v3457
        %v3459 = vrot.slane %v3333, 1
        %v3460 = vrot.slane %v3334, 1
        %v3461 = vsel %vm1059, %v3459, %v3460
        %v3462 = vrot.slane %v3335, 1
        %v3463 = vsel %vm1059, %v3460, %v3462
        %v3496 = vadd.f32 %v3248, %v3386
        %v3497 = vadd.f32 %v3249, %v3388
        %v3498 = vadd.f32 %v3250, %v3391
        %v3499 = vadd.f32 %v3251, %v3393
        %v3500 = vadd.f32 %v3252, %v3396
        %v3501 = vadd.f32 %v3253, %v3398
        %v3502 = vadd.f32 %v3254, %v3401
        %v3503 = vadd.f32 %v3255, %v3403
        %v3504 = vadd.f32 %v3256, %v3406
        %v3505 = vadd.f32 %v3257, %v3408
        %v3506 = vadd.f32 %v3258, %v3411
        %v3507 = vadd.f32 %v3259, %v3413
        %v3508 = vadd.f32 %v3260, %v3416
        %v3509 = vadd.f32 %v3261, %v3418
        %v3510 = vadd.f32 %v3262, %v3421
        %v3511 = vadd.f32 %v3263, %v3423
        %v3512 = vadd.f32 %v3264, %v3426
        %v3513 = vadd.f32 %v3265, %v3428
        %v3514 = vadd.f32 %v3266, %v3431
        %v3515 = vadd.f32 %v3267, %v3433
        %v3516 = vadd.f32 %v3268, %v3436
        %v3517 = vadd.f32 %v3269, %v3438
        %v3518 = vadd.f32 %v3270, %v3441
        %v3519 = vadd.f32 %v3271, %v3443
        %v3520 = vadd.f32 %v3272, %v3446
        %v3521 = vadd.f32 %v3273, %v3448
        %v3522 = vadd.f32 %v3274, %v3451
        %v3523 = vadd.f32 %v3275, %v3453
        %v3524 = vadd.f32 %v3276, %v3456
        %v3525 = vadd.f32 %v3277, %v3458
        %v3526 = vadd.f32 %v3278, %v3461
        %v3527 = vadd.f32 %v3279, %v3463
        %v3528 = vlaneseq
        %v3529 = vshrl.u32 %v3528, 7
        %v3530 = vsub.s32 0, %v3529
        %v3531 = vrot.slane %v255, %v3530
        %v3532 = vmul.f32 %v272, %v3531
        %v3533 = vmul.f32 %v277, %v3531
        %v3534 = vmul.f32 %v887, %v3531
        %v3535 = vmul.f32 %v282, %v3531
        %v3536 = vmul.f32 %v287, %v3531
        %v3537 = vmul.f32 %v892, %v3531
        %v3538 = vmul.f32 %v292, %v3531
        %v3539 = vmul.f32 %v297, %v3531
        %v3540 = vmul.f32 %v897, %v3531
        %v3541 = vmul.f32 %v302, %v3531
        %v3542 = vmul.f32 %v307, %v3531
        %v3543 = vmul.f32 %v902, %v3531
        %v3544 = vmul.f32 %v312, %v3531
        %v3545 = vmul.f32 %v317, %v3531
        %v3546 = vmul.f32 %v907, %v3531
        %v3547 = vmul.f32 %v322, %v3531
        %v3548 = vmul.f32 %v327, %v3531
        %v3549 = vmul.f32 %v912, %v3531
        %v3550 = vmul.f32 %v332, %v3531
        %v3551 = vmul.f32 %v337, %v3531
        %v3552 = vmul.f32 %v917, %v3531
        %v3553 = vmul.f32 %v342, %v3531
        %v3554 = vmul.f32 %v347, %v3531
        %v3555 = vmul.f32 %v922, %v3531
        %v3556 = vmul.f32 %v352, %v3531
        %v3557 = vmul.f32 %v357, %v3531
        %v3558 = vmul.f32 %v927, %v3531
        %v3559 = vmul.f32 %v362, %v3531
        %v3560 = vmul.f32 %v367, %v3531
        %v3561 = vmul.f32 %v932, %v3531
        %v3562 = vmul.f32 %v372, %v3531
        %v3563 = vmul.f32 %v377, %v3531
        %v3564 = vmul.f32 %v937, %v3531
        %v3565 = vmul.f32 %v382, %v3531
        %v3566 = vmul.f32 %v387, %v3531
        %v3567 = vmul.f32 %v942, %v3531
        %v3568 = vmul.f32 %v392, %v3531
        %v3569 = vmul.f32 %v397, %v3531
        %v3570 = vmul.f32 %v947, %v3531
        %v3571 = vmul.f32 %v402, %v3531
        %v3572 = vmul.f32 %v407, %v3531
        %v3573 = vmul.f32 %v952, %v3531
        %v3574 = vmul.f32 %v412, %v3531
        %v3575 = vmul.f32 %v417, %v3531
        %v3576 = vmul.f32 %v957, %v3531
        %v3577 = vmul.f32 %v2556, %v3531
        %v3578 = vmul.f32 %v2561, %v3531
        %v3579 = vmul.f32 %v2786, %v3531
        %v3628 = vrot.slane %v3532, 2
        %v3629 = vrot.slane %v3533, 2
        %v3630 = vsel %vm1920, %v3628, %v3629
        %v3631 = vrot.slane %v3534, 2
        %v3632 = vsel %vm1920, %v3629, %v3631
        %v3633 = vrot.slane %v3535, 2
        %v3634 = vrot.slane %v3536, 2
        %v3635 = vsel %vm1920, %v3633, %v3634
        %v3636 = vrot.slane %v3537, 2
        %v3637 = vsel %vm1920, %v3634, %v3636
        %v3638 = vrot.slane %v3538, 2
        %v3639 = vrot.slane %v3539, 2
        %v3640 = vsel %vm1920, %v3638, %v3639
        %v3641 = vrot.slane %v3540, 2
        %v3642 = vsel %vm1920, %v3639, %v3641
        %v3643 = vrot.slane %v3541, 2
        %v3644 = vrot.slane %v3542, 2
        %v3645 = vsel %vm1920, %v3643, %v3644
        %v3646 = vrot.slane %v3543, 2
        %v3647 = vsel %vm1920, %v3644, %v3646
        %v3648 = vrot.slane %v3544, 2
        %v3649 = vrot.slane %v3545, 2
        %v3650 = vsel %vm1920, %v3648, %v3649
        %v3651 = vrot.slane %v3546, 2
        %v3652 = vsel %vm1920, %v3649, %v3651
        %v3653 = vrot.slane %v3547, 2
        %v3654 = vrot.slane %v3548, 2
        %v3655 = vsel %vm1920, %v3653, %v3654
        %v3656 = vrot.slane %v3549, 2
        %v3657 = vsel %vm1920, %v3654, %v3656
        %v3658 = vrot.slane %v3550, 2
        %v3659 = vrot.slane %v3551, 2
        %v3660 = vsel %vm1920, %v3658, %v3659
        %v3661 = vrot.slane %v3552, 2
        %v3662 = vsel %vm1920, %v3659, %v3661
        %v3663 = vrot.slane %v3553, 2
        %v3664 = vrot.slane %v3554, 2
        %v3665 = vsel %vm1920, %v3663, %v3664
        %v3666 = vrot.slane %v3555, 2
        %v3667 = vsel %vm1920, %v3664, %v3666
        %v3668 = vrot.slane %v3556, 2
        %v3669 = vrot.slane %v3557, 2
        %v3670 = vsel %vm1920, %v3668, %v3669
        %v3671 = vrot.slane %v3558, 2
        %v3672 = vsel %vm1920, %v3669, %v3671
        %v3673 = vrot.slane %v3559, 2
        %v3674 = vrot.slane %v3560, 2
        %v3675 = vsel %vm1920, %v3673, %v3674
        %v3676 = vrot.slane %v3561, 2
        %v3677 = vsel %vm1920, %v3674, %v3676
        %v3678 = vrot.slane %v3562, 2
        %v3679 = vrot.slane %v3563, 2
        %v3680 = vsel %vm1920, %v3678, %v3679
        %v3681 = vrot.slane %v3564, 2
        %v3682 = vsel %vm1920, %v3679, %v3681
        %v3683 = vrot.slane %v3565, 2
        %v3684 = vrot.slane %v3566, 2
        %v3685 = vsel %vm1920, %v3683, %v3684
        %v3686 = vrot.slane %v3567, 2
        %v3687 = vsel %vm1920, %v3684, %v3686
        %v3688 = vrot.slane %v3568, 2
        %v3689 = vrot.slane %v3569, 2
        %v3690 = vsel %vm1920, %v3688, %v3689
        %v3691 = vrot.slane %v3570, 2
        %v3692 = vsel %vm1920, %v3689, %v3691
        %v3693 = vrot.slane %v3571, 2
        %v3694 = vrot.slane %v3572, 2
        %v3695 = vsel %vm1920, %v3693, %v3694
        %v3696 = vrot.slane %v3573, 2
        %v3697 = vsel %vm1920, %v3694, %v3696
        %v3698 = vrot.slane %v3574, 2
        %v3699 = vrot.slane %v3575, 2
        %v3700 = vsel %vm1920, %v3698, %v3699
        %v3701 = vrot.slane %v3576, 2
        %v3702 = vsel %vm1920, %v3699, %v3701
        %v3703 = vrot.slane %v3577, 2
        %v3704 = vrot.slane %v3578, 2
        %v3705 = vsel %vm1920, %v3703, %v3704
        %v3706 = vrot.slane %v3579, 2
        %v3707 = vsel %vm1920, %v3704, %v3706
        %v3740 = vadd.f32 %v3496, %v3630
        %v3741 = vadd.f32 %v3497, %v3632
        %v3742 = vadd.f32 %v3498, %v3635
        %v3743 = vadd.f32 %v3499, %v3637
        %v3744 = vadd.f32 %v3500, %v3640
        %v3745 = vadd.f32 %v3501, %v3642
        %v3746 = vadd.f32 %v3502, %v3645
        %v3747 = vadd.f32 %v3503, %v3647
        %v3748 = vadd.f32 %v3504, %v3650
        %v3749 = vadd.f32 %v3505, %v3652
        %v3750 = vadd.f32 %v3506, %v3655
        %v3751 = vadd.f32 %v3507, %v3657
        %v3752 = vadd.f32 %v3508, %v3660
        %v3753 = vadd.f32 %v3509, %v3662
        %v3754 = vadd.f32 %v3510, %v3665
        %v3755 = vadd.f32 %v3511, %v3667
        %v3756 = vadd.f32 %v3512, %v3670
        %v3757 = vadd.f32 %v3513, %v3672
        %v3758 = vadd.f32 %v3514, %v3675
        %v3759 = vadd.f32 %v3515, %v3677
        %v3760 = vadd.f32 %v3516, %v3680
        %v3761 = vadd.f32 %v3517, %v3682
        %v3762 = vadd.f32 %v3518, %v3685
        %v3763 = vadd.f32 %v3519, %v3687
        %v3764 = vadd.f32 %v3520, %v3690
        %v3765 = vadd.f32 %v3521, %v3692
        %v3766 = vadd.f32 %v3522, %v3695
        %v3767 = vadd.f32 %v3523, %v3697
        %v3768 = vadd.f32 %v3524, %v3700
        %v3769 = vadd.f32 %v3525, %v3702
        %v3770 = vadd.f32 %v3526, %v3705
        %v3771 = vadd.f32 %v3527, %v3707
        %v3772 = vlaneseq
        %v3773 = vshrl.u32 %v3772, 7
        %v3774 = vsub.s32 1, %v3773
        %v3775 = vrot.slane %v255, %v3774
        %v3776 = vmul.f32 %v497, %v3775
        %v3777 = vmul.f32 %v501, %v3775
        %v3778 = vmul.f32 %v1210, %v3775
        %v3779 = vmul.f32 %v505, %v3775
        %v3780 = vmul.f32 %v509, %v3775
        %v3781 = vmul.f32 %v1214, %v3775
        %v3782 = vmul.f32 %v513, %v3775
        %v3783 = vmul.f32 %v517, %v3775
        %v3784 = vmul.f32 %v1218, %v3775
        %v3785 = vmul.f32 %v521, %v3775
        %v3786 = vmul.f32 %v525, %v3775
        %v3787 = vmul.f32 %v1222, %v3775
        %v3788 = vmul.f32 %v529, %v3775
        %v3789 = vmul.f32 %v533, %v3775
        %v3790 = vmul.f32 %v1226, %v3775
        %v3791 = vmul.f32 %v537, %v3775
        %v3792 = vmul.f32 %v541, %v3775
        %v3793 = vmul.f32 %v1230, %v3775
        %v3794 = vmul.f32 %v545, %v3775
        %v3795 = vmul.f32 %v549, %v3775
        %v3796 = vmul.f32 %v1234, %v3775
        %v3797 = vmul.f32 %v553, %v3775
        %v3798 = vmul.f32 %v557, %v3775
        %v3799 = vmul.f32 %v1238, %v3775
        %v3800 = vmul.f32 %v561, %v3775
        %v3801 = vmul.f32 %v565, %v3775
        %v3802 = vmul.f32 %v1242, %v3775
        %v3803 = vmul.f32 %v569, %v3775
        %v3804 = vmul.f32 %v573, %v3775
        %v3805 = vmul.f32 %v1246, %v3775
        %v3806 = vmul.f32 %v577, %v3775
        %v3807 = vmul.f32 %v581, %v3775
        %v3808 = vmul.f32 %v1250, %v3775
        %v3809 = vmul.f32 %v585, %v3775
        %v3810 = vmul.f32 %v589, %v3775
        %v3811 = vmul.f32 %v1254, %v3775
        %v3812 = vmul.f32 %v593, %v3775
        %v3813 = vmul.f32 %v597, %v3775
        %v3814 = vmul.f32 %v1258, %v3775
        %v3815 = vmul.f32 %v601, %v3775
        %v3816 = vmul.f32 %v605, %v3775
        %v3817 = vmul.f32 %v1262, %v3775
        %v3818 = vmul.f32 %v609, %v3775
        %v3819 = vmul.f32 %v613, %v3775
        %v3820 = vmul.f32 %v1266, %v3775
        %v3821 = vmul.f32 %v2633, %v3775
        %v3822 = vmul.f32 %v2637, %v3775
        %v3823 = vmul.f32 %v3034, %v3775
        %v3872 = vrot.slane %v3776, 2
        %v3873 = vrot.slane %v3777, 2
        %v3874 = vsel %vm1920, %v3872, %v3873
        %v3875 = vrot.slane %v3778, 2
        %v3876 = vsel %vm1920, %v3873, %v3875
        %v3877 = vrot.slane %v3779, 2
        %v3878 = vrot.slane %v3780, 2
        %v3879 = vsel %vm1920, %v3877, %v3878
        %v3880 = vrot.slane %v3781, 2
        %v3881 = vsel %vm1920, %v3878, %v3880
        %v3882 = vrot.slane %v3782, 2
        %v3883 = vrot.slane %v3783, 2
        %v3884 = vsel %vm1920, %v3882, %v3883
        %v3885 = vrot.slane %v3784, 2
        %v3886 = vsel %vm1920, %v3883, %v3885
        %v3887 = vrot.slane %v3785, 2
        %v3888 = vrot.slane %v3786, 2
        %v3889 = vsel %vm1920, %v3887, %v3888
        %v3890 = vrot.slane %v3787, 2
        %v3891 = vsel %vm1920, %v3888, %v3890
        %v3892 = vrot.slane %v3788, 2
        %v3893 = vrot.slane %v3789, 2
        %v3894 = vsel %vm1920, %v3892, %v3893
        %v3895 = vrot.slane %v3790, 2
        %v3896 = vsel %vm1920, %v3893, %v3895
        %v3897 = vrot.slane %v3791, 2
        %v3898 = vrot.slane %v3792, 2
        %v3899 = vsel %vm1920, %v3897, %v3898
        %v3900 = vrot.slane %v3793, 2
        %v3901 = vsel %vm1920, %v3898, %v3900
        %v3902 = vrot.slane %v3794, 2
        %v3903 = vrot.slane %v3795, 2
        %v3904 = vsel %vm1920, %v3902, %v3903
        %v3905 = vrot.slane %v3796, 2
        %v3906 = vsel %vm1920, %v3903, %v3905
        %v3907 = vrot.slane %v3797, 2
        %v3908 = vrot.slane %v3798, 2
        %v3909 = vsel %vm1920, %v3907, %v3908
        %v3910 = vrot.slane %v3799, 2
        %v3911 = vsel %vm1920, %v3908, %v3910
        %v3912 = vrot.slane %v3800, 2
        %v3913 = vrot.slane %v3801, 2
        %v3914 = vsel %vm1920, %v3912, %v3913
        %v3915 = vrot.slane %v3802, 2
        %v3916 = vsel %vm1920, %v3913, %v3915
        %v3917 = vrot.slane %v3803, 2
        %v3918 = vrot.slane %v3804, 2
        %v3919 = vsel %vm1920, %v3917, %v3918
        %v3920 = vrot.slane %v3805, 2
        %v3921 = vsel %vm1920, %v3918, %v3920
        %v3922 = vrot.slane %v3806, 2
        %v3923 = vrot.slane %v3807, 2
        %v3924 = vsel %vm1920, %v3922, %v3923
        %v3925 = vrot.slane %v3808, 2
        %v3926 = vsel %vm1920, %v3923, %v3925
        %v3927 = vrot.slane %v3809, 2
        %v3928 = vrot.slane %v3810, 2
        %v3929 = vsel %vm1920, %v3927, %v3928
        %v3930 = vrot.slane %v3811, 2
        %v3931 = vsel %vm1920, %v3928, %v3930
        %v3932 = vrot.slane %v3812, 2
        %v3933 = vrot.slane %v3813, 2
        %v3934 = vsel %vm1920, %v3932, %v3933
        %v3935 = vrot.slane %v3814, 2
        %v3936 = vsel %vm1920, %v3933, %v3935
        %v3937 = vrot.slane %v3815, 2
        %v3938 = vrot.slane %v3816, 2
        %v3939 = vsel %vm1920, %v3937, %v3938
        %v3940 = vrot.slane %v3817, 2
        %v3941 = vsel %vm1920, %v3938, %v3940
        %v3942 = vrot.slane %v3818, 2
        %v3943 = vrot.slane %v3819, 2
        %v3944 = vsel %vm1920, %v3942, %v3943
        %v3945 = vrot.slane %v3820, 2
        %v3946 = vsel %vm1920, %v3943, %v3945
        %v3947 = vrot.slane %v3821, 2
        %v3948 = vrot.slane %v3822, 2
        %v3949 = vsel %vm1920, %v3947, %v3948
        %v3950 = vrot.slane %v3823, 2
        %v3951 = vsel %vm1920, %v3948, %v3950
        %v3984 = vadd.f32 %v3740, %v3874
        %v3985 = vadd.f32 %v3741, %v3876
        %v3986 = vadd.f32 %v3742, %v3879
        %v3987 = vadd.f32 %v3743, %v3881
        %v3988 = vadd.f32 %v3744, %v3884
        %v3989 = vadd.f32 %v3745, %v3886
        %v3990 = vadd.f32 %v3746, %v3889
        %v3991 = vadd.f32 %v3747, %v3891
        %v3992 = vadd.f32 %v3748, %v3894
        %v3993 = vadd.f32 %v3749, %v3896
        %v3994 = vadd.f32 %v3750, %v3899
        %v3995 = vadd.f32 %v3751, %v3901
        %v3996 = vadd.f32 %v3752, %v3904
        %v3997 = vadd.f32 %v3753, %v3906
        %v3998 = vadd.f32 %v3754, %v3909
        %v3999 = vadd.f32 %v3755, %v3911
        %v4000 = vadd.f32 %v3756, %v3914
        %v4001 = vadd.f32 %v3757, %v3916
        %v4002 = vadd.f32 %v3758, %v3919
        %v4003 = vadd.f32 %v3759, %v3921
        %v4004 = vadd.f32 %v3760, %v3924
        %v4005 = vadd.f32 %v3761, %v3926
        %v4006 = vadd.f32 %v3762, %v3929
        %v4007 = vadd.f32 %v3763, %v3931
        %v4008 = vadd.f32 %v3764, %v3934
        %v4009 = vadd.f32 %v3765, %v3936
        %v4010 = vadd.f32 %v3766, %v3939
        %v4011 = vadd.f32 %v3767, %v3941
        %v4012 = vadd.f32 %v3768, %v3944
        %v4013 = vadd.f32 %v3769, %v3946
        %v4014 = vadd.f32 %v3770, %v3949
        %v4015 = vadd.f32 %v3771, %v3951
        %v4016 = vlaneseq
        %v4017 = vshrl.u32 %v4016, 7
        %v4018 = vsub.s32 2, %v4017
        %v4019 = vrot.slane %v255, %v4018
        %v4020 = vmul.f32 %v693, %v4019
        %v4021 = vmul.f32 %v697, %v4019
        %v4022 = vmul.f32 %v1518, %v4019
        %v4023 = vmul.f32 %v701, %v4019
        %v4024 = vmul.f32 %v705, %v4019
        %v4025 = vmul.f32 %v1522, %v4019
        %v4026 = vmul.f32 %v709, %v4019
        %v4027 = vmul.f32 %v713, %v4019
        %v4028 = vmul.f32 %v1526, %v4019
        %v4029 = vmul.f32 %v717, %v4019
        %v4030 = vmul.f32 %v721, %v4019
        %v4031 = vmul.f32 %v1530, %v4019
        %v4032 = vmul.f32 %v725, %v4019
        %v4033 = vmul.f32 %v729, %v4019
        %v4034 = vmul.f32 %v1534, %v4019
        %v4035 = vmul.f32 %v733, %v4019
        %v4036 = vmul.f32 %v737, %v4019
        %v4037 = vmul.f32 %v1538, %v4019
        %v4038 = vmul.f32 %v741, %v4019
        %v4039 = vmul.f32 %v745, %v4019
        %v4040 = vmul.f32 %v1542, %v4019
        %v4041 = vmul.f32 %v749, %v4019
        %v4042 = vmul.f32 %v753, %v4019
        %v4043 = vmul.f32 %v1546, %v4019
        %v4044 = vmul.f32 %v757, %v4019
        %v4045 = vmul.f32 %v761, %v4019
        %v4046 = vmul.f32 %v1550, %v4019
        %v4047 = vmul.f32 %v765, %v4019
        %v4048 = vmul.f32 %v769, %v4019
        %v4049 = vmul.f32 %v1554, %v4019
        %v4050 = vmul.f32 %v773, %v4019
        %v4051 = vmul.f32 %v777, %v4019
        %v4052 = vmul.f32 %v1558, %v4019
        %v4053 = vmul.f32 %v781, %v4019
        %v4054 = vmul.f32 %v785, %v4019
        %v4055 = vmul.f32 %v1562, %v4019
        %v4056 = vmul.f32 %v789, %v4019
        %v4057 = vmul.f32 %v793, %v4019
        %v4058 = vmul.f32 %v1566, %v4019
        %v4059 = vmul.f32 %v797, %v4019
        %v4060 = vmul.f32 %v801, %v4019
        %v4061 = vmul.f32 %v1570, %v4019
        %v4062 = vmul.f32 %v805, %v4019
        %v4063 = vmul.f32 %v809, %v4019
        %v4064 = vmul.f32 %v1574, %v4019
        %v4065 = vmul.f32 %v2709, %v4019
        %v4066 = vmul.f32 %v2713, %v4019
        %v4067 = vmul.f32 %v3282, %v4019
        %v4116 = vrot.slane %v4020, 2
        %v4117 = vrot.slane %v4021, 2
        %v4118 = vsel %vm1920, %v4116, %v4117
        %v4119 = vrot.slane %v4022, 2
        %v4120 = vsel %vm1920, %v4117, %v4119
        %v4121 = vrot.slane %v4023, 2
        %v4122 = vrot.slane %v4024, 2
        %v4123 = vsel %vm1920, %v4121, %v4122
        %v4124 = vrot.slane %v4025, 2
        %v4125 = vsel %vm1920, %v4122, %v4124
        %v4126 = vrot.slane %v4026, 2
        %v4127 = vrot.slane %v4027, 2
        %v4128 = vsel %vm1920, %v4126, %v4127
        %v4129 = vrot.slane %v4028, 2
        %v4130 = vsel %vm1920, %v4127, %v4129
        %v4131 = vrot.slane %v4029, 2
        %v4132 = vrot.slane %v4030, 2
        %v4133 = vsel %vm1920, %v4131, %v4132
        %v4134 = vrot.slane %v4031, 2
        %v4135 = vsel %vm1920, %v4132, %v4134
        %v4136 = vrot.slane %v4032, 2
        %v4137 = vrot.slane %v4033, 2
        %v4138 = vsel %vm1920, %v4136, %v4137
        %v4139 = vrot.slane %v4034, 2
        %v4140 = vsel %vm1920, %v4137, %v4139
        %v4141 = vrot.slane %v4035, 2
        %v4142 = vrot.slane %v4036, 2
        %v4143 = vsel %vm1920, %v4141, %v4142
        %v4144 = vrot.slane %v4037, 2
        %v4145 = vsel %vm1920, %v4142, %v4144
        %v4146 = vrot.slane %v4038, 2
        %v4147 = vrot.slane %v4039, 2
        %v4148 = vsel %vm1920, %v4146, %v4147
        %v4149 = vrot.slane %v4040, 2
        %v4150 = vsel %vm1920, %v4147, %v4149
        %v4151 = vrot.slane %v4041, 2
        %v4152 = vrot.slane %v4042, 2
        %v4153 = vsel %vm1920, %v4151, %v4152
        %v4154 = vrot.slane %v4043, 2
        %v4155 = vsel %vm1920, %v4152, %v4154
        %v4156 = vrot.slane %v4044, 2
        %v4157 = vrot.slane %v4045, 2
        %v4158 = vsel %vm1920, %v4156, %v4157
        %v4159 = vrot.slane %v4046, 2
        %v4160 = vsel %vm1920, %v4157, %v4159
        %v4161 = vrot.slane %v4047, 2
        %v4162 = vrot.slane %v4048, 2
        %v4163 = vsel %vm1920, %v4161, %v4162
        %v4164 = vrot.slane %v4049, 2
        %v4165 = vsel %vm1920, %v4162, %v4164
        %v4166 = vrot.slane %v4050, 2
        %v4167 = vrot.slane %v4051, 2
        %v4168 = vsel %vm1920, %v4166, %v4167
        %v4169 = vrot.slane %v4052, 2
        %v4170 = vsel %vm1920, %v4167, %v4169
        %v4171 = vrot.slane %v4053, 2
        %v4172 = vrot.slane %v4054, 2
        %v4173 = vsel %vm1920, %v4171, %v4172
        %v4174 = vrot.slane %v4055, 2
        %v4175 = vsel %vm1920, %v4172, %v4174
        %v4176 = vrot.slane %v4056, 2
        %v4177 = vrot.slane %v4057, 2
        %v4178 = vsel %vm1920, %v4176, %v4177
        %v4179 = vrot.slane %v4058, 2
        %v4180 = vsel %vm1920, %v4177, %v4179
        %v4181 = vrot.slane %v4059, 2
        %v4182 = vrot.slane %v4060, 2
        %v4183 = vsel %vm1920, %v4181, %v4182
        %v4184 = vrot.slane %v4061, 2
        %v4185 = vsel %vm1920, %v4182, %v4184
        %v4186 = vrot.slane %v4062, 2
        %v4187 = vrot.slane %v4063, 2
        %v4188 = vsel %vm1920, %v4186, %v4187
        %v4189 = vrot.slane %v4064, 2
        %v4190 = vsel %vm1920, %v4187, %v4189
        %v4191 = vrot.slane %v4065, 2
        %v4192 = vrot.slane %v4066, 2
        %v4193 = vsel %vm1920, %v4191, %v4192
        %v4194 = vrot.slane %v4067, 2
        %v4195 = vsel %vm1920, %v4192, %v4194
        %v4228 = vadd.f32 %v3984, %v4118
        %v4229 = vadd.f32 %v3985, %v4120
        %v4230 = vadd.f32 %v3986, %v4123
        %v4231 = vadd.f32 %v3987, %v4125
        %v4232 = vadd.f32 %v3988, %v4128
        %v4233 = vadd.f32 %v3989, %v4130
        %v4234 = vadd.f32 %v3990, %v4133
        %v4235 = vadd.f32 %v3991, %v4135
        %v4236 = vadd.f32 %v3992, %v4138
        %v4237 = vadd.f32 %v3993, %v4140
        %v4238 = vadd.f32 %v3994, %v4143
        %v4239 = vadd.f32 %v3995, %v4145
        %v4240 = vadd.f32 %v3996, %v4148
        %v4241 = vadd.f32 %v3997, %v4150
        %v4242 = vadd.f32 %v3998, %v4153
        %v4243 = vadd.f32 %v3999, %v4155
        %v4244 = vadd.f32 %v4000, %v4158
        %v4245 = vadd.f32 %v4001, %v4160
        %v4246 = vadd.f32 %v4002, %v4163
        %v4247 = vadd.f32 %v4003, %v4165
        %v4248 = vadd.f32 %v4004, %v4168
        %v4249 = vadd.f32 %v4005, %v4170
        %v4250 = vadd.f32 %v4006, %v4173
        %v4251 = vadd.f32 %v4007, %v4175
        %v4252 = vadd.f32 %v4008, %v4178
        %v4253 = vadd.f32 %v4009, %v4180
        %v4254 = vadd.f32 %v4010, %v4183
        %v4255 = vadd.f32 %v4011, %v4185
        %v4256 = vadd.f32 %v4012, %v4188
        %v4257 = vadd.f32 %v4013, %v4190
        %v4258 = vadd.f32 %v4014, %v4193
        %v4259 = vadd.f32 %v4015, %v4195
        %4261 = vset.pattern.permute.xlu0 0
        %4262 = vperm.xlu0 %4261, %v247
        %v4263 = vpop.permute.xlu0 %4262
        %4266 = vset.pattern.permute.xlu0 0
        %4267 = vperm.xlu0 %4266, %v248
        %v4268 = vpop.permute.xlu0 %4267
        %v4270 = vlaneseq
        %v4271 = vshrl.u32 %v4270, 7
        %v4272 = vsub.s32 0, %v4271
        %v4273 = vrot.slane %v256, %v4272
        %v4274 = vmul.f32 %v282, %v4273
        %v4275 = vmul.f32 %v287, %v4273
        %v4276 = vmul.f32 %v292, %v4273
        %v4277 = vmul.f32 %v297, %v4273
        %v4278 = vmul.f32 %v302, %v4273
        %v4279 = vmul.f32 %v307, %v4273
        %v4280 = vmul.f32 %v312, %v4273
        %v4281 = vmul.f32 %v317, %v4273
        %v4282 = vmul.f32 %v322, %v4273
        %v4283 = vmul.f32 %v327, %v4273
        %v4284 = vmul.f32 %v332, %v4273
        %v4285 = vmul.f32 %v337, %v4273
        %v4286 = vmul.f32 %v342, %v4273
        %v4287 = vmul.f32 %v347, %v4273
        %v4288 = vmul.f32 %v352, %v4273
        %v4289 = vmul.f32 %v357, %v4273
        %v4290 = vmul.f32 %v362, %v4273
        %v4291 = vmul.f32 %v367, %v4273
        %v4292 = vmul.f32 %v372, %v4273
        %v4293 = vmul.f32 %v377, %v4273
        %v4294 = vmul.f32 %v382, %v4273
        %v4295 = vmul.f32 %v387, %v4273
        %v4296 = vmul.f32 %v392, %v4273
        %v4297 = vmul.f32 %v397, %v4273
        %v4298 = vmul.f32 %v402, %v4273
        %v4299 = vmul.f32 %v407, %v4273
        %v4300 = vmul.f32 %v412, %v4273
        %v4301 = vmul.f32 %v417, %v4273
        %v4302 = vmul.f32 %v2556, %v4273
        %v4303 = vmul.f32 %v2561, %v4273
        %v4304 = vmul.f32 %v4263, %v4273
        %v4305 = vmul.f32 %v4268, %v4273
        %v4306 = vadd.f32 %v4228, %v4274
        %v4307 = vadd.f32 %v4229, %v4275
        %v4308 = vadd.f32 %v4230, %v4276
        %v4309 = vadd.f32 %v4231, %v4277
        %v4310 = vadd.f32 %v4232, %v4278
        %v4311 = vadd.f32 %v4233, %v4279
        %v4312 = vadd.f32 %v4234, %v4280
        %v4313 = vadd.f32 %v4235, %v4281
        %v4314 = vadd.f32 %v4236, %v4282
        %v4315 = vadd.f32 %v4237, %v4283
        %v4316 = vadd.f32 %v4238, %v4284
        %v4317 = vadd.f32 %v4239, %v4285
        %v4318 = vadd.f32 %v4240, %v4286
        %v4319 = vadd.f32 %v4241, %v4287
        %v4320 = vadd.f32 %v4242, %v4288
        %v4321 = vadd.f32 %v4243, %v4289
        %v4322 = vadd.f32 %v4244, %v4290
        %v4323 = vadd.f32 %v4245, %v4291
        %v4324 = vadd.f32 %v4246, %v4292
        %v4325 = vadd.f32 %v4247, %v4293
        %v4326 = vadd.f32 %v4248, %v4294
        %v4327 = vadd.f32 %v4249, %v4295
        %v4328 = vadd.f32 %v4250, %v4296
        %v4329 = vadd.f32 %v4251, %v4297
        %v4330 = vadd.f32 %v4252, %v4298
        %v4331 = vadd.f32 %v4253, %v4299
        %v4332 = vadd.f32 %v4254, %v4300
        %v4333 = vadd.f32 %v4255, %v4301
        %v4334 = vadd.f32 %v4256, %v4302
        %v4335 = vadd.f32 %v4257, %v4303
        %v4336 = vadd.f32 %v4258, %v4304
        %v4337 = vadd.f32 %v4259, %v4305
        %4338 = vset.pattern.permute.xlu0 1
        %4339 = vperm.xlu0 %4338, %v247
        %v4340 = vpop.permute.xlu0 %4339
        %4342 = vset.pattern.permute.xlu0 1
        %4343 = vperm.xlu0 %4342, %v248
        %v4344 = vpop.permute.xlu0 %4343
        %v4346 = vlaneseq
        %v4347 = vshrl.u32 %v4346, 7
        %v4348 = vsub.s32 1, %v4347
        %v4349 = vrot.slane %v256, %v4348
        %v4350 = vmul.f32 %v505, %v4349
        %v4351 = vmul.f32 %v509, %v4349
        %v4352 = vmul.f32 %v513, %v4349
        %v4353 = vmul.f32 %v517, %v4349
        %v4354 = vmul.f32 %v521, %v4349
        %v4355 = vmul.f32 %v525, %v4349
        %v4356 = vmul.f32 %v529, %v4349
        %v4357 = vmul.f32 %v533, %v4349
        %v4358 = vmul.f32 %v537, %v4349
        %v4359 = vmul.f32 %v541, %v4349
        %v4360 = vmul.f32 %v545, %v4349
        %v4361 = vmul.f32 %v549, %v4349
        %v4362 = vmul.f32 %v553, %v4349
        %v4363 = vmul.f32 %v557, %v4349
        %v4364 = vmul.f32 %v561, %v4349
        %v4365 = vmul.f32 %v565, %v4349
        %v4366 = vmul.f32 %v569, %v4349
        %v4367 = vmul.f32 %v573, %v4349
        %v4368 = vmul.f32 %v577, %v4349
        %v4369 = vmul.f32 %v581, %v4349
        %v4370 = vmul.f32 %v585, %v4349
        %v4371 = vmul.f32 %v589, %v4349
        %v4372 = vmul.f32 %v593, %v4349
        %v4373 = vmul.f32 %v597, %v4349
        %v4374 = vmul.f32 %v601, %v4349
        %v4375 = vmul.f32 %v605, %v4349
        %v4376 = vmul.f32 %v609, %v4349
        %v4377 = vmul.f32 %v613, %v4349
        %v4378 = vmul.f32 %v2633, %v4349
        %v4379 = vmul.f32 %v2637, %v4349
        %v4380 = vmul.f32 %v4340, %v4349
        %v4381 = vmul.f32 %v4344, %v4349
        %v4382 = vadd.f32 %v4306, %v4350
        %v4383 = vadd.f32 %v4307, %v4351
        %v4384 = vadd.f32 %v4308, %v4352
        %v4385 = vadd.f32 %v4309, %v4353
        %v4386 = vadd.f32 %v4310, %v4354
        %v4387 = vadd.f32 %v4311, %v4355
        %v4388 = vadd.f32 %v4312, %v4356
        %v4389 = vadd.f32 %v4313, %v4357
        %v4390 = vadd.f32 %v4314, %v4358
        %v4391 = vadd.f32 %v4315, %v4359
        %v4392 = vadd.f32 %v4316, %v4360
        %v4393 = vadd.f32 %v4317, %v4361
        %v4394 = vadd.f32 %v4318, %v4362
        %v4395 = vadd.f32 %v4319, %v4363
        %v4396 = vadd.f32 %v4320, %v4364
        %v4397 = vadd.f32 %v4321, %v4365
        %v4398 = vadd.f32 %v4322, %v4366
        %v4399 = vadd.f32 %v4323, %v4367
        %v4400 = vadd.f32 %v4324, %v4368
        %v4401 = vadd.f32 %v4325, %v4369
        %v4402 = vadd.f32 %v4326, %v4370
        %v4403 = vadd.f32 %v4327, %v4371
        %v4404 = vadd.f32 %v4328, %v4372
        %v4405 = vadd.f32 %v4329, %v4373
        %v4406 = vadd.f32 %v4330, %v4374
        %v4407 = vadd.f32 %v4331, %v4375
        %v4408 = vadd.f32 %v4332, %v4376
        %v4409 = vadd.f32 %v4333, %v4377
        %v4410 = vadd.f32 %v4334, %v4378
        %v4411 = vadd.f32 %v4335, %v4379
        %v4412 = vadd.f32 %v4336, %v4380
        %v4413 = vadd.f32 %v4337, %v4381
        %4414 = vset.pattern.permute.xlu0 2
        %4415 = vperm.xlu0 %4414, %v247
        %v4416 = vpop.permute.xlu0 %4415
        %4418 = vset.pattern.permute.xlu0 2
        %4419 = vperm.xlu0 %4418, %v248
        %v4420 = vpop.permute.xlu0 %4419
        %v4422 = vlaneseq
        %v4423 = vshrl.u32 %v4422, 7
        %v4424 = vsub.s32 2, %v4423
        %v4425 = vrot.slane %v256, %v4424
        %v4426 = vmul.f32 %v701, %v4425
        %v4427 = vmul.f32 %v705, %v4425
        %v4428 = vmul.f32 %v709, %v4425
        %v4429 = vmul.f32 %v713, %v4425
        %v4430 = vmul.f32 %v717, %v4425
        %v4431 = vmul.f32 %v721, %v4425
        %v4432 = vmul.f32 %v725, %v4425
        %v4433 = vmul.f32 %v729, %v4425
        %v4434 = vmul.f32 %v733, %v4425
        %v4435 = vmul.f32 %v737, %v4425
        %v4436 = vmul.f32 %v741, %v4425
        %v4437 = vmul.f32 %v745, %v4425
        %v4438 = vmul.f32 %v749, %v4425
        %v4439 = vmul.f32 %v753, %v4425
        %v4440 = vmul.f32 %v757, %v4425
        %v4441 = vmul.f32 %v761, %v4425
        %v4442 = vmul.f32 %v765, %v4425
        %v4443 = vmul.f32 %v769, %v4425
        %v4444 = vmul.f32 %v773, %v4425
        %v4445 = vmul.f32 %v777, %v4425
        %v4446 = vmul.f32 %v781, %v4425
        %v4447 = vmul.f32 %v785, %v4425
        %v4448 = vmul.f32 %v789, %v4425
        %v4449 = vmul.f32 %v793, %v4425
        %v4450 = vmul.f32 %v797, %v4425
        %v4451 = vmul.f32 %v801, %v4425
        %v4452 = vmul.f32 %v805, %v4425
        %v4453 = vmul.f32 %v809, %v4425
        %v4454 = vmul.f32 %v2709, %v4425
        %v4455 = vmul.f32 %v2713, %v4425
        %v4456 = vmul.f32 %v4416, %v4425
        %v4457 = vmul.f32 %v4420, %v4425
        %v4458 = vadd.f32 %v4382, %v4426
        %v4459 = vadd.f32 %v4383, %v4427
        %v4460 = vadd.f32 %v4384, %v4428
        %v4461 = vadd.f32 %v4385, %v4429
        %v4462 = vadd.f32 %v4386, %v4430
        %v4463 = vadd.f32 %v4387, %v4431
        %v4464 = vadd.f32 %v4388, %v4432
        %v4465 = vadd.f32 %v4389, %v4433
        %v4466 = vadd.f32 %v4390, %v4434
        %v4467 = vadd.f32 %v4391, %v4435
        %v4468 = vadd.f32 %v4392, %v4436
        %v4469 = vadd.f32 %v4393, %v4437
        %v4470 = vadd.f32 %v4394, %v4438
        %v4471 = vadd.f32 %v4395, %v4439
        %v4472 = vadd.f32 %v4396, %v4440
        %v4473 = vadd.f32 %v4397, %v4441
        %v4474 = vadd.f32 %v4398, %v4442
        %v4475 = vadd.f32 %v4399, %v4443
        %v4476 = vadd.f32 %v4400, %v4444
        %v4477 = vadd.f32 %v4401, %v4445
        %v4478 = vadd.f32 %v4402, %v4446
        %v4479 = vadd.f32 %v4403, %v4447
        %v4480 = vadd.f32 %v4404, %v4448
        %v4481 = vadd.f32 %v4405, %v4449
        %v4482 = vadd.f32 %v4406, %v4450
        %v4483 = vadd.f32 %v4407, %v4451
        %v4484 = vadd.f32 %v4408, %v4452
        %v4485 = vadd.f32 %v4409, %v4453
        %v4486 = vadd.f32 %v4410, %v4454
        %v4487 = vadd.f32 %v4411, %v4455
        %v4488 = vadd.f32 %v4412, %v4456
        %v4489 = vadd.f32 %v4413, %v4457
        %4491 = vset.pattern.permute.xlu0 0
        %4492 = vperm.xlu0 %4491, %v249
        %v4493 = vpop.permute.xlu0 %4492
        %v4495 = vlaneseq
        %v4496 = vshrl.u32 %v4495, 7
        %v4497 = vsub.s32 0, %v4496
        %v4498 = vrot.slane %v257, %v4497
        %v4499 = vmul.f32 %v282, %v4498
        %v4500 = vmul.f32 %v287, %v4498
        %v4501 = vmul.f32 %v892, %v4498
        %v4502 = vmul.f32 %v292, %v4498
        %v4503 = vmul.f32 %v297, %v4498
        %v4504 = vmul.f32 %v897, %v4498
        %v4505 = vmul.f32 %v302, %v4498
        %v4506 = vmul.f32 %v307, %v4498
        %v4507 = vmul.f32 %v902, %v4498
        %v4508 = vmul.f32 %v312, %v4498
        %v4509 = vmul.f32 %v317, %v4498
        %v4510 = vmul.f32 %v907, %v4498
        %v4511 = vmul.f32 %v322, %v4498
        %v4512 = vmul.f32 %v327, %v4498
        %v4513 = vmul.f32 %v912, %v4498
        %v4514 = vmul.f32 %v332, %v4498
        %v4515 = vmul.f32 %v337, %v4498
        %v4516 = vmul.f32 %v917, %v4498
        %v4517 = vmul.f32 %v342, %v4498
        %v4518 = vmul.f32 %v347, %v4498
        %v4519 = vmul.f32 %v922, %v4498
        %v4520 = vmul.f32 %v352, %v4498
        %v4521 = vmul.f32 %v357, %v4498
        %v4522 = vmul.f32 %v927, %v4498
        %v4523 = vmul.f32 %v362, %v4498
        %v4524 = vmul.f32 %v367, %v4498
        %v4525 = vmul.f32 %v932, %v4498
        %v4526 = vmul.f32 %v372, %v4498
        %v4527 = vmul.f32 %v377, %v4498
        %v4528 = vmul.f32 %v937, %v4498
        %v4529 = vmul.f32 %v382, %v4498
        %v4530 = vmul.f32 %v387, %v4498
        %v4531 = vmul.f32 %v942, %v4498
        %v4532 = vmul.f32 %v392, %v4498
        %v4533 = vmul.f32 %v397, %v4498
        %v4534 = vmul.f32 %v947, %v4498
        %v4535 = vmul.f32 %v402, %v4498
        %v4536 = vmul.f32 %v407, %v4498
        %v4537 = vmul.f32 %v952, %v4498
        %v4538 = vmul.f32 %v412, %v4498
        %v4539 = vmul.f32 %v417, %v4498
        %v4540 = vmul.f32 %v957, %v4498
        %v4541 = vmul.f32 %v2556, %v4498
        %v4542 = vmul.f32 %v2561, %v4498
        %v4543 = vmul.f32 %v2786, %v4498
        %v4544 = vmul.f32 %v4263, %v4498
        %v4545 = vmul.f32 %v4268, %v4498
        %v4546 = vmul.f32 %v4493, %v4498
        %v4595 = vrot.slane %v4499, 1
        %v4596 = vrot.slane %v4500, 1
        %v4597 = vsel %vm1059, %v4595, %v4596
        %v4598 = vrot.slane %v4501, 1
        %v4599 = vsel %vm1059, %v4596, %v4598
        %v4600 = vrot.slane %v4502, 1
        %v4601 = vrot.slane %v4503, 1
        %v4602 = vsel %vm1059, %v4600, %v4601
        %v4603 = vrot.slane %v4504, 1
        %v4604 = vsel %vm1059, %v4601, %v4603
        %v4605 = vrot.slane %v4505, 1
        %v4606 = vrot.slane %v4506, 1
        %v4607 = vsel %vm1059, %v4605, %v4606
        %v4608 = vrot.slane %v4507, 1
        %v4609 = vsel %vm1059, %v4606, %v4608
        %v4610 = vrot.slane %v4508, 1
        %v4611 = vrot.slane %v4509, 1
        %v4612 = vsel %vm1059, %v4610, %v4611
        %v4613 = vrot.slane %v4510, 1
        %v4614 = vsel %vm1059, %v4611, %v4613
        %v4615 = vrot.slane %v4511, 1
        %v4616 = vrot.slane %v4512, 1
        %v4617 = vsel %vm1059, %v4615, %v4616
        %v4618 = vrot.slane %v4513, 1
        %v4619 = vsel %vm1059, %v4616, %v4618
        %v4620 = vrot.slane %v4514, 1
        %v4621 = vrot.slane %v4515, 1
        %v4622 = vsel %vm1059, %v4620, %v4621
        %v4623 = vrot.slane %v4516, 1
        %v4624 = vsel %vm1059, %v4621, %v4623
        %v4625 = vrot.slane %v4517, 1
        %v4626 = vrot.slane %v4518, 1
        %v4627 = vsel %vm1059, %v4625, %v4626
        %v4628 = vrot.slane %v4519, 1
        %v4629 = vsel %vm1059, %v4626, %v4628
        %v4630 = vrot.slane %v4520, 1
        %v4631 = vrot.slane %v4521, 1
        %v4632 = vsel %vm1059, %v4630, %v4631
        %v4633 = vrot.slane %v4522, 1
        %v4634 = vsel %vm1059, %v4631, %v4633
        %v4635 = vrot.slane %v4523, 1
        %v4636 = vrot.slane %v4524, 1
        %v4637 = vsel %vm1059, %v4635, %v4636
        %v4638 = vrot.slane %v4525, 1
        %v4639 = vsel %vm1059, %v4636, %v4638
        %v4640 = vrot.slane %v4526, 1
        %v4641 = vrot.slane %v4527, 1
        %v4642 = vsel %vm1059, %v4640, %v4641
        %v4643 = vrot.slane %v4528, 1
        %v4644 = vsel %vm1059, %v4641, %v4643
        %v4645 = vrot.slane %v4529, 1
        %v4646 = vrot.slane %v4530, 1
        %v4647 = vsel %vm1059, %v4645, %v4646
        %v4648 = vrot.slane %v4531, 1
        %v4649 = vsel %vm1059, %v4646, %v4648
        %v4650 = vrot.slane %v4532, 1
        %v4651 = vrot.slane %v4533, 1
        %v4652 = vsel %vm1059, %v4650, %v4651
        %v4653 = vrot.slane %v4534, 1
        %v4654 = vsel %vm1059, %v4651, %v4653
        %v4655 = vrot.slane %v4535, 1
        %v4656 = vrot.slane %v4536, 1
        %v4657 = vsel %vm1059, %v4655, %v4656
        %v4658 = vrot.slane %v4537, 1
        %v4659 = vsel %vm1059, %v4656, %v4658
        %v4660 = vrot.slane %v4538, 1
        %v4661 = vrot.slane %v4539, 1
        %v4662 = vsel %vm1059, %v4660, %v4661
        %v4663 = vrot.slane %v4540, 1
        %v4664 = vsel %vm1059, %v4661, %v4663
        %v4665 = vrot.slane %v4541, 1
        %v4666 = vrot.slane %v4542, 1
        %v4667 = vsel %vm1059, %v4665, %v4666
        %v4668 = vrot.slane %v4543, 1
        %v4669 = vsel %vm1059, %v4666, %v4668
        %v4670 = vrot.slane %v4544, 1
        %v4671 = vrot.slane %v4545, 1
        %v4672 = vsel %vm1059, %v4670, %v4671
        %v4673 = vrot.slane %v4546, 1
        %v4674 = vsel %vm1059, %v4671, %v4673
        %v4707 = vadd.f32 %v4458, %v4597
        %v4708 = vadd.f32 %v4459, %v4599
        %v4709 = vadd.f32 %v4460, %v4602
        %v4710 = vadd.f32 %v4461, %v4604
        %v4711 = vadd.f32 %v4462, %v4607
        %v4712 = vadd.f32 %v4463, %v4609
        %v4713 = vadd.f32 %v4464, %v4612
        %v4714 = vadd.f32 %v4465, %v4614
        %v4715 = vadd.f32 %v4466, %v4617
        %v4716 = vadd.f32 %v4467, %v4619
        %v4717 = vadd.f32 %v4468, %v4622
        %v4718 = vadd.f32 %v4469, %v4624
        %v4719 = vadd.f32 %v4470, %v4627
        %v4720 = vadd.f32 %v4471, %v4629
        %v4721 = vadd.f32 %v4472, %v4632
        %v4722 = vadd.f32 %v4473, %v4634
        %v4723 = vadd.f32 %v4474, %v4637
        %v4724 = vadd.f32 %v4475, %v4639
        %v4725 = vadd.f32 %v4476, %v4642
        %v4726 = vadd.f32 %v4477, %v4644
        %v4727 = vadd.f32 %v4478, %v4647
        %v4728 = vadd.f32 %v4479, %v4649
        %v4729 = vadd.f32 %v4480, %v4652
        %v4730 = vadd.f32 %v4481, %v4654
        %v4731 = vadd.f32 %v4482, %v4657
        %v4732 = vadd.f32 %v4483, %v4659
        %v4733 = vadd.f32 %v4484, %v4662
        %v4734 = vadd.f32 %v4485, %v4664
        %v4735 = vadd.f32 %v4486, %v4667
        %v4736 = vadd.f32 %v4487, %v4669
        %v4737 = vadd.f32 %v4488, %v4672
        %v4738 = vadd.f32 %v4489, %v4674
        %4739 = vset.pattern.permute.xlu0 1
        %4740 = vperm.xlu0 %4739, %v249
        %v4741 = vpop.permute.xlu0 %4740
        %v4743 = vlaneseq
        %v4744 = vshrl.u32 %v4743, 7
        %v4745 = vsub.s32 1, %v4744
        %v4746 = vrot.slane %v257, %v4745
        %v4747 = vmul.f32 %v505, %v4746
        %v4748 = vmul.f32 %v509, %v4746
        %v4749 = vmul.f32 %v1214, %v4746
        %v4750 = vmul.f32 %v513, %v4746
        %v4751 = vmul.f32 %v517, %v4746
        %v4752 = vmul.f32 %v1218, %v4746
        %v4753 = vmul.f32 %v521, %v4746
        %v4754 = vmul.f32 %v525, %v4746
        %v4755 = vmul.f32 %v1222, %v4746
        %v4756 = vmul.f32 %v529, %v4746
        %v4757 = vmul.f32 %v533, %v4746
        %v4758 = vmul.f32 %v1226, %v4746
        %v4759 = vmul.f32 %v537, %v4746
        %v4760 = vmul.f32 %v541, %v4746
        %v4761 = vmul.f32 %v1230, %v4746
        %v4762 = vmul.f32 %v545, %v4746
        %v4763 = vmul.f32 %v549, %v4746
        %v4764 = vmul.f32 %v1234, %v4746
        %v4765 = vmul.f32 %v553, %v4746
        %v4766 = vmul.f32 %v557, %v4746
        %v4767 = vmul.f32 %v1238, %v4746
        %v4768 = vmul.f32 %v561, %v4746
        %v4769 = vmul.f32 %v565, %v4746
        %v4770 = vmul.f32 %v1242, %v4746
        %v4771 = vmul.f32 %v569, %v4746
        %v4772 = vmul.f32 %v573, %v4746
        %v4773 = vmul.f32 %v1246, %v4746
        %v4774 = vmul.f32 %v577, %v4746
        %v4775 = vmul.f32 %v581, %v4746
        %v4776 = vmul.f32 %v1250, %v4746
        %v4777 = vmul.f32 %v585, %v4746
        %v4778 = vmul.f32 %v589, %v4746
        %v4779 = vmul.f32 %v1254, %v4746
        %v4780 = vmul.f32 %v593, %v4746
        %v4781 = vmul.f32 %v597, %v4746
        %v4782 = vmul.f32 %v1258, %v4746
        %v4783 = vmul.f32 %v601, %v4746
        %v4784 = vmul.f32 %v605, %v4746
        %v4785 = vmul.f32 %v1262, %v4746
        %v4786 = vmul.f32 %v609, %v4746
        %v4787 = vmul.f32 %v613, %v4746
        %v4788 = vmul.f32 %v1266, %v4746
        %v4789 = vmul.f32 %v2633, %v4746
        %v4790 = vmul.f32 %v2637, %v4746
        %v4791 = vmul.f32 %v3034, %v4746
        %v4792 = vmul.f32 %v4340, %v4746
        %v4793 = vmul.f32 %v4344, %v4746
        %v4794 = vmul.f32 %v4741, %v4746
        %v4843 = vrot.slane %v4747, 1
        %v4844 = vrot.slane %v4748, 1
        %v4845 = vsel %vm1059, %v4843, %v4844
        %v4846 = vrot.slane %v4749, 1
        %v4847 = vsel %vm1059, %v4844, %v4846
        %v4848 = vrot.slane %v4750, 1
        %v4849 = vrot.slane %v4751, 1
        %v4850 = vsel %vm1059, %v4848, %v4849
        %v4851 = vrot.slane %v4752, 1
        %v4852 = vsel %vm1059, %v4849, %v4851
        %v4853 = vrot.slane %v4753, 1
        %v4854 = vrot.slane %v4754, 1
        %v4855 = vsel %vm1059, %v4853, %v4854
        %v4856 = vrot.slane %v4755, 1
        %v4857 = vsel %vm1059, %v4854, %v4856
        %v4858 = vrot.slane %v4756, 1
        %v4859 = vrot.slane %v4757, 1
        %v4860 = vsel %vm1059, %v4858, %v4859
        %v4861 = vrot.slane %v4758, 1
        %v4862 = vsel %vm1059, %v4859, %v4861
        %v4863 = vrot.slane %v4759, 1
        %v4864 = vrot.slane %v4760, 1
        %v4865 = vsel %vm1059, %v4863, %v4864
        %v4866 = vrot.slane %v4761, 1
        %v4867 = vsel %vm1059, %v4864, %v4866
        %v4868 = vrot.slane %v4762, 1
        %v4869 = vrot.slane %v4763, 1
        %v4870 = vsel %vm1059, %v4868, %v4869
        %v4871 = vrot.slane %v4764, 1
        %v4872 = vsel %vm1059, %v4869, %v4871
        %v4873 = vrot.slane %v4765, 1
        %v4874 = vrot.slane %v4766, 1
        %v4875 = vsel %vm1059, %v4873, %v4874
        %v4876 = vrot.slane %v4767, 1
        %v4877 = vsel %vm1059, %v4874, %v4876
        %v4878 = vrot.slane %v4768, 1
        %v4879 = vrot.slane %v4769, 1
        %v4880 = vsel %vm1059, %v4878, %v4879
        %v4881 = vrot.slane %v4770, 1
        %v4882 = vsel %vm1059, %v4879, %v4881
        %v4883 = vrot.slane %v4771, 1
        %v4884 = vrot.slane %v4772, 1
        %v4885 = vsel %vm1059, %v4883, %v4884
        %v4886 = vrot.slane %v4773, 1
        %v4887 = vsel %vm1059, %v4884, %v4886
        %v4888 = vrot.slane %v4774, 1
        %v4889 = vrot.slane %v4775, 1
        %v4890 = vsel %vm1059, %v4888, %v4889
        %v4891 = vrot.slane %v4776, 1
        %v4892 = vsel %vm1059, %v4889, %v4891
        %v4893 = vrot.slane %v4777, 1
        %v4894 = vrot.slane %v4778, 1
        %v4895 = vsel %vm1059, %v4893, %v4894
        %v4896 = vrot.slane %v4779, 1
        %v4897 = vsel %vm1059, %v4894, %v4896
        %v4898 = vrot.slane %v4780, 1
        %v4899 = vrot.slane %v4781, 1
        %v4900 = vsel %vm1059, %v4898, %v4899
        %v4901 = vrot.slane %v4782, 1
        %v4902 = vsel %vm1059, %v4899, %v4901
        %v4903 = vrot.slane %v4783, 1
        %v4904 = vrot.slane %v4784, 1
        %v4905 = vsel %vm1059, %v4903, %v4904
        %v4906 = vrot.slane %v4785, 1
        %v4907 = vsel %vm1059, %v4904, %v4906
        %v4908 = vrot.slane %v4786, 1
        %v4909 = vrot.slane %v4787, 1
        %v4910 = vsel %vm1059, %v4908, %v4909
        %v4911 = vrot.slane %v4788, 1
        %v4912 = vsel %vm1059, %v4909, %v4911
        %v4913 = vrot.slane %v4789, 1
        %v4914 = vrot.slane %v4790, 1
        %v4915 = vsel %vm1059, %v4913, %v4914
        %v4916 = vrot.slane %v4791, 1
        %v4917 = vsel %vm1059, %v4914, %v4916
        %v4918 = vrot.slane %v4792, 1
        %v4919 = vrot.slane %v4793, 1
        %v4920 = vsel %vm1059, %v4918, %v4919
        %v4921 = vrot.slane %v4794, 1
        %v4922 = vsel %vm1059, %v4919, %v4921
        %v4955 = vadd.f32 %v4707, %v4845
        %v4956 = vadd.f32 %v4708, %v4847
        %v4957 = vadd.f32 %v4709, %v4850
        %v4958 = vadd.f32 %v4710, %v4852
        %v4959 = vadd.f32 %v4711, %v4855
        %v4960 = vadd.f32 %v4712, %v4857
        %v4961 = vadd.f32 %v4713, %v4860
        %v4962 = vadd.f32 %v4714, %v4862
        %v4963 = vadd.f32 %v4715, %v4865
        %v4964 = vadd.f32 %v4716, %v4867
        %v4965 = vadd.f32 %v4717, %v4870
        %v4966 = vadd.f32 %v4718, %v4872
        %v4967 = vadd.f32 %v4719, %v4875
        %v4968 = vadd.f32 %v4720, %v4877
        %v4969 = vadd.f32 %v4721, %v4880
        %v4970 = vadd.f32 %v4722, %v4882
        %v4971 = vadd.f32 %v4723, %v4885
        %v4972 = vadd.f32 %v4724, %v4887
        %v4973 = vadd.f32 %v4725, %v4890
        %v4974 = vadd.f32 %v4726, %v4892
        %v4975 = vadd.f32 %v4727, %v4895
        %v4976 = vadd.f32 %v4728, %v4897
        %v4977 = vadd.f32 %v4729, %v4900
        %v4978 = vadd.f32 %v4730, %v4902
        %v4979 = vadd.f32 %v4731, %v4905
        %v4980 = vadd.f32 %v4732, %v4907
        %v4981 = vadd.f32 %v4733, %v4910
        %v4982 = vadd.f32 %v4734, %v4912
        %v4983 = vadd.f32 %v4735, %v4915
        %v4984 = vadd.f32 %v4736, %v4917
        %v4985 = vadd.f32 %v4737, %v4920
        %v4986 = vadd.f32 %v4738, %v4922
        %4987 = vset.pattern.permute.xlu0 2
        %4988 = vperm.xlu0 %4987, %v249
        %v4989 = vpop.permute.xlu0 %4988
        %v4991 = vlaneseq
        %v4992 = vshrl.u32 %v4991, 7
        %v4993 = vsub.s32 2, %v4992
        %v4994 = vrot.slane %v257, %v4993
        %v4995 = vmul.f32 %v701, %v4994
        %v4996 = vmul.f32 %v705, %v4994
        %v4997 = vmul.f32 %v1522, %v4994
        %v4998 = vmul.f32 %v709, %v4994
        %v4999 = vmul.f32 %v713, %v4994
        %v5000 = vmul.f32 %v1526, %v4994
        %v5001 = vmul.f32 %v717, %v4994
        %v5002 = vmul.f32 %v721, %v4994
        %v5003 = vmul.f32 %v1530, %v4994
        %v5004 = vmul.f32 %v725, %v4994
        %v5005 = vmul.f32 %v729, %v4994
        %v5006 = vmul.f32 %v1534, %v4994
        %v5007 = vmul.f32 %v733, %v4994
        %v5008 = vmul.f32 %v737, %v4994
        %v5009 = vmul.f32 %v1538, %v4994
        %v5010 = vmul.f32 %v741, %v4994
        %v5011 = vmul.f32 %v745, %v4994
        %v5012 = vmul.f32 %v1542, %v4994
        %v5013 = vmul.f32 %v749, %v4994
        %v5014 = vmul.f32 %v753, %v4994
        %v5015 = vmul.f32 %v1546, %v4994
        %v5016 = vmul.f32 %v757, %v4994
        %v5017 = vmul.f32 %v761, %v4994
        %v5018 = vmul.f32 %v1550, %v4994
        %v5019 = vmul.f32 %v765, %v4994
        %v5020 = vmul.f32 %v769, %v4994
        %v5021 = vmul.f32 %v1554, %v4994
        %v5022 = vmul.f32 %v773, %v4994
        %v5023 = vmul.f32 %v777, %v4994
        %v5024 = vmul.f32 %v1558, %v4994
        %v5025 = vmul.f32 %v781, %v4994
        %v5026 = vmul.f32 %v785, %v4994
        %v5027 = vmul.f32 %v1562, %v4994
        %v5028 = vmul.f32 %v789, %v4994
        %v5029 = vmul.f32 %v793, %v4994
        %v5030 = vmul.f32 %v1566, %v4994
        %v5031 = vmul.f32 %v797, %v4994
        %v5032 = vmul.f32 %v801, %v4994
        %v5033 = vmul.f32 %v1570, %v4994
        %v5034 = vmul.f32 %v805, %v4994
        %v5035 = vmul.f32 %v809, %v4994
        %v5036 = vmul.f32 %v1574, %v4994
        %v5037 = vmul.f32 %v2709, %v4994
        %v5038 = vmul.f32 %v2713, %v4994
        %v5039 = vmul.f32 %v3282, %v4994
        %v5040 = vmul.f32 %v4416, %v4994
        %v5041 = vmul.f32 %v4420, %v4994
        %v5042 = vmul.f32 %v4989, %v4994
        %v5091 = vrot.slane %v4995, 1
        %v5092 = vrot.slane %v4996, 1
        %v5093 = vsel %vm1059, %v5091, %v5092
        %v5094 = vrot.slane %v4997, 1
        %v5095 = vsel %vm1059, %v5092, %v5094
        %v5096 = vrot.slane %v4998, 1
        %v5097 = vrot.slane %v4999, 1
        %v5098 = vsel %vm1059, %v5096, %v5097
        %v5099 = vrot.slane %v5000, 1
        %v5100 = vsel %vm1059, %v5097, %v5099
        %v5101 = vrot.slane %v5001, 1
        %v5102 = vrot.slane %v5002, 1
        %v5103 = vsel %vm1059, %v5101, %v5102
        %v5104 = vrot.slane %v5003, 1
        %v5105 = vsel %vm1059, %v5102, %v5104
        %v5106 = vrot.slane %v5004, 1
        %v5107 = vrot.slane %v5005, 1
        %v5108 = vsel %vm1059, %v5106, %v5107
        %v5109 = vrot.slane %v5006, 1
        %v5110 = vsel %vm1059, %v5107, %v5109
        %v5111 = vrot.slane %v5007, 1
        %v5112 = vrot.slane %v5008, 1
        %v5113 = vsel %vm1059, %v5111, %v5112
        %v5114 = vrot.slane %v5009, 1
        %v5115 = vsel %vm1059, %v5112, %v5114
        %v5116 = vrot.slane %v5010, 1
        %v5117 = vrot.slane %v5011, 1
        %v5118 = vsel %vm1059, %v5116, %v5117
        %v5119 = vrot.slane %v5012, 1
        %v5120 = vsel %vm1059, %v5117, %v5119
        %v5121 = vrot.slane %v5013, 1
        %v5122 = vrot.slane %v5014, 1
        %v5123 = vsel %vm1059, %v5121, %v5122
        %v5124 = vrot.slane %v5015, 1
        %v5125 = vsel %vm1059, %v5122, %v5124
        %v5126 = vrot.slane %v5016, 1
        %v5127 = vrot.slane %v5017, 1
        %v5128 = vsel %vm1059, %v5126, %v5127
        %v5129 = vrot.slane %v5018, 1
        %v5130 = vsel %vm1059, %v5127, %v5129
        %v5131 = vrot.slane %v5019, 1
        %v5132 = vrot.slane %v5020, 1
        %v5133 = vsel %vm1059, %v5131, %v5132
        %v5134 = vrot.slane %v5021, 1
        %v5135 = vsel %vm1059, %v5132, %v5134
        %v5136 = vrot.slane %v5022, 1
        %v5137 = vrot.slane %v5023, 1
        %v5138 = vsel %vm1059, %v5136, %v5137
        %v5139 = vrot.slane %v5024, 1
        %v5140 = vsel %vm1059, %v5137, %v5139
        %v5141 = vrot.slane %v5025, 1
        %v5142 = vrot.slane %v5026, 1
        %v5143 = vsel %vm1059, %v5141, %v5142
        %v5144 = vrot.slane %v5027, 1
        %v5145 = vsel %vm1059, %v5142, %v5144
        %v5146 = vrot.slane %v5028, 1
        %v5147 = vrot.slane %v5029, 1
        %v5148 = vsel %vm1059, %v5146, %v5147
        %v5149 = vrot.slane %v5030, 1
        %v5150 = vsel %vm1059, %v5147, %v5149
        %v5151 = vrot.slane %v5031, 1
        %v5152 = vrot.slane %v5032, 1
        %v5153 = vsel %vm1059, %v5151, %v5152
        %v5154 = vrot.slane %v5033, 1
        %v5155 = vsel %vm1059, %v5152, %v5154
        %v5156 = vrot.slane %v5034, 1
        %v5157 = vrot.slane %v5035, 1
        %v5158 = vsel %vm1059, %v5156, %v5157
        %v5159 = vrot.slane %v5036, 1
        %v5160 = vsel %vm1059, %v5157, %v5159
        %v5161 = vrot.slane %v5037, 1
        %v5162 = vrot.slane %v5038, 1
        %v5163 = vsel %vm1059, %v5161, %v5162
        %v5164 = vrot.slane %v5039, 1
        %v5165 = vsel %vm1059, %v5162, %v5164
        %v5166 = vrot.slane %v5040, 1
        %v5167 = vrot.slane %v5041, 1
        %v5168 = vsel %vm1059, %v5166, %v5167
        %v5169 = vrot.slane %v5042, 1
        %v5170 = vsel %vm1059, %v5167, %v5169
        %v5203 = vadd.f32 %v4955, %v5093
        %v5204 = vadd.f32 %v4956, %v5095
        %v5205 = vadd.f32 %v4957, %v5098
        %v5206 = vadd.f32 %v4958, %v5100
        %v5207 = vadd.f32 %v4959, %v5103
        %v5208 = vadd.f32 %v4960, %v5105
        %v5209 = vadd.f32 %v4961, %v5108
        %v5210 = vadd.f32 %v4962, %v5110
        %v5211 = vadd.f32 %v4963, %v5113
        %v5212 = vadd.f32 %v4964, %v5115
        %v5213 = vadd.f32 %v4965, %v5118
        %v5214 = vadd.f32 %v4966, %v5120
        %v5215 = vadd.f32 %v4967, %v5123
        %v5216 = vadd.f32 %v4968, %v5125
        %v5217 = vadd.f32 %v4969, %v5128
        %v5218 = vadd.f32 %v4970, %v5130
        %v5219 = vadd.f32 %v4971, %v5133
        %v5220 = vadd.f32 %v4972, %v5135
        %v5221 = vadd.f32 %v4973, %v5138
        %v5222 = vadd.f32 %v4974, %v5140
        %v5223 = vadd.f32 %v4975, %v5143
        %v5224 = vadd.f32 %v4976, %v5145
        %v5225 = vadd.f32 %v4977, %v5148
        %v5226 = vadd.f32 %v4978, %v5150
        %v5227 = vadd.f32 %v4979, %v5153
        %v5228 = vadd.f32 %v4980, %v5155
        %v5229 = vadd.f32 %v4981, %v5158
        %v5230 = vadd.f32 %v4982, %v5160
        %v5231 = vadd.f32 %v4983, %v5163
        %v5232 = vadd.f32 %v4984, %v5165
        %v5233 = vadd.f32 %v4985, %v5168
        %v5234 = vadd.f32 %v4986, %v5170
        %v5235 = vlaneseq
        %v5236 = vshrl.u32 %v5235, 7
        %v5237 = vsub.s32 0, %v5236
        %v5238 = vrot.slane %v258, %v5237
        %v5239 = vmul.f32 %v282, %v5238
        %v5240 = vmul.f32 %v287, %v5238
        %v5241 = vmul.f32 %v892, %v5238
        %v5242 = vmul.f32 %v292, %v5238
        %v5243 = vmul.f32 %v297, %v5238
        %v5244 = vmul.f32 %v897, %v5238
        %v5245 = vmul.f32 %v302, %v5238
        %v5246 = vmul.f32 %v307, %v5238
        %v5247 = vmul.f32 %v902, %v5238
        %v5248 = vmul.f32 %v312, %v5238
        %v5249 = vmul.f32 %v317, %v5238
        %v5250 = vmul.f32 %v907, %v5238
        %v5251 = vmul.f32 %v322, %v5238
        %v5252 = vmul.f32 %v327, %v5238
        %v5253 = vmul.f32 %v912, %v5238
        %v5254 = vmul.f32 %v332, %v5238
        %v5255 = vmul.f32 %v337, %v5238
        %v5256 = vmul.f32 %v917, %v5238
        %v5257 = vmul.f32 %v342, %v5238
        %v5258 = vmul.f32 %v347, %v5238
        %v5259 = vmul.f32 %v922, %v5238
        %v5260 = vmul.f32 %v352, %v5238
        %v5261 = vmul.f32 %v357, %v5238
        %v5262 = vmul.f32 %v927, %v5238
        %v5263 = vmul.f32 %v362, %v5238
        %v5264 = vmul.f32 %v367, %v5238
        %v5265 = vmul.f32 %v932, %v5238
        %v5266 = vmul.f32 %v372, %v5238
        %v5267 = vmul.f32 %v377, %v5238
        %v5268 = vmul.f32 %v937, %v5238
        %v5269 = vmul.f32 %v382, %v5238
        %v5270 = vmul.f32 %v387, %v5238
        %v5271 = vmul.f32 %v942, %v5238
        %v5272 = vmul.f32 %v392, %v5238
        %v5273 = vmul.f32 %v397, %v5238
        %v5274 = vmul.f32 %v947, %v5238
        %v5275 = vmul.f32 %v402, %v5238
        %v5276 = vmul.f32 %v407, %v5238
        %v5277 = vmul.f32 %v952, %v5238
        %v5278 = vmul.f32 %v412, %v5238
        %v5279 = vmul.f32 %v417, %v5238
        %v5280 = vmul.f32 %v957, %v5238
        %v5281 = vmul.f32 %v2556, %v5238
        %v5282 = vmul.f32 %v2561, %v5238
        %v5283 = vmul.f32 %v2786, %v5238
        %v5284 = vmul.f32 %v4263, %v5238
        %v5285 = vmul.f32 %v4268, %v5238
        %v5286 = vmul.f32 %v4493, %v5238
        %v5335 = vrot.slane %v5239, 2
        %v5336 = vrot.slane %v5240, 2
        %v5337 = vsel %vm1920, %v5335, %v5336
        %v5338 = vrot.slane %v5241, 2
        %v5339 = vsel %vm1920, %v5336, %v5338
        %v5340 = vrot.slane %v5242, 2
        %v5341 = vrot.slane %v5243, 2
        %v5342 = vsel %vm1920, %v5340, %v5341
        %v5343 = vrot.slane %v5244, 2
        %v5344 = vsel %vm1920, %v5341, %v5343
        %v5345 = vrot.slane %v5245, 2
        %v5346 = vrot.slane %v5246, 2
        %v5347 = vsel %vm1920, %v5345, %v5346
        %v5348 = vrot.slane %v5247, 2
        %v5349 = vsel %vm1920, %v5346, %v5348
        %v5350 = vrot.slane %v5248, 2
        %v5351 = vrot.slane %v5249, 2
        %v5352 = vsel %vm1920, %v5350, %v5351
        %v5353 = vrot.slane %v5250, 2
        %v5354 = vsel %vm1920, %v5351, %v5353
        %v5355 = vrot.slane %v5251, 2
        %v5356 = vrot.slane %v5252, 2
        %v5357 = vsel %vm1920, %v5355, %v5356
        %v5358 = vrot.slane %v5253, 2
        %v5359 = vsel %vm1920, %v5356, %v5358
        %v5360 = vrot.slane %v5254, 2
        %v5361 = vrot.slane %v5255, 2
        %v5362 = vsel %vm1920, %v5360, %v5361
        %v5363 = vrot.slane %v5256, 2
        %v5364 = vsel %vm1920, %v5361, %v5363
        %v5365 = vrot.slane %v5257, 2
        %v5366 = vrot.slane %v5258, 2
        %v5367 = vsel %vm1920, %v5365, %v5366
        %v5368 = vrot.slane %v5259, 2
        %v5369 = vsel %vm1920, %v5366, %v5368
        %v5370 = vrot.slane %v5260, 2
        %v5371 = vrot.slane %v5261, 2
        %v5372 = vsel %vm1920, %v5370, %v5371
        %v5373 = vrot.slane %v5262, 2
        %v5374 = vsel %vm1920, %v5371, %v5373
        %v5375 = vrot.slane %v5263, 2
        %v5376 = vrot.slane %v5264, 2
        %v5377 = vsel %vm1920, %v5375, %v5376
        %v5378 = vrot.slane %v5265, 2
        %v5379 = vsel %vm1920, %v5376, %v5378
        %v5380 = vrot.slane %v5266, 2
        %v5381 = vrot.slane %v5267, 2
        %v5382 = vsel %vm1920, %v5380, %v5381
        %v5383 = vrot.slane %v5268, 2
        %v5384 = vsel %vm1920, %v5381, %v5383
        %v5385 = vrot.slane %v5269, 2
        %v5386 = vrot.slane %v5270, 2
        %v5387 = vsel %vm1920, %v5385, %v5386
        %v5388 = vrot.slane %v5271, 2
        %v5389 = vsel %vm1920, %v5386, %v5388
        %v5390 = vrot.slane %v5272, 2
        %v5391 = vrot.slane %v5273, 2
        %v5392 = vsel %vm1920, %v5390, %v5391
        %v5393 = vrot.slane %v5274, 2
        %v5394 = vsel %vm1920, %v5391, %v5393
        %v5395 = vrot.slane %v5275, 2
        %v5396 = vrot.slane %v5276, 2
        %v5397 = vsel %vm1920, %v5395, %v5396
        %v5398 = vrot.slane %v5277, 2
        %v5399 = vsel %vm1920, %v5396, %v5398
        %v5400 = vrot.slane %v5278, 2
        %v5401 = vrot.slane %v5279, 2
        %v5402 = vsel %vm1920, %v5400, %v5401
        %v5403 = vrot.slane %v5280, 2
        %v5404 = vsel %vm1920, %v5401, %v5403
        %v5405 = vrot.slane %v5281, 2
        %v5406 = vrot.slane %v5282, 2
        %v5407 = vsel %vm1920, %v5405, %v5406
        %v5408 = vrot.slane %v5283, 2
        %v5409 = vsel %vm1920, %v5406, %v5408
        %v5410 = vrot.slane %v5284, 2
        %v5411 = vrot.slane %v5285, 2
        %v5412 = vsel %vm1920, %v5410, %v5411
        %v5413 = vrot.slane %v5286, 2
        %v5414 = vsel %vm1920, %v5411, %v5413
        %v5447 = vadd.f32 %v5203, %v5337
        %v5448 = vadd.f32 %v5204, %v5339
        %v5449 = vadd.f32 %v5205, %v5342
        %v5450 = vadd.f32 %v5206, %v5344
        %v5451 = vadd.f32 %v5207, %v5347
        %v5452 = vadd.f32 %v5208, %v5349
        %v5453 = vadd.f32 %v5209, %v5352
        %v5454 = vadd.f32 %v5210, %v5354
        %v5455 = vadd.f32 %v5211, %v5357
        %v5456 = vadd.f32 %v5212, %v5359
        %v5457 = vadd.f32 %v5213, %v5362
        %v5458 = vadd.f32 %v5214, %v5364
        %v5459 = vadd.f32 %v5215, %v5367
        %v5460 = vadd.f32 %v5216, %v5369
        %v5461 = vadd.f32 %v5217, %v5372
        %v5462 = vadd.f32 %v5218, %v5374
        %v5463 = vadd.f32 %v5219, %v5377
        %v5464 = vadd.f32 %v5220, %v5379
        %v5465 = vadd.f32 %v5221, %v5382
        %v5466 = vadd.f32 %v5222, %v5384
        %v5467 = vadd.f32 %v5223, %v5387
        %v5468 = vadd.f32 %v5224, %v5389
        %v5469 = vadd.f32 %v5225, %v5392
        %v5470 = vadd.f32 %v5226, %v5394
        %v5471 = vadd.f32 %v5227, %v5397
        %v5472 = vadd.f32 %v5228, %v5399
        %v5473 = vadd.f32 %v5229, %v5402
        %v5474 = vadd.f32 %v5230, %v5404
        %v5475 = vadd.f32 %v5231, %v5407
        %v5476 = vadd.f32 %v5232, %v5409
        %v5477 = vadd.f32 %v5233, %v5412
        %v5478 = vadd.f32 %v5234, %v5414
        %v5479 = vlaneseq
        %v5480 = vshrl.u32 %v5479, 7
        %v5481 = vsub.s32 1, %v5480
        %v5482 = vrot.slane %v258, %v5481
        %v5483 = vmul.f32 %v505, %v5482
        %v5484 = vmul.f32 %v509, %v5482
        %v5485 = vmul.f32 %v1214, %v5482
        %v5486 = vmul.f32 %v513, %v5482
        %v5487 = vmul.f32 %v517, %v5482
        %v5488 = vmul.f32 %v1218, %v5482
        %v5489 = vmul.f32 %v521, %v5482
        %v5490 = vmul.f32 %v525, %v5482
        %v5491 = vmul.f32 %v1222, %v5482
        %v5492 = vmul.f32 %v529, %v5482
        %v5493 = vmul.f32 %v533, %v5482
        %v5494 = vmul.f32 %v1226, %v5482
        %v5495 = vmul.f32 %v537, %v5482
        %v5496 = vmul.f32 %v541, %v5482
        %v5497 = vmul.f32 %v1230, %v5482
        %v5498 = vmul.f32 %v545, %v5482
        %v5499 = vmul.f32 %v549, %v5482
        %v5500 = vmul.f32 %v1234, %v5482
        %v5501 = vmul.f32 %v553, %v5482
        %v5502 = vmul.f32 %v557, %v5482
        %v5503 = vmul.f32 %v1238, %v5482
        %v5504 = vmul.f32 %v561, %v5482
        %v5505 = vmul.f32 %v565, %v5482
        %v5506 = vmul.f32 %v1242, %v5482
        %v5507 = vmul.f32 %v569, %v5482
        %v5508 = vmul.f32 %v573, %v5482
        %v5509 = vmul.f32 %v1246, %v5482
        %v5510 = vmul.f32 %v577, %v5482
        %v5511 = vmul.f32 %v581, %v5482
        %v5512 = vmul.f32 %v1250, %v5482
        %v5513 = vmul.f32 %v585, %v5482
        %v5514 = vmul.f32 %v589, %v5482
        %v5515 = vmul.f32 %v1254, %v5482
        %v5516 = vmul.f32 %v593, %v5482
        %v5517 = vmul.f32 %v597, %v5482
        %v5518 = vmul.f32 %v1258, %v5482
        %v5519 = vmul.f32 %v601, %v5482
        %v5520 = vmul.f32 %v605, %v5482
        %v5521 = vmul.f32 %v1262, %v5482
        %v5522 = vmul.f32 %v609, %v5482
        %v5523 = vmul.f32 %v613, %v5482
        %v5524 = vmul.f32 %v1266, %v5482
        %v5525 = vmul.f32 %v2633, %v5482
        %v5526 = vmul.f32 %v2637, %v5482
        %v5527 = vmul.f32 %v3034, %v5482
        %v5528 = vmul.f32 %v4340, %v5482
        %v5529 = vmul.f32 %v4344, %v5482
        %v5530 = vmul.f32 %v4741, %v5482
        %v5579 = vrot.slane %v5483, 2
        %v5580 = vrot.slane %v5484, 2
        %v5581 = vsel %vm1920, %v5579, %v5580
        %v5582 = vrot.slane %v5485, 2
        %v5583 = vsel %vm1920, %v5580, %v5582
        %v5584 = vrot.slane %v5486, 2
        %v5585 = vrot.slane %v5487, 2
        %v5586 = vsel %vm1920, %v5584, %v5585
        %v5587 = vrot.slane %v5488, 2
        %v5588 = vsel %vm1920, %v5585, %v5587
        %v5589 = vrot.slane %v5489, 2
        %v5590 = vrot.slane %v5490, 2
        %v5591 = vsel %vm1920, %v5589, %v5590
        %v5592 = vrot.slane %v5491, 2
        %v5593 = vsel %vm1920, %v5590, %v5592
        %v5594 = vrot.slane %v5492, 2
        %v5595 = vrot.slane %v5493, 2
        %v5596 = vsel %vm1920, %v5594, %v5595
        %v5597 = vrot.slane %v5494, 2
        %v5598 = vsel %vm1920, %v5595, %v5597
        %v5599 = vrot.slane %v5495, 2
        %v5600 = vrot.slane %v5496, 2
        %v5601 = vsel %vm1920, %v5599, %v5600
        %v5602 = vrot.slane %v5497, 2
        %v5603 = vsel %vm1920, %v5600, %v5602
        %v5604 = vrot.slane %v5498, 2
        %v5605 = vrot.slane %v5499, 2
        %v5606 = vsel %vm1920, %v5604, %v5605
        %v5607 = vrot.slane %v5500, 2
        %v5608 = vsel %vm1920, %v5605, %v5607
        %v5609 = vrot.slane %v5501, 2
        %v5610 = vrot.slane %v5502, 2
        %v5611 = vsel %vm1920, %v5609, %v5610
        %v5612 = vrot.slane %v5503, 2
        %v5613 = vsel %vm1920, %v5610, %v5612
        %v5614 = vrot.slane %v5504, 2
        %v5615 = vrot.slane %v5505, 2
        %v5616 = vsel %vm1920, %v5614, %v5615
        %v5617 = vrot.slane %v5506, 2
        %v5618 = vsel %vm1920, %v5615, %v5617
        %v5619 = vrot.slane %v5507, 2
        %v5620 = vrot.slane %v5508, 2
        %v5621 = vsel %vm1920, %v5619, %v5620
        %v5622 = vrot.slane %v5509, 2
        %v5623 = vsel %vm1920, %v5620, %v5622
        %v5624 = vrot.slane %v5510, 2
        %v5625 = vrot.slane %v5511, 2
        %v5626 = vsel %vm1920, %v5624, %v5625
        %v5627 = vrot.slane %v5512, 2
        %v5628 = vsel %vm1920, %v5625, %v5627
        %v5629 = vrot.slane %v5513, 2
        %v5630 = vrot.slane %v5514, 2
        %v5631 = vsel %vm1920, %v5629, %v5630
        %v5632 = vrot.slane %v5515, 2
        %v5633 = vsel %vm1920, %v5630, %v5632
        %v5634 = vrot.slane %v5516, 2
        %v5635 = vrot.slane %v5517, 2
        %v5636 = vsel %vm1920, %v5634, %v5635
        %v5637 = vrot.slane %v5518, 2
        %v5638 = vsel %vm1920, %v5635, %v5637
        %v5639 = vrot.slane %v5519, 2
        %v5640 = vrot.slane %v5520, 2
        %v5641 = vsel %vm1920, %v5639, %v5640
        %v5642 = vrot.slane %v5521, 2
        %v5643 = vsel %vm1920, %v5640, %v5642
        %v5644 = vrot.slane %v5522, 2
        %v5645 = vrot.slane %v5523, 2
        %v5646 = vsel %vm1920, %v5644, %v5645
        %v5647 = vrot.slane %v5524, 2
        %v5648 = vsel %vm1920, %v5645, %v5647
        %v5649 = vrot.slane %v5525, 2
        %v5650 = vrot.slane %v5526, 2
        %v5651 = vsel %vm1920, %v5649, %v5650
        %v5652 = vrot.slane %v5527, 2
        %v5653 = vsel %vm1920, %v5650, %v5652
        %v5654 = vrot.slane %v5528, 2
        %v5655 = vrot.slane %v5529, 2
        %v5656 = vsel %vm1920, %v5654, %v5655
        %v5657 = vrot.slane %v5530, 2
        %v5658 = vsel %vm1920, %v5655, %v5657
        %v5691 = vadd.f32 %v5447, %v5581
        %v5692 = vadd.f32 %v5448, %v5583
        %v5693 = vadd.f32 %v5449, %v5586
        %v5694 = vadd.f32 %v5450, %v5588
        %v5695 = vadd.f32 %v5451, %v5591
        %v5696 = vadd.f32 %v5452, %v5593
        %v5697 = vadd.f32 %v5453, %v5596
        %v5698 = vadd.f32 %v5454, %v5598
        %v5699 = vadd.f32 %v5455, %v5601
        %v5700 = vadd.f32 %v5456, %v5603
        %v5701 = vadd.f32 %v5457, %v5606
        %v5702 = vadd.f32 %v5458, %v5608
        %v5703 = vadd.f32 %v5459, %v5611
        %v5704 = vadd.f32 %v5460, %v5613
        %v5705 = vadd.f32 %v5461, %v5616
        %v5706 = vadd.f32 %v5462, %v5618
        %v5707 = vadd.f32 %v5463, %v5621
        %v5708 = vadd.f32 %v5464, %v5623
        %v5709 = vadd.f32 %v5465, %v5626
        %v5710 = vadd.f32 %v5466, %v5628
        %v5711 = vadd.f32 %v5467, %v5631
        %v5712 = vadd.f32 %v5468, %v5633
        %v5713 = vadd.f32 %v5469, %v5636
        %v5714 = vadd.f32 %v5470, %v5638
        %v5715 = vadd.f32 %v5471, %v5641
        %v5716 = vadd.f32 %v5472, %v5643
        %v5717 = vadd.f32 %v5473, %v5646
        %v5718 = vadd.f32 %v5474, %v5648
        %v5719 = vadd.f32 %v5475, %v5651
        %v5720 = vadd.f32 %v5476, %v5653
        %v5721 = vadd.f32 %v5477, %v5656
        %v5722 = vadd.f32 %v5478, %v5658
        %v5723 = vlaneseq
        %v5724 = vshrl.u32 %v5723, 7
        %v5725 = vsub.s32 2, %v5724
        %v5726 = vrot.slane %v258, %v5725
        %v5727 = vmul.f32 %v701, %v5726
        %v5728 = vmul.f32 %v705, %v5726
        %v5729 = vmul.f32 %v1522, %v5726
        %v5730 = vmul.f32 %v709, %v5726
        %v5731 = vmul.f32 %v713, %v5726
        %v5732 = vmul.f32 %v1526, %v5726
        %v5733 = vmul.f32 %v717, %v5726
        %v5734 = vmul.f32 %v721, %v5726
        %v5735 = vmul.f32 %v1530, %v5726
        %v5736 = vmul.f32 %v725, %v5726
        %v5737 = vmul.f32 %v729, %v5726
        %v5738 = vmul.f32 %v1534, %v5726
        %v5739 = vmul.f32 %v733, %v5726
        %v5740 = vmul.f32 %v737, %v5726
        %v5741 = vmul.f32 %v1538, %v5726
        %v5742 = vmul.f32 %v741, %v5726
        %v5743 = vmul.f32 %v745, %v5726
        %v5744 = vmul.f32 %v1542, %v5726
        %v5745 = vmul.f32 %v749, %v5726
        %v5746 = vmul.f32 %v753, %v5726
        %v5747 = vmul.f32 %v1546, %v5726
        %v5748 = vmul.f32 %v757, %v5726
        %v5749 = vmul.f32 %v761, %v5726
        %v5750 = vmul.f32 %v1550, %v5726
        %v5751 = vmul.f32 %v765, %v5726
        %v5752 = vmul.f32 %v769, %v5726
        %v5753 = vmul.f32 %v1554, %v5726
        %v5754 = vmul.f32 %v773, %v5726
        %v5755 = vmul.f32 %v777, %v5726
        %v5756 = vmul.f32 %v1558, %v5726
        %v5757 = vmul.f32 %v781, %v5726
        %v5758 = vmul.f32 %v785, %v5726
        %v5759 = vmul.f32 %v1562, %v5726
        %v5760 = vmul.f32 %v789, %v5726
        %v5761 = vmul.f32 %v793, %v5726
        %v5762 = vmul.f32 %v1566, %v5726
        %v5763 = vmul.f32 %v797, %v5726
        %v5764 = vmul.f32 %v801, %v5726
        %v5765 = vmul.f32 %v1570, %v5726
        %v5766 = vmul.f32 %v805, %v5726
        %v5767 = vmul.f32 %v809, %v5726
        %v5768 = vmul.f32 %v1574, %v5726
        %v5769 = vmul.f32 %v2709, %v5726
        %v5770 = vmul.f32 %v2713, %v5726
        %v5771 = vmul.f32 %v3282, %v5726
        %v5772 = vmul.f32 %v4416, %v5726
        %v5773 = vmul.f32 %v4420, %v5726
        %v5774 = vmul.f32 %v4989, %v5726
        %v5823 = vrot.slane %v5727, 2
        %v5824 = vrot.slane %v5728, 2
        %v5825 = vsel %vm1920, %v5823, %v5824
        %v5826 = vrot.slane %v5729, 2
        %v5827 = vsel %vm1920, %v5824, %v5826
        %v5828 = vrot.slane %v5730, 2
        %v5829 = vrot.slane %v5731, 2
        %v5830 = vsel %vm1920, %v5828, %v5829
        %v5831 = vrot.slane %v5732, 2
        %v5832 = vsel %vm1920, %v5829, %v5831
        %v5833 = vrot.slane %v5733, 2
        %v5834 = vrot.slane %v5734, 2
        %v5835 = vsel %vm1920, %v5833, %v5834
        %v5836 = vrot.slane %v5735, 2
        %v5837 = vsel %vm1920, %v5834, %v5836
        %v5838 = vrot.slane %v5736, 2
        %v5839 = vrot.slane %v5737, 2
        %v5840 = vsel %vm1920, %v5838, %v5839
        %v5841 = vrot.slane %v5738, 2
        %v5842 = vsel %vm1920, %v5839, %v5841
        %v5843 = vrot.slane %v5739, 2
        %v5844 = vrot.slane %v5740, 2
        %v5845 = vsel %vm1920, %v5843, %v5844
        %v5846 = vrot.slane %v5741, 2
        %v5847 = vsel %vm1920, %v5844, %v5846
        %v5848 = vrot.slane %v5742, 2
        %v5849 = vrot.slane %v5743, 2
        %v5850 = vsel %vm1920, %v5848, %v5849
        %v5851 = vrot.slane %v5744, 2
        %v5852 = vsel %vm1920, %v5849, %v5851
        %v5853 = vrot.slane %v5745, 2
        %v5854 = vrot.slane %v5746, 2
        %v5855 = vsel %vm1920, %v5853, %v5854
        %v5856 = vrot.slane %v5747, 2
        %v5857 = vsel %vm1920, %v5854, %v5856
        %v5858 = vrot.slane %v5748, 2
        %v5859 = vrot.slane %v5749, 2
        %v5860 = vsel %vm1920, %v5858, %v5859
        %v5861 = vrot.slane %v5750, 2
        %v5862 = vsel %vm1920, %v5859, %v5861
        %v5863 = vrot.slane %v5751, 2
        %v5864 = vrot.slane %v5752, 2
        %v5865 = vsel %vm1920, %v5863, %v5864
        %v5866 = vrot.slane %v5753, 2
        %v5867 = vsel %vm1920, %v5864, %v5866
        %v5868 = vrot.slane %v5754, 2
        %v5869 = vrot.slane %v5755, 2
        %v5870 = vsel %vm1920, %v5868, %v5869
        %v5871 = vrot.slane %v5756, 2
        %v5872 = vsel %vm1920, %v5869, %v5871
        %v5873 = vrot.slane %v5757, 2
        %v5874 = vrot.slane %v5758, 2
        %v5875 = vsel %vm1920, %v5873, %v5874
        %v5876 = vrot.slane %v5759, 2
        %v5877 = vsel %vm1920, %v5874, %v5876
        %v5878 = vrot.slane %v5760, 2
        %v5879 = vrot.slane %v5761, 2
        %v5880 = vsel %vm1920, %v5878, %v5879
        %v5881 = vrot.slane %v5762, 2
        %v5882 = vsel %vm1920, %v5879, %v5881
        %v5883 = vrot.slane %v5763, 2
        %v5884 = vrot.slane %v5764, 2
        %v5885 = vsel %vm1920, %v5883, %v5884
        %v5886 = vrot.slane %v5765, 2
        %v5887 = vsel %vm1920, %v5884, %v5886
        %v5888 = vrot.slane %v5766, 2
        %v5889 = vrot.slane %v5767, 2
        %v5890 = vsel %vm1920, %v5888, %v5889
        %v5891 = vrot.slane %v5768, 2
        %v5892 = vsel %vm1920, %v5889, %v5891
        %v5893 = vrot.slane %v5769, 2
        %v5894 = vrot.slane %v5770, 2
        %v5895 = vsel %vm1920, %v5893, %v5894
        %v5896 = vrot.slane %v5771, 2
        %v5897 = vsel %vm1920, %v5894, %v5896
        %v5898 = vrot.slane %v5772, 2
        %v5899 = vrot.slane %v5773, 2
        %v5900 = vsel %vm1920, %v5898, %v5899
        %v5901 = vrot.slane %v5774, 2
        %v5902 = vsel %vm1920, %v5899, %v5901
        %v5935 = vadd.f32 %v5691, %v5825
        %v5936 = vadd.f32 %v5692, %v5827
        %v5937 = vadd.f32 %v5693, %v5830
        %v5938 = vadd.f32 %v5694, %v5832
        %v5939 = vadd.f32 %v5695, %v5835
        %v5940 = vadd.f32 %v5696, %v5837
        %v5941 = vadd.f32 %v5697, %v5840
        %v5942 = vadd.f32 %v5698, %v5842
        %v5943 = vadd.f32 %v5699, %v5845
        %v5944 = vadd.f32 %v5700, %v5847
        %v5945 = vadd.f32 %v5701, %v5850
        %v5946 = vadd.f32 %v5702, %v5852
        %v5947 = vadd.f32 %v5703, %v5855
        %v5948 = vadd.f32 %v5704, %v5857
        %v5949 = vadd.f32 %v5705, %v5860
        %v5950 = vadd.f32 %v5706, %v5862
        %v5951 = vadd.f32 %v5707, %v5865
        %v5952 = vadd.f32 %v5708, %v5867
        %v5953 = vadd.f32 %v5709, %v5870
        %v5954 = vadd.f32 %v5710, %v5872
        %v5955 = vadd.f32 %v5711, %v5875
        %v5956 = vadd.f32 %v5712, %v5877
        %v5957 = vadd.f32 %v5713, %v5880
        %v5958 = vadd.f32 %v5714, %v5882
        %v5959 = vadd.f32 %v5715, %v5885
        %v5960 = vadd.f32 %v5716, %v5887
        %v5961 = vadd.f32 %v5717, %v5890
        %v5962 = vadd.f32 %v5718, %v5892
        %v5963 = vadd.f32 %v5719, %v5895
        %v5964 = vadd.f32 %v5720, %v5897
        %v5965 = vadd.f32 %v5721, %v5900
        %v5966 = vadd.f32 %v5722, %v5902
        %v5967 = vld [vmem:[%s2] sm:$0x1]
        %v5969 = vlaneseq
        %v5970 = vshrl.u32 %v5969, 7
        %v5971 = vsub.s32 0, %v5970
        %v5972 = vrot.slane %v5967, %v5971
        %v5974 = vmul.f32 %v5935, %v5972
        %v5975 = vmul.f32 %v5936, %v5972
        %v5976 = vmul.f32 %v5937, %v5972
        %v5977 = vmul.f32 %v5938, %v5972
        %v5978 = vmul.f32 %v5939, %v5972
        %v5979 = vmul.f32 %v5940, %v5972
        %v5980 = vmul.f32 %v5941, %v5972
        %v5981 = vmul.f32 %v5942, %v5972
        %v5982 = vmul.f32 %v5943, %v5972
        %v5983 = vmul.f32 %v5944, %v5972
        %v5984 = vmul.f32 %v5945, %v5972
        %v5985 = vmul.f32 %v5946, %v5972
        %v5986 = vmul.f32 %v5947, %v5972
        %v5987 = vmul.f32 %v5948, %v5972
        %v5988 = vmul.f32 %v5949, %v5972
        %v5989 = vmul.f32 %v5950, %v5972
        %v5990 = vmul.f32 %v5951, %v5972
        %v5991 = vmul.f32 %v5952, %v5972
        %v5992 = vmul.f32 %v5953, %v5972
        %v5993 = vmul.f32 %v5954, %v5972
        %v5994 = vmul.f32 %v5955, %v5972
        %v5995 = vmul.f32 %v5956, %v5972
        %v5996 = vmul.f32 %v5957, %v5972
        %v5997 = vmul.f32 %v5958, %v5972
        %v5998 = vmul.f32 %v5959, %v5972
        %v5999 = vmul.f32 %v5960, %v5972
        %v6000 = vmul.f32 %v5961, %v5972
        %v6001 = vmul.f32 %v5962, %v5972
        %v6002 = vmul.f32 %v5963, %v5972
        %v6003 = vmul.f32 %v5964, %v5972
        %v6004 = vmul.f32 %v5965, %v5972
        %v6005 = vmul.f32 %v5966, %v5972
        %v6006 = vld [vmem:[%s3] sm:$0x1]
        %v6008 = vlaneseq
        %v6009 = vshrl.u32 %v6008, 7
        %v6010 = vsub.s32 0, %v6009
        %v6011 = vrot.slane %v6006, %v6010
        %v6013 = vadd.f32 %v5974, %v6011
        %v6014 = vadd.f32 %v5975, %v6011
        %v6015 = vadd.f32 %v5976, %v6011
        %v6016 = vadd.f32 %v5977, %v6011
        %v6017 = vadd.f32 %v5978, %v6011
        %v6018 = vadd.f32 %v5979, %v6011
        %v6019 = vadd.f32 %v5980, %v6011
        %v6020 = vadd.f32 %v5981, %v6011
        %v6021 = vadd.f32 %v5982, %v6011
        %v6022 = vadd.f32 %v5983, %v6011
        %v6023 = vadd.f32 %v5984, %v6011
        %v6024 = vadd.f32 %v5985, %v6011
        %v6025 = vadd.f32 %v5986, %v6011
        %v6026 = vadd.f32 %v5987, %v6011
        %v6027 = vadd.f32 %v5988, %v6011
        %v6028 = vadd.f32 %v5989, %v6011
        %v6029 = vadd.f32 %v5990, %v6011
        %v6030 = vadd.f32 %v5991, %v6011
        %v6031 = vadd.f32 %v5992, %v6011
        %v6032 = vadd.f32 %v5993, %v6011
        %v6033 = vadd.f32 %v5994, %v6011
        %v6034 = vadd.f32 %v5995, %v6011
        %v6035 = vadd.f32 %v5996, %v6011
        %v6036 = vadd.f32 %v5997, %v6011
        %v6037 = vadd.f32 %v5998, %v6011
        %v6038 = vadd.f32 %v5999, %v6011
        %v6039 = vadd.f32 %v6000, %v6011
        %v6040 = vadd.f32 %v6001, %v6011
        %v6041 = vadd.f32 %v6002, %v6011
        %v6042 = vadd.f32 %v6003, %v6011
        %v6043 = vadd.f32 %v6004, %v6011
        %v6044 = vadd.f32 %v6005, %v6011
        %v6045 = vmax.f32 %v6013, 0.0
        %v6046 = vmax.f32 %v6014, 0.0
        %v6047 = vmax.f32 %v6015, 0.0
        %v6048 = vmax.f32 %v6016, 0.0
        %v6049 = vmax.f32 %v6017, 0.0
        %v6050 = vmax.f32 %v6018, 0.0
        %v6051 = vmax.f32 %v6019, 0.0
        %v6052 = vmax.f32 %v6020, 0.0
        %v6053 = vmax.f32 %v6021, 0.0
        %v6054 = vmax.f32 %v6022, 0.0
        %v6055 = vmax.f32 %v6023, 0.0
        %v6056 = vmax.f32 %v6024, 0.0
        %v6057 = vmax.f32 %v6025, 0.0
        %v6058 = vmax.f32 %v6026, 0.0
        %v6059 = vmax.f32 %v6027, 0.0
        %v6060 = vmax.f32 %v6028, 0.0
        %v6061 = vmax.f32 %v6029, 0.0
        %v6062 = vmax.f32 %v6030, 0.0
        %v6063 = vmax.f32 %v6031, 0.0
        %v6064 = vmax.f32 %v6032, 0.0
        %v6065 = vmax.f32 %v6033, 0.0
        %v6066 = vmax.f32 %v6034, 0.0
        %v6067 = vmax.f32 %v6035, 0.0
        %v6068 = vmax.f32 %v6036, 0.0
        %v6069 = vmax.f32 %v6037, 0.0
        %v6070 = vmax.f32 %v6038, 0.0
        %v6071 = vmax.f32 %v6039, 0.0
        %v6072 = vmax.f32 %v6040, 0.0
        %v6073 = vmax.f32 %v6041, 0.0
        %v6074 = vmax.f32 %v6042, 0.0
        %v6075 = vmax.f32 %v6043, 0.0
        %v6076 = vmax.f32 %v6044, 0.0
        %v6077 = vpack.c.bf16 %v6046, %v6045
        %v6078 = vpack.c.bf16 %v6048, %v6047
        %v6079 = vpack.c.bf16 %v6050, %v6049
        %v6080 = vpack.c.bf16 %v6052, %v6051
        %v6081 = vpack.c.bf16 %v6054, %v6053
        %v6082 = vpack.c.bf16 %v6056, %v6055
        %v6083 = vpack.c.bf16 %v6058, %v6057
        %v6084 = vpack.c.bf16 %v6060, %v6059
        %v6085 = vpack.c.bf16 %v6062, %v6061
        %v6086 = vpack.c.bf16 %v6064, %v6063
        %v6087 = vpack.c.bf16 %v6066, %v6065
        %v6088 = vpack.c.bf16 %v6068, %v6067
        %v6089 = vpack.c.bf16 %v6070, %v6069
        %v6090 = vpack.c.bf16 %v6072, %v6071
        %v6091 = vpack.c.bf16 %v6074, %v6073
        %v6092 = vpack.c.bf16 %v6076, %v6075
        %v6109 = vunpack.c.l.b16 %v6077
        %v6110 = vunpack.c.h.b16 %v6077
        %v6111 = vunpack.c.l.b16 %v6078
        %v6112 = vunpack.c.h.b16 %v6078
        %v6113 = vunpack.c.l.b16 %v6079
        %v6114 = vunpack.c.h.b16 %v6079
        %v6115 = vunpack.c.l.b16 %v6080
        %v6116 = vunpack.c.h.b16 %v6080
        %v6117 = vunpack.c.l.b16 %v6081
        %v6118 = vunpack.c.h.b16 %v6081
        %v6119 = vunpack.c.l.b16 %v6082
        %v6120 = vunpack.c.h.b16 %v6082
        %v6121 = vunpack.c.l.b16 %v6083
        %v6122 = vunpack.c.h.b16 %v6083
        %v6123 = vunpack.c.l.b16 %v6084
        %v6124 = vunpack.c.h.b16 %v6084
        %v6125 = vunpack.c.l.b16 %v6085
        %v6126 = vunpack.c.h.b16 %v6085
        %v6127 = vunpack.c.l.b16 %v6086
        %v6128 = vunpack.c.h.b16 %v6086
        %v6129 = vunpack.c.l.b16 %v6087
        %v6130 = vunpack.c.h.b16 %v6087
        %v6131 = vunpack.c.l.b16 %v6088
        %v6132 = vunpack.c.h.b16 %v6088
        %v6133 = vunpack.c.l.b16 %v6089
        %v6134 = vunpack.c.h.b16 %v6089
        %v6135 = vunpack.c.l.b16 %v6090
        %v6136 = vunpack.c.h.b16 %v6090
        %v6137 = vunpack.c.l.b16 %v6091
        %v6138 = vunpack.c.h.b16 %v6091
        %v6139 = vunpack.c.l.b16 %v6092
        %v6140 = vunpack.c.h.b16 %v6092
        %v6141 = vpack.c.b16 %v6109, %v6109
        %v6142 = vpack.c.b16 %v6110, %v6110
        %v6143 = vpack.c.b16 %v6111, %v6111
        %v6144 = vpack.c.b16 %v6112, %v6112
        %v6145 = vpack.c.b16 %v6113, %v6113
        %v6146 = vpack.c.b16 %v6114, %v6114
        %v6147 = vpack.c.b16 %v6115, %v6115
        %v6148 = vpack.c.b16 %v6116, %v6116
        %v6149 = vpack.c.b16 %v6117, %v6117
        %v6150 = vpack.c.b16 %v6118, %v6118
        %v6151 = vpack.c.b16 %v6119, %v6119
        %v6152 = vpack.c.b16 %v6120, %v6120
        %v6153 = vpack.c.b16 %v6121, %v6121
        %v6154 = vpack.c.b16 %v6122, %v6122
        %v6155 = vpack.c.b16 %v6123, %v6123
        %v6156 = vpack.c.b16 %v6124, %v6124
        %v6157 = vpack.c.b16 %v6125, %v6125
        %v6158 = vpack.c.b16 %v6126, %v6126
        %v6159 = vpack.c.b16 %v6127, %v6127
        %v6160 = vpack.c.b16 %v6128, %v6128
        %v6161 = vpack.c.b16 %v6129, %v6129
        %v6162 = vpack.c.b16 %v6130, %v6130
        %v6163 = vpack.c.b16 %v6131, %v6131
        %v6164 = vpack.c.b16 %v6132, %v6132
        %v6165 = vpack.c.b16 %v6133, %v6133
        %v6166 = vpack.c.b16 %v6134, %v6134
        %v6167 = vpack.c.b16 %v6135, %v6135
        %v6168 = vpack.c.b16 %v6136, %v6136
        %v6169 = vpack.c.b16 %v6137, %v6137
        %v6170 = vpack.c.b16 %v6138, %v6138
        %v6171 = vpack.c.b16 %v6139, %v6139
        %v6172 = vpack.c.b16 %v6140, %v6140
        %vm6205 = vcmask 125952
        %6206 = vst.msk [vmem:[%s190] sm:$0xf] %vm6205, %v6141
        %6207 = vst.msk [vmem:[%s190 + $0x4] sm:$0xf] %vm6205, %v6142
        %6208 = vst.msk [vmem:[%s190 + $0x8] sm:$0xf] %vm6205, %v6143
        %6209 = vst.msk [vmem:[%s190 + $0xc] sm:$0xf] %vm6205, %v6144
        %6210 = vst.msk [vmem:[%s190 + $0x10] sm:$0xf] %vm6205, %v6145
        %6211 = vst.msk [vmem:[%s190 + $0x14] sm:$0xf] %vm6205, %v6146
        %6212 = vst.msk [vmem:[%s190 + $0x18] sm:$0xf] %vm6205, %v6147
        %6213 = vst.msk [vmem:[%s190 + $0x1c] sm:$0xf] %vm6205, %v6148
        %6214 = vst.msk [vmem:[%s190 + $0x20] sm:$0xf] %vm6205, %v6149
        %6215 = vst.msk [vmem:[%s190 + $0x24] sm:$0xf] %vm6205, %v6150
        %6216 = vst.msk [vmem:[%s190 + $0x28] sm:$0xf] %vm6205, %v6151
        %6217 = vst.msk [vmem:[%s190 + $0x2c] sm:$0xf] %vm6205, %v6152
        %6218 = vst.msk [vmem:[%s190 + $0x30] sm:$0xf] %vm6205, %v6153
        %6219 = vst.msk [vmem:[%s190 + $0x34] sm:$0xf] %vm6205, %v6154
        %6220 = vst.msk [vmem:[%s190 + $0x38] sm:$0xf] %vm6205, %v6155
        %6221 = vst.msk [vmem:[%s190 + $0x3c] sm:$0xf] %vm6205, %v6156
        %6222 = vst.msk [vmem:[%s190 + $0x40] sm:$0xf] %vm6205, %v6157
        %6223 = vst.msk [vmem:[%s190 + $0x44] sm:$0xf] %vm6205, %v6158
        %6224 = vst.msk [vmem:[%s190 + $0x48] sm:$0xf] %vm6205, %v6159
        %6225 = vst.msk [vmem:[%s190 + $0x4c] sm:$0xf] %vm6205, %v6160
        %6226 = vst.msk [vmem:[%s190 + $0x50] sm:$0xf] %vm6205, %v6161
        %6227 = vst.msk [vmem:[%s190 + $0x54] sm:$0xf] %vm6205, %v6162
        %6228 = vst.msk [vmem:[%s190 + $0x58] sm:$0xf] %vm6205, %v6163
        %6229 = vst.msk [vmem:[%s190 + $0x5c] sm:$0xf] %vm6205, %v6164
        %6230 = vst.msk [vmem:[%s190 + $0x60] sm:$0xf] %vm6205, %v6165
        %6231 = vst.msk [vmem:[%s190 + $0x64] sm:$0xf] %vm6205, %v6166
        %6232 = vst.msk [vmem:[%s190 + $0x68] sm:$0xf] %vm6205, %v6167
        %6233 = vst.msk [vmem:[%s190 + $0x6c] sm:$0xf] %vm6205, %v6168
        %6234 = vst.msk [vmem:[%s190 + $0x70] sm:$0xf] %vm6205, %v6169
        %6235 = vst.msk [vmem:[%s190 + $0x74] sm:$0xf] %vm6205, %v6170
        %6236 = vst.msk [vmem:[%s190 + $0x78] sm:$0xf] %vm6205, %v6171
        %6237 = vst.msk [vmem:[%s190 + $0x7c] sm:$0xf] %vm6205, %v6172
        %s6238 = sand.u32 %s115, 1
        %s6239 = scalar_lea.sflag [#allocation3], %s6238
        %s6240 = sand.u32 %s115, 1
        %s6241 = smul.addr %s6240, 128
        %s6242 = scalar_lea.vmem [#allocation2], %s6241
        // Predicated region
        $region37: #{tpu_custom_call.1} parent=35 // pred_check
          %p6243 = pneg %p125
        $region38: #{tpu_custom_call.1} parent=35 // pred_check_branch
          %6245 = sbr.rel (%p6243) target = $region40
        $region39: #{tpu_custom_call.1} parent=35 // pred_region
          %s6247 = ssub.s32 2048, 2048
          %6248 = vsyncadd %s6239, %s6247
          %s6249 = smul.addr %s18, 32
          %s6250 = smul.addr %s6249, 64
          %s6251 = scalar_lea.hbm %s4, %s6250
          %s6252 = sshll.u32 %s6242, 4
          %s6253 = int_to_ptr.vmem [resolvable:$true] %s6252
          %6258 = dma.vmem_to_hbm [thread:$0]  %s6253, 2048, %s6251, %s6239, 64, 64, 4
        $region40: #{tpu_custom_call.1} parent=35 // pred_fallthru
          _
      $region36: #{tpu_custom_call.1} parent=5 // pred_fallthru
        _
      %p6259 = scmp.le.s32.totalorder 2, %s13
      // Predicated region
      $region41: #{tpu_custom_call.1} parent=5 // pred_check
        %p6260 = pneg %p6259
      $region42: #{tpu_custom_call.1} parent=5 // pred_check_branch
        %6262 = sbr.rel (%p6260) target = $region44
      $region43: #{tpu_custom_call.1} parent=5 // pred_region
        %s6263 = ssub.s32 %s13, 2
        // Predicated region
        $region45: #{tpu_custom_call.1} parent=43 // pred_check
          %p6264 = pneg %p131
        $region46: #{tpu_custom_call.1} parent=43 // pred_check_branch
          %6266 = sbr.rel (%p6264) target = $region48
        $region47: #{tpu_custom_call.1} parent=43 // pred_region
          %s6267 = sand.u32 %s116, 1
          %s6268 = scalar_lea.sflag [#allocation3], %s6267
          %s6269 = sand.u32 %s116, 1
          %s6270 = smul.addr %s6269, 128
          %s6271 = scalar_lea.vmem [#allocation2], %s6270
          %6272 = dma.done %s6268, 2048
        $region48: #{tpu_custom_call.1} parent=43 // pred_fallthru
          _
      $region44: #{tpu_custom_call.1} parent=5 // pred_fallthru
        _
    $region6: #{tpu_custom_call.1} parent=1 // loop_footer
      %s17 = sadd.s32 1, %s13
    $region7: #{tpu_custom_call.1} parent=1 // loop_footer_branch
      %12 = sbr.rel target = $region3
    $region8: #{tpu_custom_call.1} parent=1 // loop_exit
      _
    %6273 = vsyncpa [#allocation3], 1
    %s6274 = scalar_lea.sflag [#allocation3], 1
    %6275 = vsyncpa %s6274, 1

</llo_original>
